<compile_context>
chip_gen: v7x
topology: tpu7x:2x2x1
jax: 0.10.0
libtpu: 0.0.40
codegen_flags: <defaults>
</compile_context>

<pallas_src>
import math
import functools

import jax
import jax.numpy as jnp
from jax.experimental import pallas as pl
from jax.experimental.pallas import tpu as pltpu


def _mha_kernel(q_ref, k_ref, v_ref,
                wq_ref, wk_ref, wv_ref, wo_ref,
                bq_ref, bk_ref, bv_ref, bo_ref,
                out_ref, *, heads, d_k, tb, seq):
    D = heads * d_k
    M = tb * seq
    f32 = jnp.float32
    bf16 = jnp.bfloat16

    # (TB, S, D) -> (TB*S, D): leading-dim merge only (no relayout); already bf16.
    xq = q_ref[...].reshape(M, D)
    xk = k_ref[...].reshape(M, D)
    xv = v_ref[...].reshape(M, D)

    scale = 1.0 / math.sqrt(d_k)

    def project(x, w_ref, b_ref, s=None):
        # Per-head projection into a head-LEADING layout with zero lane slicing:
        # H matmuls (M,D)x(D,d_k) on the MXU + a leading-dim stack.
        ys = []
        for h in range(heads):
            y = jnp.dot(x, w_ref[h], preferred_element_type=f32) + b_ref[h]
            ys.append(y)
        y = jnp.stack(ys, axis=0)                    # (heads, M, d_k) f32
        if s is not None:
            y = y * s
        # (heads, tb*seq, d_k) -> (heads*tb, seq, d_k): leading-dim regroup only.
        return y.reshape(heads * tb, seq, d_k).astype(bf16)

    # 1/sqrt(d_k) folded into the projected q (cheaper than scaling S*S scores).
    q3 = project(xq, wq_ref, bq_ref, scale)
    k3 = project(xk, wk_ref, bk_ref)
    v3 = project(xv, wv_ref, bv_ref)

    # Batched scores over (heads*tb), contracting the last dims of q and k.
    scores = jnp.einsum("bqd,bkd->bqk", q3, k3,
                        preferred_element_type=f32)          # (H*TB, S, S) f32

    # Numerically stable softmax; normalization deferred to after the PV matmul
    # so the VPU multiply runs over d_k columns instead of S.
    m = jnp.max(scores, axis=-1, keepdims=True)
    p = jnp.exp(scores - m)                                  # unnormalized, <= 1
    denom = jnp.sum(p, axis=-1, keepdims=True)               # (H*TB, S, 1)
    # TODO(synk): dropout(p) omitted here (eval-mode identity).

    ctx = jnp.einsum("bqk,bkd->bqd", p.astype(bf16), v3,
                     preferred_element_type=f32)             # (H*TB, S, d_k) f32
    # approx reciprocal on the EUP slot (~1e-3 rel. error vs f32 softmax).
    ctx = ctx * pl.reciprocal(denom, approx=True)

    # Output projection: out = sum_h ctx_h @ Wo_h + bo. The (head, d_k) feature
    # concat is folded into the per-head Wo slabs, so the head merge is a pure
    # leading-dim regroup (no lane-dim concatenate).
    ctx_h = ctx.reshape(heads, M, d_k).astype(bf16)
    acc = jnp.dot(ctx_h[0], wo_ref[0], preferred_element_type=f32)
    for h in range(1, heads):
        acc = acc + jnp.dot(ctx_h[h], wo_ref[h], preferred_element_type=f32)
    out = acc + bo_ref[...]

    out_ref[...] = out.reshape(tb, seq, D).astype(out_ref.dtype)


def multi_head_attention(q, k, v, params, *, heads, batch_block=None):
    """q, k, v: (B, S, D) float32. params: PyTorch-style (out, in) weights + (D,) biases."""
    B, S, D = q.shape
    assert D % heads == 0
    d_k = D // heads

    if batch_block is None:
        # >= 2 grid steps on the "parallel" axis so both v7x TensorCores get
        # work, while keeping M = batch_block*S rows per step reasonably large.
        batch_block = max(1, B // 2)
        batch_block = min(batch_block, max(1, 512 // S))
        while B % batch_block:
            batch_block -= 1
    assert B % batch_block == 0

    bf16, f32 = jnp.bfloat16, jnp.float32

    # Activations to bf16 in HBM: halves the activation DMA; MXU path is bf16.
    qb, kb, vb = (x.astype(bf16) for x in (q, k, v))

    # nn.Linear stores (out, in). Split q/k/v out-features and the out-proj
    # in-features per head in the wrapper (free layout plumbing) so the kernel
    # never slices the lane dimension. Weights live in HBM as bf16.
    def head_w_in(w):     # (D_out, D_in) -> (heads, D_in, d_k)
        return jnp.transpose(w.reshape(heads, d_k, D), (0, 2, 1)).astype(bf16)

    wq_h = head_w_in(params["wq"])
    wk_h = head_w_in(params["wk"])
    wv_h = head_w_in(params["wv"])
    wo_h = params["wo"].T.reshape(heads, d_k, D).astype(bf16)   # (heads, d_k, D)

    def head_b(b):        # (D,) -> (heads, 1, d_k) f32
        return b.reshape(heads, 1, d_k).astype(f32)

    bq_h, bk_h, bv_h = head_b(params["bq"]), head_b(params["bk"]), head_b(params["bv"])
    bo2 = params["bo"].reshape(1, D).astype(f32)

    x_spec = pl.BlockSpec((batch_block, S, D), lambda b: (b, 0, 0))
    kernel = functools.partial(_mha_kernel, heads=heads, d_k=d_k,
                               tb=batch_block, seq=S)
    args = (qb, kb, vb, wq_h, wk_h, wv_h, wo_h, bq_h, bk_h, bv_h, bo2)

    def build(single_buffer_weights):
        def const_spec(arr):
            # Same weight/bias block every grid step; single-buffer it so the
            # pipeline does not reserve a useless second VMEM copy.
            nd = arr.ndim
            zeros = (0,) * nd
            if single_buffer_weights:
                return pl.BlockSpec(arr.shape, lambda b: zeros,
                                    pipeline_mode=pl.Buffered(1))
            return pl.BlockSpec(arr.shape, lambda b: zeros)

        return pl.pallas_call(
            kernel,
            out_shape=jax.ShapeDtypeStruct((B, S, D), q.dtype),
            grid_spec=pltpu.PrefetchScalarGridSpec(
                num_scalar_prefetch=0,
                grid=(B // batch_block,),
                in_specs=[x_spec, x_spec, x_spec]
                         + [const_spec(a) for a in args[3:]],
                out_specs=x_spec,
            ),
            compiler_params=pltpu.CompilerParams(
                dimension_semantics=("parallel",),
                # Plenty for these tiles; raise toward physical-minus-headroom
                # (128 MiB v5e/v6e, 64 MiB v7x) for production tiles.
                vmem_limit_bytes=32 * 1024 * 1024,
            ),
        )

    try:
        return build(single_buffer_weights=True)(*args)
    except Exception:
        # pipeline_mode=pl.Buffered(1) not supported by this JAX/Mosaic build;
        # fall back to the default double-buffered pipeline (same semantics).
        return build(single_buffer_weights=False)(*args)


def _reference(q, k, v, params, *, heads):
    """Pure-JAX f32 reference mirroring the PyTorch forward (dropout = identity)."""
    B, S, D = q.shape
    d_k = D // heads

    def lin(x, w, b):
        return jnp.einsum("bsd,od->bso", x, w, precision="highest") + b

    qp = lin(q, params["wq"], params["bq"]).reshape(B, S, heads, d_k).transpose(0, 2, 1, 3)
    kp = lin(k, params["wk"], params["bk"]).reshape(B, S, heads, d_k).transpose(0, 2, 1, 3)
    vp = lin(v, params["wv"], params["bv"]).reshape(B, S, heads, d_k).transpose(0, 2, 1, 3)

    scores = jnp.einsum("bhqd,bhkd->bhqk", qp, kp, precision="highest") / math.sqrt(d_k)
    scores = jax.nn.softmax(scores, axis=-1)
    out = jnp.einsum("bhqk,bhkd->bhqd", scores, vp, precision="highest")
    concat = out.transpose(0, 2, 1, 3).reshape(B, S, D)
    return lin(concat, params["wo"], params["bo"])


if __name__ == "__main__":
    B, S, D, H = 2, 8, 32, 4

    key = jax.random.PRNGKey(0)
    keys = jax.random.split(key, 12)

    bound = 1.0 / math.sqrt(D)   # PyTorch nn.Linear default init range
    params = {
        "wq": jax.random.uniform(keys[0], (D, D), jnp.float32, -bound, bound),
        "bq": jax.random.uniform(keys[1], (D,),   jnp.float32, -bound, bound),
        "wk": jax.random.uniform(keys[2], (D, D), jnp.float32, -bound, bound),
        "bk": jax.random.uniform(keys[3], (D,),   jnp.float32, -bound, bound),
        "wv": jax.random.uniform(keys[4], (D, D), jnp.float32, -bound, bound),
        "bv": jax.random.uniform(keys[5], (D,),   jnp.float32, -bound, bound),
        "wo": jax.random.uniform(keys[6], (D, D), jnp.float32, -bound, bound),
        "bo": jax.random.uniform(keys[7], (D,),   jnp.float32, -bound, bound),
    }

    q = jax.random.normal(keys[8], (B, S, D), jnp.float32)
    k = jax.random.normal(keys[9], (B, S, D), jnp.float32)
    v = jax.random.normal(keys[10], (B, S, D), jnp.float32)

    out = multi_head_attention(q, k, v, params, heads=H)
    out = jax.block_until_ready(out)

    ref = _reference(q, k, v, params, heads=H)
    assert out.shape == (B, S, D)
    # bf16 MXU operands (f32 accumulation) + approx EUP reciprocal vs. the f32
    # "highest"-precision reference.
    assert jnp.allclose(out, ref, atol=2e-2, rtol=2e-2), "mismatch vs reference"

    print("KERNEL_OK")
</pallas_src>

<mosaic_0001>
module attributes {stable_mosaic.version = 11 : i64} {
  func.func @_mha_kernel(%arg0: i32, %arg1: memref<1x8x32xbf16, #tpu.memory_space<vmem>>, %arg2: memref<1x8x32xbf16, #tpu.memory_space<vmem>>, %arg3: memref<1x8x32xbf16, #tpu.memory_space<vmem>>, %arg4: memref<4x32x8xbf16, #tpu.memory_space<vmem>>, %arg5: memref<4x32x8xbf16, #tpu.memory_space<vmem>>, %arg6: memref<4x32x8xbf16, #tpu.memory_space<vmem>>, %arg7: memref<4x8x32xbf16, #tpu.memory_space<vmem>>, %arg8: memref<4x1x8xf32, #tpu.memory_space<vmem>>, %arg9: memref<4x1x8xf32, #tpu.memory_space<vmem>>, %arg10: memref<4x1x8xf32, #tpu.memory_space<vmem>>, %arg11: memref<1x32xf32, #tpu.memory_space<vmem>>, %arg12: memref<1x8x32xf32, #tpu.memory_space<vmem>>) attributes {dimension_semantics = [#tpu.dimension_semantics<parallel>], iteration_bounds = array<i64: 2>, scalar_prefetch = 0 : i64, scratch_operands = 0 : i64, tpu.core_type = #tpu.core_type<tc>, window_params = [{transform_indices = @transform_0, window_bounds = array<i64: 1, 8, 32>}, {transform_indices = @transform_1, window_bounds = array<i64: 1, 8, 32>}, {transform_indices = @transform_2, window_bounds = array<i64: 1, 8, 32>}, {pipeline_mode = #tpu.pipeline_mode<synchronous>, transform_indices = @transform_3, window_bounds = array<i64: 4, 32, 8>}, {pipeline_mode = #tpu.pipeline_mode<synchronous>, transform_indices = @transform_4, window_bounds = array<i64: 4, 32, 8>}, {pipeline_mode = #tpu.pipeline_mode<synchronous>, transform_indices = @transform_5, window_bounds = array<i64: 4, 32, 8>}, {pipeline_mode = #tpu.pipeline_mode<synchronous>, transform_indices = @transform_6, window_bounds = array<i64: 4, 8, 32>}, {pipeline_mode = #tpu.pipeline_mode<synchronous>, transform_indices = @transform_7, window_bounds = array<i64: 4, 1, 8>}, {pipeline_mode = #tpu.pipeline_mode<synchronous>, transform_indices = @transform_8, window_bounds = array<i64: 4, 1, 8>}, {pipeline_mode = #tpu.pipeline_mode<synchronous>, transform_indices = @transform_9, window_bounds = array<i64: 4, 1, 8>}, {pipeline_mode = #tpu.pipeline_mode<synchronous>, transform_indices = @transform_10, window_bounds = array<i64: 1, 32>}, {transform_indices = @transform_11, window_bounds = array<i64: 1, 8, 32>}]} {
    %c0 = arith.constant 0 : index
    %c0_0 = arith.constant 0 : index
    %c0_1 = arith.constant 0 : index
    %0 = vector.load %arg1[%c0, %c0_0, %c0_1] : memref<1x8x32xbf16, #tpu.memory_space<vmem>>, vector<1x8x32xbf16>
    %1 = vector.shape_cast %0 : vector<1x8x32xbf16> to vector<8x32xbf16>
    %c0_2 = arith.constant 0 : index
    %c0_3 = arith.constant 0 : index
    %c0_4 = arith.constant 0 : index
    %2 = vector.load %arg2[%c0_2, %c0_3, %c0_4] : memref<1x8x32xbf16, #tpu.memory_space<vmem>>, vector<1x8x32xbf16>
    %3 = vector.shape_cast %2 : vector<1x8x32xbf16> to vector<8x32xbf16>
    %c0_5 = arith.constant 0 : index
    %c0_6 = arith.constant 0 : index
    %c0_7 = arith.constant 0 : index
    %4 = vector.load %arg3[%c0_5, %c0_6, %c0_7] : memref<1x8x32xbf16, #tpu.memory_space<vmem>>, vector<1x8x32xbf16>
    %5 = vector.shape_cast %4 : vector<1x8x32xbf16> to vector<8x32xbf16>
    %c0_8 = arith.constant 0 : index
    %c0_9 = arith.constant 0 : index
    %c0_10 = arith.constant 0 : index
    %6 = vector.load %arg4[%c0_8, %c0_9, %c0_10] : memref<4x32x8xbf16, #tpu.memory_space<vmem>>, vector<1x32x8xbf16>
    %7 = vector.shape_cast %6 : vector<1x32x8xbf16> to vector<32x8xbf16>
    %cst = arith.constant dense<0.000000e+00> : vector<8x8xf32>
    %8 = tpu.matmul %1, %7, %cst {dimension_numbers = #tpu.dot_dimension_numbers<[1], [0], [0], [1], [0, 0, 1, 1], [], []>} : vector<8x32xbf16>, vector<32x8xbf16>, vector<8x8xf32> -> vector<8x8xf32>
    %c0_11 = arith.constant 0 : index
    %c0_12 = arith.constant 0 : index
    %c0_13 = arith.constant 0 : index
    %9 = vector.load %arg8[%c0_11, %c0_12, %c0_13] : memref<4x1x8xf32, #tpu.memory_space<vmem>>, vector<1x1x8xf32>
    %10 = vector.shape_cast %9 : vector<1x1x8xf32> to vector<1x8xf32>
    %11 = vector.broadcast %10 : vector<1x8xf32> to vector<8x8xf32>
    %12 = arith.addf %8, %11 : vector<8x8xf32>
    %c1 = arith.constant 1 : index
    %c0_14 = arith.constant 0 : index
    %c0_15 = arith.constant 0 : index
    %13 = vector.load %arg4[%c1, %c0_14, %c0_15] : memref<4x32x8xbf16, #tpu.memory_space<vmem>>, vector<1x32x8xbf16>
    %14 = vector.shape_cast %13 : vector<1x32x8xbf16> to vector<32x8xbf16>
    %cst_16 = arith.constant dense<0.000000e+00> : vector<8x8xf32>
    %15 = tpu.matmul %1, %14, %cst_16 {dimension_numbers = #tpu.dot_dimension_numbers<[1], [0], [0], [1], [0, 0, 1, 1], [], []>} : vector<8x32xbf16>, vector<32x8xbf16>, vector<8x8xf32> -> vector<8x8xf32>
    %c1_17 = arith.constant 1 : index
    %c0_18 = arith.constant 0 : index
    %c0_19 = arith.constant 0 : index
    %16 = vector.load %arg8[%c1_17, %c0_18, %c0_19] : memref<4x1x8xf32, #tpu.memory_space<vmem>>, vector<1x1x8xf32>
    %17 = vector.shape_cast %16 : vector<1x1x8xf32> to vector<1x8xf32>
    %18 = vector.broadcast %17 : vector<1x8xf32> to vector<8x8xf32>
    %19 = arith.addf %15, %18 : vector<8x8xf32>
    %c2 = arith.constant 2 : index
    %c0_20 = arith.constant 0 : index
    %c0_21 = arith.constant 0 : index
    %20 = vector.load %arg4[%c2, %c0_20, %c0_21] : memref<4x32x8xbf16, #tpu.memory_space<vmem>>, vector<1x32x8xbf16>
    %21 = vector.shape_cast %20 : vector<1x32x8xbf16> to vector<32x8xbf16>
    %cst_22 = arith.constant dense<0.000000e+00> : vector<8x8xf32>
    %22 = tpu.matmul %1, %21, %cst_22 {dimension_numbers = #tpu.dot_dimension_numbers<[1], [0], [0], [1], [0, 0, 1, 1], [], []>} : vector<8x32xbf16>, vector<32x8xbf16>, vector<8x8xf32> -> vector<8x8xf32>
    %c2_23 = arith.constant 2 : index
    %c0_24 = arith.constant 0 : index
    %c0_25 = arith.constant 0 : index
    %23 = vector.load %arg8[%c2_23, %c0_24, %c0_25] : memref<4x1x8xf32, #tpu.memory_space<vmem>>, vector<1x1x8xf32>
    %24 = vector.shape_cast %23 : vector<1x1x8xf32> to vector<1x8xf32>
    %25 = vector.broadcast %24 : vector<1x8xf32> to vector<8x8xf32>
    %26 = arith.addf %22, %25 : vector<8x8xf32>
    %c3 = arith.constant 3 : index
    %c0_26 = arith.constant 0 : index
    %c0_27 = arith.constant 0 : index
    %27 = vector.load %arg4[%c3, %c0_26, %c0_27] : memref<4x32x8xbf16, #tpu.memory_space<vmem>>, vector<1x32x8xbf16>
    %28 = vector.shape_cast %27 : vector<1x32x8xbf16> to vector<32x8xbf16>
    %cst_28 = arith.constant dense<0.000000e+00> : vector<8x8xf32>
    %29 = tpu.matmul %1, %28, %cst_28 {dimension_numbers = #tpu.dot_dimension_numbers<[1], [0], [0], [1], [0, 0, 1, 1], [], []>} : vector<8x32xbf16>, vector<32x8xbf16>, vector<8x8xf32> -> vector<8x8xf32>
    %c3_29 = arith.constant 3 : index
    %c0_30 = arith.constant 0 : index
    %c0_31 = arith.constant 0 : index
    %30 = vector.load %arg8[%c3_29, %c0_30, %c0_31] : memref<4x1x8xf32, #tpu.memory_space<vmem>>, vector<1x1x8xf32>
    %31 = vector.shape_cast %30 : vector<1x1x8xf32> to vector<1x8xf32>
    %32 = vector.broadcast %31 : vector<1x8xf32> to vector<8x8xf32>
    %33 = arith.addf %29, %32 : vector<8x8xf32>
    %34 = vector.shape_cast %12 : vector<8x8xf32> to vector<1x8x8xf32>
    %35 = vector.shape_cast %19 : vector<8x8xf32> to vector<1x8x8xf32>
    %36 = vector.shape_cast %26 : vector<8x8xf32> to vector<1x8x8xf32>
    %37 = vector.shape_cast %33 : vector<8x8xf32> to vector<1x8x8xf32>
    %38 = tpu.concatenate %34, %35, %36, %37 in 0 : vector<1x8x8xf32>, vector<1x8x8xf32>, vector<1x8x8xf32>, vector<1x8x8xf32> -> vector<4x8x8xf32>
    %cst_32 = arith.constant 0.353553385 : f32
    %39 = vector.broadcast %cst_32 : f32 to vector<4x8x8xf32>
    %40 = arith.mulf %38, %39 : vector<4x8x8xf32>
    %41 = arith.truncf %40 : vector<4x8x8xf32> to vector<4x8x8xbf16>
    %c0_33 = arith.constant 0 : index
    %c0_34 = arith.constant 0 : index
    %c0_35 = arith.constant 0 : index
    %42 = vector.load %arg5[%c0_33, %c0_34, %c0_35] : memref<4x32x8xbf16, #tpu.memory_space<vmem>>, vector<1x32x8xbf16>
    %43 = vector.shape_cast %42 : vector<1x32x8xbf16> to vector<32x8xbf16>
    %cst_36 = arith.constant dense<0.000000e+00> : vector<8x8xf32>
    %44 = tpu.matmul %3, %43, %cst_36 {dimension_numbers = #tpu.dot_dimension_numbers<[1], [0], [0], [1], [0, 0, 1, 1], [], []>} : vector<8x32xbf16>, vector<32x8xbf16>, vector<8x8xf32> -> vector<8x8xf32>
    %c0_37 = arith.constant 0 : index
    %c0_38 = arith.constant 0 : index
    %c0_39 = arith.constant 0 : index
    %45 = vector.load %arg9[%c0_37, %c0_38, %c0_39] : memref<4x1x8xf32, #tpu.memory_space<vmem>>, vector<1x1x8xf32>
    %46 = vector.shape_cast %45 : vector<1x1x8xf32> to vector<1x8xf32>
    %47 = vector.broadcast %46 : vector<1x8xf32> to vector<8x8xf32>
    %48 = arith.addf %44, %47 : vector<8x8xf32>
    %c1_40 = arith.constant 1 : index
    %c0_41 = arith.constant 0 : index
    %c0_42 = arith.constant 0 : index
    %49 = vector.load %arg5[%c1_40, %c0_41, %c0_42] : memref<4x32x8xbf16, #tpu.memory_space<vmem>>, vector<1x32x8xbf16>
    %50 = vector.shape_cast %49 : vector<1x32x8xbf16> to vector<32x8xbf16>
    %cst_43 = arith.constant dense<0.000000e+00> : vector<8x8xf32>
    %51 = tpu.matmul %3, %50, %cst_43 {dimension_numbers = #tpu.dot_dimension_numbers<[1], [0], [0], [1], [0, 0, 1, 1], [], []>} : vector<8x32xbf16>, vector<32x8xbf16>, vector<8x8xf32> -> vector<8x8xf32>
    %c1_44 = arith.constant 1 : index
    %c0_45 = arith.constant 0 : index
    %c0_46 = arith.constant 0 : index
    %52 = vector.load %arg9[%c1_44, %c0_45, %c0_46] : memref<4x1x8xf32, #tpu.memory_space<vmem>>, vector<1x1x8xf32>
    %53 = vector.shape_cast %52 : vector<1x1x8xf32> to vector<1x8xf32>
    %54 = vector.broadcast %53 : vector<1x8xf32> to vector<8x8xf32>
    %55 = arith.addf %51, %54 : vector<8x8xf32>
    %c2_47 = arith.constant 2 : index
    %c0_48 = arith.constant 0 : index
    %c0_49 = arith.constant 0 : index
    %56 = vector.load %arg5[%c2_47, %c0_48, %c0_49] : memref<4x32x8xbf16, #tpu.memory_space<vmem>>, vector<1x32x8xbf16>
    %57 = vector.shape_cast %56 : vector<1x32x8xbf16> to vector<32x8xbf16>
    %cst_50 = arith.constant dense<0.000000e+00> : vector<8x8xf32>
    %58 = tpu.matmul %3, %57, %cst_50 {dimension_numbers = #tpu.dot_dimension_numbers<[1], [0], [0], [1], [0, 0, 1, 1], [], []>} : vector<8x32xbf16>, vector<32x8xbf16>, vector<8x8xf32> -> vector<8x8xf32>
    %c2_51 = arith.constant 2 : index
    %c0_52 = arith.constant 0 : index
    %c0_53 = arith.constant 0 : index
    %59 = vector.load %arg9[%c2_51, %c0_52, %c0_53] : memref<4x1x8xf32, #tpu.memory_space<vmem>>, vector<1x1x8xf32>
    %60 = vector.shape_cast %59 : vector<1x1x8xf32> to vector<1x8xf32>
    %61 = vector.broadcast %60 : vector<1x8xf32> to vector<8x8xf32>
    %62 = arith.addf %58, %61 : vector<8x8xf32>
    %c3_54 = arith.constant 3 : index
    %c0_55 = arith.constant 0 : index
    %c0_56 = arith.constant 0 : index
    %63 = vector.load %arg5[%c3_54, %c0_55, %c0_56] : memref<4x32x8xbf16, #tpu.memory_space<vmem>>, vector<1x32x8xbf16>
    %64 = vector.shape_cast %63 : vector<1x32x8xbf16> to vector<32x8xbf16>
    %cst_57 = arith.constant dense<0.000000e+00> : vector<8x8xf32>
    %65 = tpu.matmul %3, %64, %cst_57 {dimension_numbers = #tpu.dot_dimension_numbers<[1], [0], [0], [1], [0, 0, 1, 1], [], []>} : vector<8x32xbf16>, vector<32x8xbf16>, vector<8x8xf32> -> vector<8x8xf32>
    %c3_58 = arith.constant 3 : index
    %c0_59 = arith.constant 0 : index
    %c0_60 = arith.constant 0 : index
    %66 = vector.load %arg9[%c3_58, %c0_59, %c0_60] : memref<4x1x8xf32, #tpu.memory_space<vmem>>, vector<1x1x8xf32>
    %67 = vector.shape_cast %66 : vector<1x1x8xf32> to vector<1x8xf32>
    %68 = vector.broadcast %67 : vector<1x8xf32> to vector<8x8xf32>
    %69 = arith.addf %65, %68 : vector<8x8xf32>
    %70 = vector.shape_cast %48 : vector<8x8xf32> to vector<1x8x8xf32>
    %71 = vector.shape_cast %55 : vector<8x8xf32> to vector<1x8x8xf32>
    %72 = vector.shape_cast %62 : vector<8x8xf32> to vector<1x8x8xf32>
    %73 = vector.shape_cast %69 : vector<8x8xf32> to vector<1x8x8xf32>
    %74 = tpu.concatenate %70, %71, %72, %73 in 0 : vector<1x8x8xf32>, vector<1x8x8xf32>, vector<1x8x8xf32>, vector<1x8x8xf32> -> vector<4x8x8xf32>
    %75 = arith.truncf %74 : vector<4x8x8xf32> to vector<4x8x8xbf16>
    %c0_61 = arith.constant 0 : index
    %c0_62 = arith.constant 0 : index
    %c0_63 = arith.constant 0 : index
    %76 = vector.load %arg6[%c0_61, %c0_62, %c0_63] : memref<4x32x8xbf16, #tpu.memory_space<vmem>>, vector<1x32x8xbf16>
    %77 = vector.shape_cast %76 : vector<1x32x8xbf16> to vector<32x8xbf16>
    %cst_64 = arith.constant dense<0.000000e+00> : vector<8x8xf32>
    %78 = tpu.matmul %5, %77, %cst_64 {dimension_numbers = #tpu.dot_dimension_numbers<[1], [0], [0], [1], [0, 0, 1, 1], [], []>} : vector<8x32xbf16>, vector<32x8xbf16>, vector<8x8xf32> -> vector<8x8xf32>
    %c0_65 = arith.constant 0 : index
    %c0_66 = arith.constant 0 : index
    %c0_67 = arith.constant 0 : index
    %79 = vector.load %arg10[%c0_65, %c0_66, %c0_67] : memref<4x1x8xf32, #tpu.memory_space<vmem>>, vector<1x1x8xf32>
    %80 = vector.shape_cast %79 : vector<1x1x8xf32> to vector<1x8xf32>
    %81 = vector.broadcast %80 : vector<1x8xf32> to vector<8x8xf32>
    %82 = arith.addf %78, %81 : vector<8x8xf32>
    %c1_68 = arith.constant 1 : index
    %c0_69 = arith.constant 0 : index
    %c0_70 = arith.constant 0 : index
    %83 = vector.load %arg6[%c1_68, %c0_69, %c0_70] : memref<4x32x8xbf16, #tpu.memory_space<vmem>>, vector<1x32x8xbf16>
    %84 = vector.shape_cast %83 : vector<1x32x8xbf16> to vector<32x8xbf16>
    %cst_71 = arith.constant dense<0.000000e+00> : vector<8x8xf32>
    %85 = tpu.matmul %5, %84, %cst_71 {dimension_numbers = #tpu.dot_dimension_numbers<[1], [0], [0], [1], [0, 0, 1, 1], [], []>} : vector<8x32xbf16>, vector<32x8xbf16>, vector<8x8xf32> -> vector<8x8xf32>
    %c1_72 = arith.constant 1 : index
    %c0_73 = arith.constant 0 : index
    %c0_74 = arith.constant 0 : index
    %86 = vector.load %arg10[%c1_72, %c0_73, %c0_74] : memref<4x1x8xf32, #tpu.memory_space<vmem>>, vector<1x1x8xf32>
    %87 = vector.shape_cast %86 : vector<1x1x8xf32> to vector<1x8xf32>
    %88 = vector.broadcast %87 : vector<1x8xf32> to vector<8x8xf32>
    %89 = arith.addf %85, %88 : vector<8x8xf32>
    %c2_75 = arith.constant 2 : index
    %c0_76 = arith.constant 0 : index
    %c0_77 = arith.constant 0 : index
    %90 = vector.load %arg6[%c2_75, %c0_76, %c0_77] : memref<4x32x8xbf16, #tpu.memory_space<vmem>>, vector<1x32x8xbf16>
    %91 = vector.shape_cast %90 : vector<1x32x8xbf16> to vector<32x8xbf16>
    %cst_78 = arith.constant dense<0.000000e+00> : vector<8x8xf32>
    %92 = tpu.matmul %5, %91, %cst_78 {dimension_numbers = #tpu.dot_dimension_numbers<[1], [0], [0], [1], [0, 0, 1, 1], [], []>} : vector<8x32xbf16>, vector<32x8xbf16>, vector<8x8xf32> -> vector<8x8xf32>
    %c2_79 = arith.constant 2 : index
    %c0_80 = arith.constant 0 : index
    %c0_81 = arith.constant 0 : index
    %93 = vector.load %arg10[%c2_79, %c0_80, %c0_81] : memref<4x1x8xf32, #tpu.memory_space<vmem>>, vector<1x1x8xf32>
    %94 = vector.shape_cast %93 : vector<1x1x8xf32> to vector<1x8xf32>
    %95 = vector.broadcast %94 : vector<1x8xf32> to vector<8x8xf32>
    %96 = arith.addf %92, %95 : vector<8x8xf32>
    %c3_82 = arith.constant 3 : index
    %c0_83 = arith.constant 0 : index
    %c0_84 = arith.constant 0 : index
    %97 = vector.load %arg6[%c3_82, %c0_83, %c0_84] : memref<4x32x8xbf16, #tpu.memory_space<vmem>>, vector<1x32x8xbf16>
    %98 = vector.shape_cast %97 : vector<1x32x8xbf16> to vector<32x8xbf16>
    %cst_85 = arith.constant dense<0.000000e+00> : vector<8x8xf32>
    %99 = tpu.matmul %5, %98, %cst_85 {dimension_numbers = #tpu.dot_dimension_numbers<[1], [0], [0], [1], [0, 0, 1, 1], [], []>} : vector<8x32xbf16>, vector<32x8xbf16>, vector<8x8xf32> -> vector<8x8xf32>
    %c3_86 = arith.constant 3 : index
    %c0_87 = arith.constant 0 : index
    %c0_88 = arith.constant 0 : index
    %100 = vector.load %arg10[%c3_86, %c0_87, %c0_88] : memref<4x1x8xf32, #tpu.memory_space<vmem>>, vector<1x1x8xf32>
    %101 = vector.shape_cast %100 : vector<1x1x8xf32> to vector<1x8xf32>
    %102 = vector.broadcast %101 : vector<1x8xf32> to vector<8x8xf32>
    %103 = arith.addf %99, %102 : vector<8x8xf32>
    %104 = vector.shape_cast %82 : vector<8x8xf32> to vector<1x8x8xf32>
    %105 = vector.shape_cast %89 : vector<8x8xf32> to vector<1x8x8xf32>
    %106 = vector.shape_cast %96 : vector<8x8xf32> to vector<1x8x8xf32>
    %107 = vector.shape_cast %103 : vector<8x8xf32> to vector<1x8x8xf32>
    %108 = tpu.concatenate %104, %105, %106, %107 in 0 : vector<1x8x8xf32>, vector<1x8x8xf32>, vector<1x8x8xf32>, vector<1x8x8xf32> -> vector<4x8x8xf32>
    %109 = arith.truncf %108 : vector<4x8x8xf32> to vector<4x8x8xbf16>
    "tpu.trace_start"() <{level = 10 : i32, message = "bqd,bkd->bqk"}> : () -> ()
    %cst_89 = arith.constant dense<0.000000e+00> : vector<4x8x8xf32>
    %110 = tpu.matmul %41, %75, %cst_89 {dimension_numbers = #tpu.dot_dimension_numbers<[2], [2], [1], [1], [0, 0, 0, 1, 1, 1], [0], [0]>} : vector<4x8x8xbf16>, vector<4x8x8xbf16>, vector<4x8x8xf32> -> vector<4x8x8xf32>
    "tpu.trace_stop"() : () -> ()
    %cst_90 = arith.constant dense<0xFF800000> : vector<4x8xf32>
    %111 = vector.multi_reduction <maximumf>, %110, %cst_90 [2] : vector<4x8x8xf32> to vector<4x8xf32>
    %112 = vector.shape_cast %111 : vector<4x8xf32> to vector<4x8x1xf32>
    %113 = vector.broadcast %112 : vector<4x8x1xf32> to vector<4x8x8xf32>
    %114 = arith.subf %110, %113 : vector<4x8x8xf32>
    %115 = math.exp %114 : vector<4x8x8xf32>
    %cst_91 = arith.constant dense<0.000000e+00> : vector<4x8xf32>
    %116 = vector.multi_reduction <add>, %115, %cst_91 [2] : vector<4x8x8xf32> to vector<4x8xf32>
    %117 = vector.shape_cast %116 : vector<4x8xf32> to vector<4x8x1xf32>
    %118 = arith.truncf %115 : vector<4x8x8xf32> to vector<4x8x8xbf16>
    "tpu.trace_start"() <{level = 10 : i32, message = "bqk,bkd->bqd"}> : () -> ()
    %cst_92 = arith.constant dense<0.000000e+00> : vector<4x8x8xf32>
    %119 = tpu.matmul %118, %109, %cst_92 {dimension_numbers = #tpu.dot_dimension_numbers<[2], [1], [1], [2], [0, 0, 0, 1, 1, 2], [0], [0]>} : vector<4x8x8xbf16>, vector<4x8x8xbf16>, vector<4x8x8xf32> -> vector<4x8x8xf32>
    "tpu.trace_stop"() : () -> ()
    %120 = tpu.reciprocal %117 {approx = true} : vector<4x8x1xf32> -> vector<4x8x1xf32>
    %121 = vector.broadcast %120 : vector<4x8x1xf32> to vector<4x8x8xf32>
    %122 = arith.mulf %119, %121 : vector<4x8x8xf32>
    %123 = arith.truncf %122 : vector<4x8x8xf32> to vector<4x8x8xbf16>
    %124 = vector.extract_strided_slice %123 {offsets = [0, 0, 0], sizes = [1, 8, 8], strides = [1, 1, 1]} : vector<4x8x8xbf16> to vector<1x8x8xbf16>
    %125 = vector.shape_cast %124 : vector<1x8x8xbf16> to vector<8x8xbf16>
    %c0_93 = arith.constant 0 : index
    %c0_94 = arith.constant 0 : index
    %c0_95 = arith.constant 0 : index
    %126 = vector.load %arg7[%c0_93, %c0_94, %c0_95] : memref<4x8x32xbf16, #tpu.memory_space<vmem>>, vector<1x8x32xbf16>
    %127 = vector.shape_cast %126 : vector<1x8x32xbf16> to vector<8x32xbf16>
    %cst_96 = arith.constant dense<0.000000e+00> : vector<8x32xf32>
    %128 = tpu.matmul %125, %127, %cst_96 {dimension_numbers = #tpu.dot_dimension_numbers<[1], [0], [0], [1], [0, 0, 1, 1], [], []>} : vector<8x8xbf16>, vector<8x32xbf16>, vector<8x32xf32> -> vector<8x32xf32>
    %129 = vector.extract_strided_slice %123 {offsets = [1, 0, 0], sizes = [1, 8, 8], strides = [1, 1, 1]} : vector<4x8x8xbf16> to vector<1x8x8xbf16>
    %130 = vector.shape_cast %129 : vector<1x8x8xbf16> to vector<8x8xbf16>
    %c1_97 = arith.constant 1 : index
    %c0_98 = arith.constant 0 : index
    %c0_99 = arith.constant 0 : index
    %131 = vector.load %arg7[%c1_97, %c0_98, %c0_99] : memref<4x8x32xbf16, #tpu.memory_space<vmem>>, vector<1x8x32xbf16>
    %132 = vector.shape_cast %131 : vector<1x8x32xbf16> to vector<8x32xbf16>
    %cst_100 = arith.constant dense<0.000000e+00> : vector<8x32xf32>
    %133 = tpu.matmul %130, %132, %cst_100 {dimension_numbers = #tpu.dot_dimension_numbers<[1], [0], [0], [1], [0, 0, 1, 1], [], []>} : vector<8x8xbf16>, vector<8x32xbf16>, vector<8x32xf32> -> vector<8x32xf32>
    %134 = arith.addf %128, %133 : vector<8x32xf32>
    %135 = vector.extract_strided_slice %123 {offsets = [2, 0, 0], sizes = [1, 8, 8], strides = [1, 1, 1]} : vector<4x8x8xbf16> to vector<1x8x8xbf16>
    %136 = vector.shape_cast %135 : vector<1x8x8xbf16> to vector<8x8xbf16>
    %c2_101 = arith.constant 2 : index
    %c0_102 = arith.constant 0 : index
    %c0_103 = arith.constant 0 : index
    %137 = vector.load %arg7[%c2_101, %c0_102, %c0_103] : memref<4x8x32xbf16, #tpu.memory_space<vmem>>, vector<1x8x32xbf16>
    %138 = vector.shape_cast %137 : vector<1x8x32xbf16> to vector<8x32xbf16>
    %cst_104 = arith.constant dense<0.000000e+00> : vector<8x32xf32>
    %139 = tpu.matmul %136, %138, %cst_104 {dimension_numbers = #tpu.dot_dimension_numbers<[1], [0], [0], [1], [0, 0, 1, 1], [], []>} : vector<8x8xbf16>, vector<8x32xbf16>, vector<8x32xf32> -> vector<8x32xf32>
    %140 = arith.addf %134, %139 : vector<8x32xf32>
    %141 = vector.extract_strided_slice %123 {offsets = [3, 0, 0], sizes = [1, 8, 8], strides = [1, 1, 1]} : vector<4x8x8xbf16> to vector<1x8x8xbf16>
    %142 = vector.shape_cast %141 : vector<1x8x8xbf16> to vector<8x8xbf16>
    %c3_105 = arith.constant 3 : index
    %c0_106 = arith.constant 0 : index
    %c0_107 = arith.constant 0 : index
    %143 = vector.load %arg7[%c3_105, %c0_106, %c0_107] : memref<4x8x32xbf16, #tpu.memory_space<vmem>>, vector<1x8x32xbf16>
    %144 = vector.shape_cast %143 : vector<1x8x32xbf16> to vector<8x32xbf16>
    %cst_108 = arith.constant dense<0.000000e+00> : vector<8x32xf32>
    %145 = tpu.matmul %142, %144, %cst_108 {dimension_numbers = #tpu.dot_dimension_numbers<[1], [0], [0], [1], [0, 0, 1, 1], [], []>} : vector<8x8xbf16>, vector<8x32xbf16>, vector<8x32xf32> -> vector<8x32xf32>
    %146 = arith.addf %140, %145 : vector<8x32xf32>
    %c0_109 = arith.constant 0 : index
    %c0_110 = arith.constant 0 : index
    %147 = vector.load %arg11[%c0_109, %c0_110] : memref<1x32xf32, #tpu.memory_space<vmem>>, vector<1x32xf32>
    %148 = vector.broadcast %147 : vector<1x32xf32> to vector<8x32xf32>
    %149 = arith.addf %146, %148 : vector<8x32xf32>
    %150 = vector.shape_cast %149 : vector<8x32xf32> to vector<1x8x32xf32>
    %c0_111 = arith.constant 0 : index
    %c0_112 = arith.constant 0 : index
    %c0_113 = arith.constant 0 : index
    %151 = vector.load %arg12[%c0_111, %c0_112, %c0_113] : memref<1x8x32xf32, #tpu.memory_space<vmem>>, vector<1x8x32xf32>
    tpu.vector_store %arg12[%c0_111, %c0_112, %c0_113], %150 {strides = array<i32>} : memref<1x8x32xf32, #tpu.memory_space<vmem>>, vector<1x8x32xf32>,
    return
  }
  func.func @transform_0(%arg0: i32) -> (i32, i32, i32) {
    %c0_i32 = arith.constant 0 : i32
    %c0_i32_0 = arith.constant 0 : i32
    %c0_i32_1 = arith.constant 0 : i32
    return %arg0, %c0_i32, %c0_i32_0 : i32, i32, i32
  }
  func.func @transform_1(%arg0: i32) -> (i32, i32, i32) {
    %c0_i32 = arith.constant 0 : i32
    %c0_i32_0 = arith.constant 0 : i32
    %c0_i32_1 = arith.constant 0 : i32
    return %arg0, %c0_i32, %c0_i32_0 : i32, i32, i32
  }
  func.func @transform_2(%arg0: i32) -> (i32, i32, i32) {
    %c0_i32 = arith.constant 0 : i32
    %c0_i32_0 = arith.constant 0 : i32
    %c0_i32_1 = arith.constant 0 : i32
    return %arg0, %c0_i32, %c0_i32_0 : i32, i32, i32
  }
  func.func @transform_3(%arg0: i32) -> (i32, i32, i32) {
    %c0_i32 = arith.constant 0 : i32
    %c0_i32_0 = arith.constant 0 : i32
    %c0_i32_1 = arith.constant 0 : i32
    %c0_i32_2 = arith.constant 0 : i32
    return %c0_i32, %c0_i32_0, %c0_i32_1 : i32, i32, i32
  }
  func.func @transform_4(%arg0: i32) -> (i32, i32, i32) {
    %c0_i32 = arith.constant 0 : i32
    %c0_i32_0 = arith.constant 0 : i32
    %c0_i32_1 = arith.constant 0 : i32
    %c0_i32_2 = arith.constant 0 : i32
    return %c0_i32, %c0_i32_0, %c0_i32_1 : i32, i32, i32
  }
  func.func @transform_5(%arg0: i32) -> (i32, i32, i32) {
    %c0_i32 = arith.constant 0 : i32
    %c0_i32_0 = arith.constant 0 : i32
    %c0_i32_1 = arith.constant 0 : i32
    %c0_i32_2 = arith.constant 0 : i32
    return %c0_i32, %c0_i32_0, %c0_i32_1 : i32, i32, i32
  }
  func.func @transform_6(%arg0: i32) -> (i32, i32, i32) {
    %c0_i32 = arith.constant 0 : i32
    %c0_i32_0 = arith.constant 0 : i32
    %c0_i32_1 = arith.constant 0 : i32
    %c0_i32_2 = arith.constant 0 : i32
    return %c0_i32, %c0_i32_0, %c0_i32_1 : i32, i32, i32
  }
  func.func @transform_7(%arg0: i32) -> (i32, i32, i32) {
    %c0_i32 = arith.constant 0 : i32
    %c0_i32_0 = arith.constant 0 : i32
    %c0_i32_1 = arith.constant 0 : i32
    %c0_i32_2 = arith.constant 0 : i32
    return %c0_i32, %c0_i32_0, %c0_i32_1 : i32, i32, i32
  }
  func.func @transform_8(%arg0: i32) -> (i32, i32, i32) {
    %c0_i32 = arith.constant 0 : i32
    %c0_i32_0 = arith.constant 0 : i32
    %c0_i32_1 = arith.constant 0 : i32
    %c0_i32_2 = arith.constant 0 : i32
    return %c0_i32, %c0_i32_0, %c0_i32_1 : i32, i32, i32
  }
  func.func @transform_9(%arg0: i32) -> (i32, i32, i32) {
    %c0_i32 = arith.constant 0 : i32
    %c0_i32_0 = arith.constant 0 : i32
    %c0_i32_1 = arith.constant 0 : i32
    %c0_i32_2 = arith.constant 0 : i32
    return %c0_i32, %c0_i32_0, %c0_i32_1 : i32, i32, i32
  }
  func.func @transform_10(%arg0: i32) -> (i32, i32) {
    %c0_i32 = arith.constant 0 : i32
    %c0_i32_0 = arith.constant 0 : i32
    %c0_i32_1 = arith.constant 0 : i32
    return %c0_i32, %c0_i32_0 : i32, i32
  }
  func.func @transform_11(%arg0: i32) -> (i32, i32, i32) {
    %c0_i32 = arith.constant 0 : i32
    %c0_i32_0 = arith.constant 0 : i32
    %c0_i32_1 = arith.constant 0 : i32
    return %arg0, %c0_i32, %c0_i32_0 : i32, i32, i32
  }
}

module attributes {stable_mosaic.version = 11 : i64} {
  func.func @_mha_kernel(%arg0: i32, %arg1: memref<1x8x32xbf16, #tpu.memory_space<vmem>>, %arg2: memref<1x8x32xbf16, #tpu.memory_space<vmem>>, %arg3: memref<1x8x32xbf16, #tpu.memory_space<vmem>>, %arg4: memref<4x32x8xbf16, #tpu.memory_space<vmem>>, %arg5: memref<4x32x8xbf16, #tpu.memory_space<vmem>>, %arg6: memref<4x32x8xbf16, #tpu.memory_space<vmem>>, %arg7: memref<4x8x32xbf16, #tpu.memory_space<vmem>>, %arg8: memref<4x1x8xf32, #tpu.memory_space<vmem>>, %arg9: memref<4x1x8xf32, #tpu.memory_space<vmem>>, %arg10: memref<4x1x8xf32, #tpu.memory_space<vmem>>, %arg11: memref<1x32xf32, #tpu.memory_space<vmem>>, %arg12: memref<1x8x32xf32, #tpu.memory_space<vmem>>) attributes {dimension_semantics = [#tpu.dimension_semantics<parallel>], iteration_bounds = array<i64: 2>, scalar_prefetch = 0 : i64, scratch_operands = 0 : i64, tpu.core_type = #tpu.core_type<tc>, window_params = [{transform_indices = @transform_0, window_bounds = array<i64: 1, 8, 32>}, {transform_indices = @transform_1, window_bounds = array<i64: 1, 8, 32>}, {transform_indices = @transform_2, window_bounds = array<i64: 1, 8, 32>}, {pipeline_mode = #tpu.pipeline_mode<synchronous>, transform_indices = @transform_3, window_bounds = array<i64: 4, 32, 8>}, {pipeline_mode = #tpu.pipeline_mode<synchronous>, transform_indices = @transform_4, window_bounds = array<i64: 4, 32, 8>}, {pipeline_mode = #tpu.pipeline_mode<synchronous>, transform_indices = @transform_5, window_bounds = array<i64: 4, 32, 8>}, {pipeline_mode = #tpu.pipeline_mode<synchronous>, transform_indices = @transform_6, window_bounds = array<i64: 4, 8, 32>}, {pipeline_mode = #tpu.pipeline_mode<synchronous>, transform_indices = @transform_7, window_bounds = array<i64: 4, 1, 8>}, {pipeline_mode = #tpu.pipeline_mode<synchronous>, transform_indices = @transform_8, window_bounds = array<i64: 4, 1, 8>}, {pipeline_mode = #tpu.pipeline_mode<synchronous>, transform_indices = @transform_9, window_bounds = array<i64: 4, 1, 8>}, {pipeline_mode = #tpu.pipeline_mode<synchronous>, transform_indices = @transform_10, window_bounds = array<i64: 1, 32>}, {transform_indices = @transform_11, window_bounds = array<i64: 1, 8, 32>}]} {
    %c0 = arith.constant 0 : index
    %c0_0 = arith.constant 0 : index
    %c0_1 = arith.constant 0 : index
    %0 = vector.load %arg1[%c0, %c0_0, %c0_1] : memref<1x8x32xbf16, #tpu.memory_space<vmem>>, vector<1x8x32xbf16>
    %1 = vector.shape_cast %0 : vector<1x8x32xbf16> to vector<8x32xbf16>
    %c0_2 = arith.constant 0 : index
    %c0_3 = arith.constant 0 : index
    %c0_4 = arith.constant 0 : index
    %2 = vector.load %arg2[%c0_2, %c0_3, %c0_4] : memref<1x8x32xbf16, #tpu.memory_space<vmem>>, vector<1x8x32xbf16>
    %3 = vector.shape_cast %2 : vector<1x8x32xbf16> to vector<8x32xbf16>
    %c0_5 = arith.constant 0 : index
    %c0_6 = arith.constant 0 : index
    %c0_7 = arith.constant 0 : index
    %4 = vector.load %arg3[%c0_5, %c0_6, %c0_7] : memref<1x8x32xbf16, #tpu.memory_space<vmem>>, vector<1x8x32xbf16>
    %5 = vector.shape_cast %4 : vector<1x8x32xbf16> to vector<8x32xbf16>
    %c0_8 = arith.constant 0 : index
    %c0_9 = arith.constant 0 : index
    %c0_10 = arith.constant 0 : index
    %6 = vector.load %arg4[%c0_8, %c0_9, %c0_10] : memref<4x32x8xbf16, #tpu.memory_space<vmem>>, vector<1x32x8xbf16>
    %7 = vector.shape_cast %6 : vector<1x32x8xbf16> to vector<32x8xbf16>
    %cst = arith.constant dense<0.000000e+00> : vector<8x8xf32>
    %8 = tpu.matmul %1, %7, %cst {dimension_numbers = #tpu.dot_dimension_numbers<[1], [0], [0], [1], [0, 0, 1, 1], [], []>} : vector<8x32xbf16>, vector<32x8xbf16>, vector<8x8xf32> -> vector<8x8xf32>
    %c0_11 = arith.constant 0 : index
    %c0_12 = arith.constant 0 : index
    %c0_13 = arith.constant 0 : index
    %9 = vector.load %arg8[%c0_11, %c0_12, %c0_13] : memref<4x1x8xf32, #tpu.memory_space<vmem>>, vector<1x1x8xf32>
    %10 = vector.shape_cast %9 : vector<1x1x8xf32> to vector<1x8xf32>
    %11 = vector.broadcast %10 : vector<1x8xf32> to vector<8x8xf32>
    %12 = arith.addf %8, %11 : vector<8x8xf32>
    %c1 = arith.constant 1 : index
    %c0_14 = arith.constant 0 : index
    %c0_15 = arith.constant 0 : index
    %13 = vector.load %arg4[%c1, %c0_14, %c0_15] : memref<4x32x8xbf16, #tpu.memory_space<vmem>>, vector<1x32x8xbf16>
    %14 = vector.shape_cast %13 : vector<1x32x8xbf16> to vector<32x8xbf16>
    %cst_16 = arith.constant dense<0.000000e+00> : vector<8x8xf32>
    %15 = tpu.matmul %1, %14, %cst_16 {dimension_numbers = #tpu.dot_dimension_numbers<[1], [0], [0], [1], [0, 0, 1, 1], [], []>} : vector<8x32xbf16>, vector<32x8xbf16>, vector<8x8xf32> -> vector<8x8xf32>
    %c1_17 = arith.constant 1 : index
    %c0_18 = arith.constant 0 : index
    %c0_19 = arith.constant 0 : index
    %16 = vector.load %arg8[%c1_17, %c0_18, %c0_19] : memref<4x1x8xf32, #tpu.memory_space<vmem>>, vector<1x1x8xf32>
    %17 = vector.shape_cast %16 : vector<1x1x8xf32> to vector<1x8xf32>
    %18 = vector.broadcast %17 : vector<1x8xf32> to vector<8x8xf32>
    %19 = arith.addf %15, %18 : vector<8x8xf32>
    %c2 = arith.constant 2 : index
    %c0_20 = arith.constant 0 : index
    %c0_21 = arith.constant 0 : index
    %20 = vector.load %arg4[%c2, %c0_20, %c0_21] : memref<4x32x8xbf16, #tpu.memory_space<vmem>>, vector<1x32x8xbf16>
    %21 = vector.shape_cast %20 : vector<1x32x8xbf16> to vector<32x8xbf16>
    %cst_22 = arith.constant dense<0.000000e+00> : vector<8x8xf32>
    %22 = tpu.matmul %1, %21, %cst_22 {dimension_numbers = #tpu.dot_dimension_numbers<[1], [0], [0], [1], [0, 0, 1, 1], [], []>} : vector<8x32xbf16>, vector<32x8xbf16>, vector<8x8xf32> -> vector<8x8xf32>
    %c2_23 = arith.constant 2 : index
    %c0_24 = arith.constant 0 : index
    %c0_25 = arith.constant 0 : index
    %23 = vector.load %arg8[%c2_23, %c0_24, %c0_25] : memref<4x1x8xf32, #tpu.memory_space<vmem>>, vector<1x1x8xf32>
    %24 = vector.shape_cast %23 : vector<1x1x8xf32> to vector<1x8xf32>
    %25 = vector.broadcast %24 : vector<1x8xf32> to vector<8x8xf32>
    %26 = arith.addf %22, %25 : vector<8x8xf32>
    %c3 = arith.constant 3 : index
    %c0_26 = arith.constant 0 : index
    %c0_27 = arith.constant 0 : index
    %27 = vector.load %arg4[%c3, %c0_26, %c0_27] : memref<4x32x8xbf16, #tpu.memory_space<vmem>>, vector<1x32x8xbf16>
    %28 = vector.shape_cast %27 : vector<1x32x8xbf16> to vector<32x8xbf16>
    %cst_28 = arith.constant dense<0.000000e+00> : vector<8x8xf32>
    %29 = tpu.matmul %1, %28, %cst_28 {dimension_numbers = #tpu.dot_dimension_numbers<[1], [0], [0], [1], [0, 0, 1, 1], [], []>} : vector<8x32xbf16>, vector<32x8xbf16>, vector<8x8xf32> -> vector<8x8xf32>
    %c3_29 = arith.constant 3 : index
    %c0_30 = arith.constant 0 : index
    %c0_31 = arith.constant 0 : index
    %30 = vector.load %arg8[%c3_29, %c0_30, %c0_31] : memref<4x1x8xf32, #tpu.memory_space<vmem>>, vector<1x1x8xf32>
    %31 = vector.shape_cast %30 : vector<1x1x8xf32> to vector<1x8xf32>
    %32 = vector.broadcast %31 : vector<1x8xf32> to vector<8x8xf32>
    %33 = arith.addf %29, %32 : vector<8x8xf32>
    %34 = vector.shape_cast %12 : vector<8x8xf32> to vector<1x8x8xf32>
    %35 = vector.shape_cast %19 : vector<8x8xf32> to vector<1x8x8xf32>
    %36 = vector.shape_cast %26 : vector<8x8xf32> to vector<1x8x8xf32>
    %37 = vector.shape_cast %33 : vector<8x8xf32> to vector<1x8x8xf32>
    %38 = tpu.concatenate %34, %35, %36, %37 in 0 : vector<1x8x8xf32>, vector<1x8x8xf32>, vector<1x8x8xf32>, vector<1x8x8xf32> -> vector<4x8x8xf32>
    %cst_32 = arith.constant 0.353553385 : f32
    %39 = vector.broadcast %cst_32 : f32 to vector<4x8x8xf32>
    %40 = arith.mulf %38, %39 : vector<4x8x8xf32>
    %41 = arith.truncf %40 : vector<4x8x8xf32> to vector<4x8x8xbf16>
    %c0_33 = arith.constant 0 : index
    %c0_34 = arith.constant 0 : index
    %c0_35 = arith.constant 0 : index
    %42 = vector.load %arg5[%c0_33, %c0_34, %c0_35] : memref<4x32x8xbf16, #tpu.memory_space<vmem>>, vector<1x32x8xbf16>
    %43 = vector.shape_cast %42 : vector<1x32x8xbf16> to vector<32x8xbf16>
    %cst_36 = arith.constant dense<0.000000e+00> : vector<8x8xf32>
    %44 = tpu.matmul %3, %43, %cst_36 {dimension_numbers = #tpu.dot_dimension_numbers<[1], [0], [0], [1], [0, 0, 1, 1], [], []>} : vector<8x32xbf16>, vector<32x8xbf16>, vector<8x8xf32> -> vector<8x8xf32>
    %c0_37 = arith.constant 0 : index
    %c0_38 = arith.constant 0 : index
    %c0_39 = arith.constant 0 : index
    %45 = vector.load %arg9[%c0_37, %c0_38, %c0_39] : memref<4x1x8xf32, #tpu.memory_space<vmem>>, vector<1x1x8xf32>
    %46 = vector.shape_cast %45 : vector<1x1x8xf32> to vector<1x8xf32>
    %47 = vector.broadcast %46 : vector<1x8xf32> to vector<8x8xf32>
    %48 = arith.addf %44, %47 : vector<8x8xf32>
    %c1_40 = arith.constant 1 : index
    %c0_41 = arith.constant 0 : index
    %c0_42 = arith.constant 0 : index
    %49 = vector.load %arg5[%c1_40, %c0_41, %c0_42] : memref<4x32x8xbf16, #tpu.memory_space<vmem>>, vector<1x32x8xbf16>
    %50 = vector.shape_cast %49 : vector<1x32x8xbf16> to vector<32x8xbf16>
    %cst_43 = arith.constant dense<0.000000e+00> : vector<8x8xf32>
    %51 = tpu.matmul %3, %50, %cst_43 {dimension_numbers = #tpu.dot_dimension_numbers<[1], [0], [0], [1], [0, 0, 1, 1], [], []>} : vector<8x32xbf16>, vector<32x8xbf16>, vector<8x8xf32> -> vector<8x8xf32>
    %c1_44 = arith.constant 1 : index
    %c0_45 = arith.constant 0 : index
    %c0_46 = arith.constant 0 : index
    %52 = vector.load %arg9[%c1_44, %c0_45, %c0_46] : memref<4x1x8xf32, #tpu.memory_space<vmem>>, vector<1x1x8xf32>
    %53 = vector.shape_cast %52 : vector<1x1x8xf32> to vector<1x8xf32>
    %54 = vector.broadcast %53 : vector<1x8xf32> to vector<8x8xf32>
    %55 = arith.addf %51, %54 : vector<8x8xf32>
    %c2_47 = arith.constant 2 : index
    %c0_48 = arith.constant 0 : index
    %c0_49 = arith.constant 0 : index
    %56 = vector.load %arg5[%c2_47, %c0_48, %c0_49] : memref<4x32x8xbf16, #tpu.memory_space<vmem>>, vector<1x32x8xbf16>
    %57 = vector.shape_cast %56 : vector<1x32x8xbf16> to vector<32x8xbf16>
    %cst_50 = arith.constant dense<0.000000e+00> : vector<8x8xf32>
    %58 = tpu.matmul %3, %57, %cst_50 {dimension_numbers = #tpu.dot_dimension_numbers<[1], [0], [0], [1], [0, 0, 1, 1], [], []>} : vector<8x32xbf16>, vector<32x8xbf16>, vector<8x8xf32> -> vector<8x8xf32>
    %c2_51 = arith.constant 2 : index
    %c0_52 = arith.constant 0 : index
    %c0_53 = arith.constant 0 : index
    %59 = vector.load %arg9[%c2_51, %c0_52, %c0_53] : memref<4x1x8xf32, #tpu.memory_space<vmem>>, vector<1x1x8xf32>
    %60 = vector.shape_cast %59 : vector<1x1x8xf32> to vector<1x8xf32>
    %61 = vector.broadcast %60 : vector<1x8xf32> to vector<8x8xf32>
    %62 = arith.addf %58, %61 : vector<8x8xf32>
    %c3_54 = arith.constant 3 : index
    %c0_55 = arith.constant 0 : index
    %c0_56 = arith.constant 0 : index
    %63 = vector.load %arg5[%c3_54, %c0_55, %c0_56] : memref<4x32x8xbf16, #tpu.memory_space<vmem>>, vector<1x32x8xbf16>
    %64 = vector.shape_cast %63 : vector<1x32x8xbf16> to vector<32x8xbf16>
    %cst_57 = arith.constant dense<0.000000e+00> : vector<8x8xf32>
    %65 = tpu.matmul %3, %64, %cst_57 {dimension_numbers = #tpu.dot_dimension_numbers<[1], [0], [0], [1], [0, 0, 1, 1], [], []>} : vector<8x32xbf16>, vector<32x8xbf16>, vector<8x8xf32> -> vector<8x8xf32>
    %c3_58 = arith.constant 3 : index
    %c0_59 = arith.constant 0 : index
    %c0_60 = arith.constant 0 : index
    %66 = vector.load %arg9[%c3_58, %c0_59, %c0_60] : memref<4x1x8xf32, #tpu.memory_space<vmem>>, vector<1x1x8xf32>
    %67 = vector.shape_cast %66 : vector<1x1x8xf32> to vector<1x8xf32>
    %68 = vector.broadcast %67 : vector<1x8xf32> to vector<8x8xf32>
    %69 = arith.addf %65, %68 : vector<8x8xf32>
    %70 = vector.shape_cast %48 : vector<8x8xf32> to vector<1x8x8xf32>
    %71 = vector.shape_cast %55 : vector<8x8xf32> to vector<1x8x8xf32>
    %72 = vector.shape_cast %62 : vector<8x8xf32> to vector<1x8x8xf32>
    %73 = vector.shape_cast %69 : vector<8x8xf32> to vector<1x8x8xf32>
    %74 = tpu.concatenate %70, %71, %72, %73 in 0 : vector<1x8x8xf32>, vector<1x8x8xf32>, vector<1x8x8xf32>, vector<1x8x8xf32> -> vector<4x8x8xf32>
    %75 = arith.truncf %74 : vector<4x8x8xf32> to vector<4x8x8xbf16>
    %c0_61 = arith.constant 0 : index
    %c0_62 = arith.constant 0 : index
    %c0_63 = arith.constant 0 : index
    %76 = vector.load %arg6[%c0_61, %c0_62, %c0_63] : memref<4x32x8xbf16, #tpu.memory_space<vmem>>, vector<1x32x8xbf16>
    %77 = vector.shape_cast %76 : vector<1x32x8xbf16> to vector<32x8xbf16>
    %cst_64 = arith.constant dense<0.000000e+00> : vector<8x8xf32>
    %78 = tpu.matmul %5, %77, %cst_64 {dimension_numbers = #tpu.dot_dimension_numbers<[1], [0], [0], [1], [0, 0, 1, 1], [], []>} : vector<8x32xbf16>, vector<32x8xbf16>, vector<8x8xf32> -> vector<8x8xf32>
    %c0_65 = arith.constant 0 : index
    %c0_66 = arith.constant 0 : index
    %c0_67 = arith.constant 0 : index
    %79 = vector.load %arg10[%c0_65, %c0_66, %c0_67] : memref<4x1x8xf32, #tpu.memory_space<vmem>>, vector<1x1x8xf32>
    %80 = vector.shape_cast %79 : vector<1x1x8xf32> to vector<1x8xf32>
    %81 = vector.broadcast %80 : vector<1x8xf32> to vector<8x8xf32>
    %82 = arith.addf %78, %81 : vector<8x8xf32>
    %c1_68 = arith.constant 1 : index
    %c0_69 = arith.constant 0 : index
    %c0_70 = arith.constant 0 : index
    %83 = vector.load %arg6[%c1_68, %c0_69, %c0_70] : memref<4x32x8xbf16, #tpu.memory_space<vmem>>, vector<1x32x8xbf16>
    %84 = vector.shape_cast %83 : vector<1x32x8xbf16> to vector<32x8xbf16>
    %cst_71 = arith.constant dense<0.000000e+00> : vector<8x8xf32>
    %85 = tpu.matmul %5, %84, %cst_71 {dimension_numbers = #tpu.dot_dimension_numbers<[1], [0], [0], [1], [0, 0, 1, 1], [], []>} : vector<8x32xbf16>, vector<32x8xbf16>, vector<8x8xf32> -> vector<8x8xf32>
    %c1_72 = arith.constant 1 : index
    %c0_73 = arith.constant 0 : index
    %c0_74 = arith.constant 0 : index
    %86 = vector.load %arg10[%c1_72, %c0_73, %c0_74] : memref<4x1x8xf32, #tpu.memory_space<vmem>>, vector<1x1x8xf32>
    %87 = vector.shape_cast %86 : vector<1x1x8xf32> to vector<1x8xf32>
    %88 = vector.broadcast %87 : vector<1x8xf32> to vector<8x8xf32>
    %89 = arith.addf %85, %88 : vector<8x8xf32>
    %c2_75 = arith.constant 2 : index
    %c0_76 = arith.constant 0 : index
    %c0_77 = arith.constant 0 : index
    %90 = vector.load %arg6[%c2_75, %c0_76, %c0_77] : memref<4x32x8xbf16, #tpu.memory_space<vmem>>, vector<1x32x8xbf16>
    %91 = vector.shape_cast %90 : vector<1x32x8xbf16> to vector<32x8xbf16>
    %cst_78 = arith.constant dense<0.000000e+00> : vector<8x8xf32>
    %92 = tpu.matmul %5, %91, %cst_78 {dimension_numbers = #tpu.dot_dimension_numbers<[1], [0], [0], [1], [0, 0, 1, 1], [], []>} : vector<8x32xbf16>, vector<32x8xbf16>, vector<8x8xf32> -> vector<8x8xf32>
    %c2_79 = arith.constant 2 : index
    %c0_80 = arith.constant 0 : index
    %c0_81 = arith.constant 0 : index
    %93 = vector.load %arg10[%c2_79, %c0_80, %c0_81] : memref<4x1x8xf32, #tpu.memory_space<vmem>>, vector<1x1x8xf32>
    %94 = vector.shape_cast %93 : vector<1x1x8xf32> to vector<1x8xf32>
    %95 = vector.broadcast %94 : vector<1x8xf32> to vector<8x8xf32>
    %96 = arith.addf %92, %95 : vector<8x8xf32>
    %c3_82 = arith.constant 3 : index
    %c0_83 = arith.constant 0 : index
    %c0_84 = arith.constant 0 : index
    %97 = vector.load %arg6[%c3_82, %c0_83, %c0_84] : memref<4x32x8xbf16, #tpu.memory_space<vmem>>, vector<1x32x8xbf16>
    %98 = vector.shape_cast %97 : vector<1x32x8xbf16> to vector<32x8xbf16>
    %cst_85 = arith.constant dense<0.000000e+00> : vector<8x8xf32>
    %99 = tpu.matmul %5, %98, %cst_85 {dimension_numbers = #tpu.dot_dimension_numbers<[1], [0], [0], [1], [0, 0, 1, 1], [], []>} : vector<8x32xbf16>, vector<32x8xbf16>, vector<8x8xf32> -> vector<8x8xf32>
    %c3_86 = arith.constant 3 : index
    %c0_87 = arith.constant 0 : index
    %c0_88 = arith.constant 0 : index
    %100 = vector.load %arg10[%c3_86, %c0_87, %c0_88] : memref<4x1x8xf32, #tpu.memory_space<vmem>>, vector<1x1x8xf32>
    %101 = vector.shape_cast %100 : vector<1x1x8xf32> to vector<1x8xf32>
    %102 = vector.broadcast %101 : vector<1x8xf32> to vector<8x8xf32>
    %103 = arith.addf %99, %102 : vector<8x8xf32>
    %104 = vector.shape_cast %82 : vector<8x8xf32> to vector<1x8x8xf32>
    %105 = vector.shape_cast %89 : vector<8x8xf32> to vector<1x8x8xf32>
    %106 = vector.shape_cast %96 : vector<8x8xf32> to vector<1x8x8xf32>
    %107 = vector.shape_cast %103 : vector<8x8xf32> to vector<1x8x8xf32>
    %108 = tpu.concatenate %104, %105, %106, %107 in 0 : vector<1x8x8xf32>, vector<1x8x8xf32>, vector<1x8x8xf32>, vector<1x8x8xf32> -> vector<4x8x8xf32>
    %109 = arith.truncf %108 : vector<4x8x8xf32> to vector<4x8x8xbf16>
    "tpu.trace_start"() <{level = 10 : i32, message = "bqd,bkd->bqk"}> : () -> ()
    %cst_89 = arith.constant dense<0.000000e+00> : vector<4x8x8xf32>
    %110 = tpu.matmul %41, %75, %cst_89 {dimension_numbers = #tpu.dot_dimension_numbers<[2], [2], [1], [1], [0, 0, 0, 1, 1, 1], [0], [0]>} : vector<4x8x8xbf16>, vector<4x8x8xbf16>, vector<4x8x8xf32> -> vector<4x8x8xf32>
    "tpu.trace_stop"() : () -> ()
    %cst_90 = arith.constant dense<0xFF800000> : vector<4x8xf32>
    %111 = vector.multi_reduction <maximumf>, %110, %cst_90 [2] : vector<4x8x8xf32> to vector<4x8xf32>
    %112 = vector.shape_cast %111 : vector<4x8xf32> to vector<4x8x1xf32>
    %113 = vector.broadcast %112 : vector<4x8x1xf32> to vector<4x8x8xf32>
    %114 = arith.subf %110, %113 : vector<4x8x8xf32>
    %115 = math.exp %114 : vector<4x8x8xf32>
    %cst_91 = arith.constant dense<0.000000e+00> : vector<4x8xf32>
    %116 = vector.multi_reduction <add>, %115, %cst_91 [2] : vector<4x8x8xf32> to vector<4x8xf32>
    %117 = vector.shape_cast %116 : vector<4x8xf32> to vector<4x8x1xf32>
    %118 = arith.truncf %115 : vector<4x8x8xf32> to vector<4x8x8xbf16>
    "tpu.trace_start"() <{level = 10 : i32, message = "bqk,bkd->bqd"}> : () -> ()
    %cst_92 = arith.constant dense<0.000000e+00> : vector<4x8x8xf32>
    %119 = tpu.matmul %118, %109, %cst_92 {dimension_numbers = #tpu.dot_dimension_numbers<[2], [1], [1], [2], [0, 0, 0, 1, 1, 2], [0], [0]>} : vector<4x8x8xbf16>, vector<4x8x8xbf16>, vector<4x8x8xf32> -> vector<4x8x8xf32>
    "tpu.trace_stop"() : () -> ()
    %120 = tpu.reciprocal %117 {approx = true} : vector<4x8x1xf32> -> vector<4x8x1xf32>
    %121 = vector.broadcast %120 : vector<4x8x1xf32> to vector<4x8x8xf32>
    %122 = arith.mulf %119, %121 : vector<4x8x8xf32>
    %123 = arith.truncf %122 : vector<4x8x8xf32> to vector<4x8x8xbf16>
    %124 = vector.extract_strided_slice %123 {offsets = [0, 0, 0], sizes = [1, 8, 8], strides = [1, 1, 1]} : vector<4x8x8xbf16> to vector<1x8x8xbf16>
    %125 = vector.shape_cast %124 : vector<1x8x8xbf16> to vector<8x8xbf16>
    %c0_93 = arith.constant 0 : index
    %c0_94 = arith.constant 0 : index
    %c0_95 = arith.constant 0 : index
    %126 = vector.load %arg7[%c0_93, %c0_94, %c0_95] : memref<4x8x32xbf16, #tpu.memory_space<vmem>>, vector<1x8x32xbf16>
    %127 = vector.shape_cast %126 : vector<1x8x32xbf16> to vector<8x32xbf16>
    %cst_96 = arith.constant dense<0.000000e+00> : vector<8x32xf32>
    %128 = tpu.matmul %125, %127, %cst_96 {dimension_numbers = #tpu.dot_dimension_numbers<[1], [0], [0], [1], [0, 0, 1, 1], [], []>} : vector<8x8xbf16>, vector<8x32xbf16>, vector<8x32xf32> -> vector<8x32xf32>
    %129 = vector.extract_strided_slice %123 {offsets = [1, 0, 0], sizes = [1, 8, 8], strides = [1, 1, 1]} : vector<4x8x8xbf16> to vector<1x8x8xbf16>
    %130 = vector.shape_cast %129 : vector<1x8x8xbf16> to vector<8x8xbf16>
    %c1_97 = arith.constant 1 : index
    %c0_98 = arith.constant 0 : index
    %c0_99 = arith.constant 0 : index
    %131 = vector.load %arg7[%c1_97, %c0_98, %c0_99] : memref<4x8x32xbf16, #tpu.memory_space<vmem>>, vector<1x8x32xbf16>
    %132 = vector.shape_cast %131 : vector<1x8x32xbf16> to vector<8x32xbf16>
    %cst_100 = arith.constant dense<0.000000e+00> : vector<8x32xf32>
    %133 = tpu.matmul %130, %132, %cst_100 {dimension_numbers = #tpu.dot_dimension_numbers<[1], [0], [0], [1], [0, 0, 1, 1], [], []>} : vector<8x8xbf16>, vector<8x32xbf16>, vector<8x32xf32> -> vector<8x32xf32>
    %134 = arith.addf %128, %133 : vector<8x32xf32>
    %135 = vector.extract_strided_slice %123 {offsets = [2, 0, 0], sizes = [1, 8, 8], strides = [1, 1, 1]} : vector<4x8x8xbf16> to vector<1x8x8xbf16>
    %136 = vector.shape_cast %135 : vector<1x8x8xbf16> to vector<8x8xbf16>
    %c2_101 = arith.constant 2 : index
    %c0_102 = arith.constant 0 : index
    %c0_103 = arith.constant 0 : index
    %137 = vector.load %arg7[%c2_101, %c0_102, %c0_103] : memref<4x8x32xbf16, #tpu.memory_space<vmem>>, vector<1x8x32xbf16>
    %138 = vector.shape_cast %137 : vector<1x8x32xbf16> to vector<8x32xbf16>
    %cst_104 = arith.constant dense<0.000000e+00> : vector<8x32xf32>
    %139 = tpu.matmul %136, %138, %cst_104 {dimension_numbers = #tpu.dot_dimension_numbers<[1], [0], [0], [1], [0, 0, 1, 1], [], []>} : vector<8x8xbf16>, vector<8x32xbf16>, vector<8x32xf32> -> vector<8x32xf32>
    %140 = arith.addf %134, %139 : vector<8x32xf32>
    %141 = vector.extract_strided_slice %123 {offsets = [3, 0, 0], sizes = [1, 8, 8], strides = [1, 1, 1]} : vector<4x8x8xbf16> to vector<1x8x8xbf16>
    %142 = vector.shape_cast %141 : vector<1x8x8xbf16> to vector<8x8xbf16>
    %c3_105 = arith.constant 3 : index
    %c0_106 = arith.constant 0 : index
    %c0_107 = arith.constant 0 : index
    %143 = vector.load %arg7[%c3_105, %c0_106, %c0_107] : memref<4x8x32xbf16, #tpu.memory_space<vmem>>, vector<1x8x32xbf16>
    %144 = vector.shape_cast %143 : vector<1x8x32xbf16> to vector<8x32xbf16>
    %cst_108 = arith.constant dense<0.000000e+00> : vector<8x32xf32>
    %145 = tpu.matmul %142, %144, %cst_108 {dimension_numbers = #tpu.dot_dimension_numbers<[1], [0], [0], [1], [0, 0, 1, 1], [], []>} : vector<8x8xbf16>, vector<8x32xbf16>, vector<8x32xf32> -> vector<8x32xf32>
    %146 = arith.addf %140, %145 : vector<8x32xf32>
    %c0_109 = arith.constant 0 : index
    %c0_110 = arith.constant 0 : index
    %147 = vector.load %arg11[%c0_109, %c0_110] : memref<1x32xf32, #tpu.memory_space<vmem>>, vector<1x32xf32>
    %148 = vector.broadcast %147 : vector<1x32xf32> to vector<8x32xf32>
    %149 = arith.addf %146, %148 : vector<8x32xf32>
    %150 = vector.shape_cast %149 : vector<8x32xf32> to vector<1x8x32xf32>
    %c0_111 = arith.constant 0 : index
    %c0_112 = arith.constant 0 : index
    %c0_113 = arith.constant 0 : index
    %151 = vector.load %arg12[%c0_111, %c0_112, %c0_113] : memref<1x8x32xf32, #tpu.memory_space<vmem>>, vector<1x8x32xf32>
    tpu.vector_store %arg12[%c0_111, %c0_112, %c0_113], %150 {strides = array<i32>} : memref<1x8x32xf32, #tpu.memory_space<vmem>>, vector<1x8x32xf32>,
    return
  }
  func.func @transform_0(%arg0: i32) -> (i32, i32, i32) {
    %c0_i32 = arith.constant 0 : i32
    %c0_i32_0 = arith.constant 0 : i32
    %c0_i32_1 = arith.constant 0 : i32
    return %arg0, %c0_i32, %c0_i32_0 : i32, i32, i32
  }
  func.func @transform_1(%arg0: i32) -> (i32, i32, i32) {
    %c0_i32 = arith.constant 0 : i32
    %c0_i32_0 = arith.constant 0 : i32
    %c0_i32_1 = arith.constant 0 : i32
    return %arg0, %c0_i32, %c0_i32_0 : i32, i32, i32
  }
  func.func @transform_2(%arg0: i32) -> (i32, i32, i32) {
    %c0_i32 = arith.constant 0 : i32
    %c0_i32_0 = arith.constant 0 : i32
    %c0_i32_1 = arith.constant 0 : i32
    return %arg0, %c0_i32, %c0_i32_0 : i32, i32, i32
  }
  func.func @transform_3(%arg0: i32) -> (i32, i32, i32) {
    %c0_i32 = arith.constant 0 : i32
    %c0_i32_0 = arith.constant 0 : i32
    %c0_i32_1 = arith.constant 0 : i32
    %c0_i32_2 = arith.constant 0 : i32
    return %c0_i32, %c0_i32_0, %c0_i32_1 : i32, i32, i32
  }
  func.func @transform_4(%arg0: i32) -> (i32, i32, i32) {
    %c0_i32 = arith.constant 0 : i32
    %c0_i32_0 = arith.constant 0 : i32
    %c0_i32_1 = arith.constant 0 : i32
    %c0_i32_2 = arith.constant 0 : i32
    return %c0_i32, %c0_i32_0, %c0_i32_1 : i32, i32, i32
  }
  func.func @transform_5(%arg0: i32) -> (i32, i32, i32) {
    %c0_i32 = arith.constant 0 : i32
    %c0_i32_0 = arith.constant 0 : i32
    %c0_i32_1 = arith.constant 0 : i32
    %c0_i32_2 = arith.constant 0 : i32
    return %c0_i32, %c0_i32_0, %c0_i32_1 : i32, i32, i32
  }
  func.func @transform_6(%arg0: i32) -> (i32, i32, i32) {
    %c0_i32 = arith.constant 0 : i32
    %c0_i32_0 = arith.constant 0 : i32
    %c0_i32_1 = arith.constant 0 : i32
    %c0_i32_2 = arith.constant 0 : i32
    return %c0_i32, %c0_i32_0, %c0_i32_1 : i32, i32, i32
  }
  func.func @transform_7(%arg0: i32) -> (i32, i32, i32) {
    %c0_i32 = arith.constant 0 : i32
    %c0_i32_0 = arith.constant 0 : i32
    %c0_i32_1 = arith.constant 0 : i32
    %c0_i32_2 = arith.constant 0 : i32
    return %c0_i32, %c0_i32_0, %c0_i32_1 : i32, i32, i32
  }
  func.func @transform_8(%arg0: i32) -> (i32, i32, i32) {
    %c0_i32 = arith.constant 0 : i32
    %c0_i32_0 = arith.constant 0 : i32
    %c0_i32_1 = arith.constant 0 : i32
    %c0_i32_2 = arith.constant 0 : i32
    return %c0_i32, %c0_i32_0, %c0_i32_1 : i32, i32, i32
  }
  func.func @transform_9(%arg0: i32) -> (i32, i32, i32) {
    %c0_i32 = arith.constant 0 : i32
    %c0_i32_0 = arith.constant 0 : i32
    %c0_i32_1 = arith.constant 0 : i32
    %c0_i32_2 = arith.constant 0 : i32
    return %c0_i32, %c0_i32_0, %c0_i32_1 : i32, i32, i32
  }
  func.func @transform_10(%arg0: i32) -> (i32, i32) {
    %c0_i32 = arith.constant 0 : i32
    %c0_i32_0 = arith.constant 0 : i32
    %c0_i32_1 = arith.constant 0 : i32
    return %c0_i32, %c0_i32_0 : i32, i32
  }
  func.func @transform_11(%arg0: i32) -> (i32, i32, i32) {
    %c0_i32 = arith.constant 0 : i32
    %c0_i32_0 = arith.constant 0 : i32
    %c0_i32_1 = arith.constant 0 : i32
    return %arg0, %c0_i32, %c0_i32_0 : i32, i32, i32
  }
}

</mosaic_0001>

<llo_original>
// kernel: tpu_custom_call.1
$region0: #{tpu_custom_call.1}
  #allocation0 [shape = 'u32[]', space=smem, size = 0x4, offset = 0x4, fixed_abs, tag = 'smem constant byte address 0x4 - core index']
  #allocation1 [shape = 'u32[144,128]{1,0:T(1,128)}', space=vmem, size = 0x12000, scoped, tag = 'internal scratch']
  %s0 = inlined_call_operand.vmem [shape: bf16[2,8,32], index: 0, kind: input, shape index: {}]
  %s1 = inlined_call_operand.vmem [shape: bf16[2,8,32], index: 1, kind: input, shape index: {}]
  %s2 = inlined_call_operand.vmem [shape: bf16[2,8,32], index: 2, kind: input, shape index: {}]
  %s3 = inlined_call_operand.vmem [shape: bf16[4,32,8], index: 3, kind: input, shape index: {}]
  %s4 = inlined_call_operand.vmem [shape: bf16[4,32,8], index: 4, kind: input, shape index: {}]
  %s5 = inlined_call_operand.vmem [shape: bf16[4,32,8], index: 5, kind: input, shape index: {}]
  %s6 = inlined_call_operand.vmem [shape: bf16[4,8,32], index: 6, kind: input, shape index: {}]
  %s7 = inlined_call_operand.vmem [shape: f32[4,1,8], index: 7, kind: input, shape index: {}]
  %s8 = inlined_call_operand.vmem [shape: f32[4,1,8], index: 8, kind: input, shape index: {}]
  %s9 = inlined_call_operand.vmem [shape: f32[4,1,8], index: 9, kind: input, shape index: {}]
  %s10 = inlined_call_operand.vmem [shape: f32[1,32], index: 10, kind: input, shape index: {}]
  %s11 = inlined_call_operand.hbm [shape: f32[2,8,32], index: 11, kind: output, shape index: {}]
  %s12 = sld [smem:[#allocation0]]
  $region77: #{tpu_custom_call.1} parent=0
    _
  %s14 = ssub.s32 1, %s12
  %s15 = scalar_select 0, %s14, %s12
  $region1: #{tpu_custom_call.1} parent=0
    #allocation2 [shape = 'u8[8192]{0}', space=vmem, size = 0x2000, scoped, tag = 'output window, operand 0']
    #allocation3 [shape = 's32[2]{0}', space=sflag, size = 0x8, scoped, tag = 'scoped memory for tpu_custom_call.1']
    %16 = vsyncpa [#allocation3], 0
    %s17 = scalar_lea.sflag [#allocation3], 1
    %18 = vsyncpa %s17, 0
    loop: start=0, step=1, limit=4
    $region2: #{tpu_custom_call.1} parent=1 // loop_pre_header
      _
    $region3: #{tpu_custom_call.1} parent=1 // loop_header
      %s20 = sphi 0, %s24
      %p21 = scmp.ge.s32.totalorder %s20, 4
      %s30 = sphi 0, %s32
      %s33 = sphi 0, %s30
      %s34 = sphi 0, %s33
      %s50 = sphi 0, %s34
      %s56 = sphi 0, %s58
      %s59 = sphi 0, %s56
      %s60 = sphi 0, %s59
      %s76 = sphi 0, %s60
      %s82 = sphi 0, %s84
      %s85 = sphi 0, %s82
      %s86 = sphi 0, %s85
      %s102 = sphi 0, %s86
      %s106 = sphi 0, %s106
      %s108 = sphi 0, %s106
      %s109 = sphi 0, %s108
      %s123 = sphi 0, %s109
      %s127 = sphi 0, %s127
      %s129 = sphi 0, %s127
      %s130 = sphi 0, %s129
      %s144 = sphi 0, %s130
      %s148 = sphi 0, %s148
      %s150 = sphi 0, %s148
      %s151 = sphi 0, %s150
      %s165 = sphi 0, %s151
      %s169 = sphi 0, %s169
      %s171 = sphi 0, %s169
      %s172 = sphi 0, %s171
      %s186 = sphi 0, %s172
      %s190 = sphi 0, %s190
      %s192 = sphi 0, %s190
      %s193 = sphi 0, %s192
      %s207 = sphi 0, %s193
      %s211 = sphi 0, %s211
      %s213 = sphi 0, %s211
      %s214 = sphi 0, %s213
      %s228 = sphi 0, %s214
      %s232 = sphi 0, %s232
      %s234 = sphi 0, %s232
      %s235 = sphi 0, %s234
      %s249 = sphi 0, %s235
      %s253 = sphi 0, %s253
      %s255 = sphi 0, %s253
      %s256 = sphi 0, %s255
      %s270 = sphi 0, %s256
      %s276 = sphi 0, %s278
      %s279 = sphi 0, %s276
      %s280 = sphi 0, %s279
      %s296 = sphi 0, %s280
    $region4: #{tpu_custom_call.1} parent=1 // loop_header_branch
      %23 = sbr.rel (%p21) target = $region8
    $region5: #{tpu_custom_call.1} parent=1 // loop_body
      %s25 = ssub.s32 %s20, 1
      %s26 = ssub.s32 %s20, 2
      %s27 = sadd.s32 %s20, 1
      %s28 = ssub.s32 %s20, %s27
      %p29 = scmp.eq.s32.totalorder %s28, 0
      %s31 = sadd.s32 %s30, 1
      %s32 = scalar_select %p29, %s30, %s31
      %p35 = pneg %p29
      %p36 = scmp.eq.s32.totalorder %s20, 1
      %p37 = por %p35, %p36
      %p38 = scmp.ne.s32.totalorder %s30, %s33
      %p39 = scmp.eq.s32.totalorder %s20, 0
      %p40 = por %p38, %p39
      %p41 = scmp.ne.s32.totalorder %s30, %s33
      %p42 = scmp.eq.s32.totalorder %s25, 1
      %p43 = por %p41, %p42
      %p44 = scmp.ne.s32.totalorder %s33, %s34
      %p45 = scmp.eq.s32.totalorder %s25, 0
      %p46 = por %p44, %p45
      %p47 = scmp.ne.s32.totalorder %s33, %s34
      %p48 = scmp.eq.s32.totalorder %s26, 1
      %p49 = por %p47, %p48
      %p51 = scmp.ne.s32.totalorder %s34, %s50
      %p52 = scmp.eq.s32.totalorder %s26, 0
      %p53 = por %p51, %p52
      %s54 = ssub.s32 %s20, %s27
      %p55 = scmp.eq.s32.totalorder %s54, 0
      %s57 = sadd.s32 %s56, 1
      %s58 = scalar_select %p55, %s56, %s57
      %p61 = pneg %p55
      %p62 = scmp.eq.s32.totalorder %s20, 1
      %p63 = por %p61, %p62
      %p64 = scmp.ne.s32.totalorder %s56, %s59
      %p65 = scmp.eq.s32.totalorder %s20, 0
      %p66 = por %p64, %p65
      %p67 = scmp.ne.s32.totalorder %s56, %s59
      %p68 = scmp.eq.s32.totalorder %s25, 1
      %p69 = por %p67, %p68
      %p70 = scmp.ne.s32.totalorder %s59, %s60
      %p71 = scmp.eq.s32.totalorder %s25, 0
      %p72 = por %p70, %p71
      %p73 = scmp.ne.s32.totalorder %s59, %s60
      %p74 = scmp.eq.s32.totalorder %s26, 1
      %p75 = por %p73, %p74
      %p77 = scmp.ne.s32.totalorder %s60, %s76
      %p78 = scmp.eq.s32.totalorder %s26, 0
      %p79 = por %p77, %p78
      %s80 = ssub.s32 %s20, %s27
      %p81 = scmp.eq.s32.totalorder %s80, 0
      %s83 = sadd.s32 %s82, 1
      %s84 = scalar_select %p81, %s82, %s83
      %p87 = pneg %p81
      %p88 = scmp.eq.s32.totalorder %s20, 1
      %p89 = por %p87, %p88
      %p90 = scmp.ne.s32.totalorder %s82, %s85
      %p91 = scmp.eq.s32.totalorder %s20, 0
      %p92 = por %p90, %p91
      %p93 = scmp.ne.s32.totalorder %s82, %s85
      %p94 = scmp.eq.s32.totalorder %s25, 1
      %p95 = por %p93, %p94
      %p96 = scmp.ne.s32.totalorder %s85, %s86
      %p97 = scmp.eq.s32.totalorder %s25, 0
      %p98 = por %p96, %p97
      %p99 = scmp.ne.s32.totalorder %s85, %s86
      %p100 = scmp.eq.s32.totalorder %s26, 1
      %p101 = por %p99, %p100
      %p103 = scmp.ne.s32.totalorder %s86, %s102
      %p104 = scmp.eq.s32.totalorder %s26, 0
      %p105 = por %p103, %p104
      %s107 = sadd.s32 %s106, 1
      %p110 = scmp.eq.s32.totalorder %s20, 1
      %p111 = scmp.ne.s32.totalorder %s106, %s108
      %p112 = scmp.eq.s32.totalorder %s20, 0
      %p113 = por %p111, %p112
      %p114 = scmp.ne.s32.totalorder %s106, %s108
      %p115 = scmp.eq.s32.totalorder %s25, 1
      %p116 = por %p114, %p115
      %p117 = scmp.ne.s32.totalorder %s108, %s109
      %p118 = scmp.eq.s32.totalorder %s25, 0
      %p119 = por %p117, %p118
      %p120 = scmp.ne.s32.totalorder %s108, %s109
      %p121 = scmp.eq.s32.totalorder %s26, 1
      %p122 = por %p120, %p121
      %p124 = scmp.ne.s32.totalorder %s109, %s123
      %p125 = scmp.eq.s32.totalorder %s26, 0
      %p126 = por %p124, %p125
      %s128 = sadd.s32 %s127, 1
      %p131 = scmp.eq.s32.totalorder %s20, 1
      %p132 = scmp.ne.s32.totalorder %s127, %s129
      %p133 = scmp.eq.s32.totalorder %s20, 0
      %p134 = por %p132, %p133
      %p135 = scmp.ne.s32.totalorder %s127, %s129
      %p136 = scmp.eq.s32.totalorder %s25, 1
      %p137 = por %p135, %p136
      %p138 = scmp.ne.s32.totalorder %s129, %s130
      %p139 = scmp.eq.s32.totalorder %s25, 0
      %p140 = por %p138, %p139
      %p141 = scmp.ne.s32.totalorder %s129, %s130
      %p142 = scmp.eq.s32.totalorder %s26, 1
      %p143 = por %p141, %p142
      %p145 = scmp.ne.s32.totalorder %s130, %s144
      %p146 = scmp.eq.s32.totalorder %s26, 0
      %p147 = por %p145, %p146
      %s149 = sadd.s32 %s148, 1
      %p152 = scmp.eq.s32.totalorder %s20, 1
      %p153 = scmp.ne.s32.totalorder %s148, %s150
      %p154 = scmp.eq.s32.totalorder %s20, 0
      %p155 = por %p153, %p154
      %p156 = scmp.ne.s32.totalorder %s148, %s150
      %p157 = scmp.eq.s32.totalorder %s25, 1
      %p158 = por %p156, %p157
      %p159 = scmp.ne.s32.totalorder %s150, %s151
      %p160 = scmp.eq.s32.totalorder %s25, 0
      %p161 = por %p159, %p160
      %p162 = scmp.ne.s32.totalorder %s150, %s151
      %p163 = scmp.eq.s32.totalorder %s26, 1
      %p164 = por %p162, %p163
      %p166 = scmp.ne.s32.totalorder %s151, %s165
      %p167 = scmp.eq.s32.totalorder %s26, 0
      %p168 = por %p166, %p167
      %s170 = sadd.s32 %s169, 1
      %p173 = scmp.eq.s32.totalorder %s20, 1
      %p174 = scmp.ne.s32.totalorder %s169, %s171
      %p175 = scmp.eq.s32.totalorder %s20, 0
      %p176 = por %p174, %p175
      %p177 = scmp.ne.s32.totalorder %s169, %s171
      %p178 = scmp.eq.s32.totalorder %s25, 1
      %p179 = por %p177, %p178
      %p180 = scmp.ne.s32.totalorder %s171, %s172
      %p181 = scmp.eq.s32.totalorder %s25, 0
      %p182 = por %p180, %p181
      %p183 = scmp.ne.s32.totalorder %s171, %s172
      %p184 = scmp.eq.s32.totalorder %s26, 1
      %p185 = por %p183, %p184
      %p187 = scmp.ne.s32.totalorder %s172, %s186
      %p188 = scmp.eq.s32.totalorder %s26, 0
      %p189 = por %p187, %p188
      %s191 = sadd.s32 %s190, 1
      %p194 = scmp.eq.s32.totalorder %s20, 1
      %p195 = scmp.ne.s32.totalorder %s190, %s192
      %p196 = scmp.eq.s32.totalorder %s20, 0
      %p197 = por %p195, %p196
      %p198 = scmp.ne.s32.totalorder %s190, %s192
      %p199 = scmp.eq.s32.totalorder %s25, 1
      %p200 = por %p198, %p199
      %p201 = scmp.ne.s32.totalorder %s192, %s193
      %p202 = scmp.eq.s32.totalorder %s25, 0
      %p203 = por %p201, %p202
      %p204 = scmp.ne.s32.totalorder %s192, %s193
      %p205 = scmp.eq.s32.totalorder %s26, 1
      %p206 = por %p204, %p205
      %p208 = scmp.ne.s32.totalorder %s193, %s207
      %p209 = scmp.eq.s32.totalorder %s26, 0
      %p210 = por %p208, %p209
      %s212 = sadd.s32 %s211, 1
      %p215 = scmp.eq.s32.totalorder %s20, 1
      %p216 = scmp.ne.s32.totalorder %s211, %s213
      %p217 = scmp.eq.s32.totalorder %s20, 0
      %p218 = por %p216, %p217
      %p219 = scmp.ne.s32.totalorder %s211, %s213
      %p220 = scmp.eq.s32.totalorder %s25, 1
      %p221 = por %p219, %p220
      %p222 = scmp.ne.s32.totalorder %s213, %s214
      %p223 = scmp.eq.s32.totalorder %s25, 0
      %p224 = por %p222, %p223
      %p225 = scmp.ne.s32.totalorder %s213, %s214
      %p226 = scmp.eq.s32.totalorder %s26, 1
      %p227 = por %p225, %p226
      %p229 = scmp.ne.s32.totalorder %s214, %s228
      %p230 = scmp.eq.s32.totalorder %s26, 0
      %p231 = por %p229, %p230
      %s233 = sadd.s32 %s232, 1
      %p236 = scmp.eq.s32.totalorder %s20, 1
      %p237 = scmp.ne.s32.totalorder %s232, %s234
      %p238 = scmp.eq.s32.totalorder %s20, 0
      %p239 = por %p237, %p238
      %p240 = scmp.ne.s32.totalorder %s232, %s234
      %p241 = scmp.eq.s32.totalorder %s25, 1
      %p242 = por %p240, %p241
      %p243 = scmp.ne.s32.totalorder %s234, %s235
      %p244 = scmp.eq.s32.totalorder %s25, 0
      %p245 = por %p243, %p244
      %p246 = scmp.ne.s32.totalorder %s234, %s235
      %p247 = scmp.eq.s32.totalorder %s26, 1
      %p248 = por %p246, %p247
      %p250 = scmp.ne.s32.totalorder %s235, %s249
      %p251 = scmp.eq.s32.totalorder %s26, 0
      %p252 = por %p250, %p251
      %s254 = sadd.s32 %s253, 1
      %p257 = scmp.eq.s32.totalorder %s20, 1
      %p258 = scmp.ne.s32.totalorder %s253, %s255
      %p259 = scmp.eq.s32.totalorder %s20, 0
      %p260 = por %p258, %p259
      %p261 = scmp.ne.s32.totalorder %s253, %s255
      %p262 = scmp.eq.s32.totalorder %s25, 1
      %p263 = por %p261, %p262
      %p264 = scmp.ne.s32.totalorder %s255, %s256
      %p265 = scmp.eq.s32.totalorder %s25, 0
      %p266 = por %p264, %p265
      %p267 = scmp.ne.s32.totalorder %s255, %s256
      %p268 = scmp.eq.s32.totalorder %s26, 1
      %p269 = por %p267, %p268
      %p271 = scmp.ne.s32.totalorder %s256, %s270
      %p272 = scmp.eq.s32.totalorder %s26, 0
      %p273 = por %p271, %p272
      %s274 = ssub.s32 %s20, %s27
      %p275 = scmp.eq.s32.totalorder %s274, 0
      %s277 = sadd.s32 %s276, 1
      %s278 = scalar_select %p275, %s276, %s277
      %p281 = pneg %p275
      %p282 = scmp.eq.s32.totalorder %s20, 1
      %p283 = por %p281, %p282
      %p284 = scmp.ne.s32.totalorder %s276, %s279
      %p285 = scmp.eq.s32.totalorder %s20, 0
      %p286 = por %p284, %p285
      %p287 = scmp.ne.s32.totalorder %s276, %s279
      %p288 = scmp.eq.s32.totalorder %s25, 1
      %p289 = por %p287, %p288
      %p290 = scmp.ne.s32.totalorder %s279, %s280
      %p291 = scmp.eq.s32.totalorder %s25, 0
      %p292 = por %p290, %p291
      %p293 = scmp.ne.s32.totalorder %s279, %s280
      %p294 = scmp.eq.s32.totalorder %s26, 1
      %p295 = por %p293, %p294
      %p297 = scmp.ne.s32.totalorder %s280, %s296
      %p298 = scmp.eq.s32.totalorder %s26, 0
      %p299 = por %p297, %p298
      %p300 = scmp.le.s32.totalorder 1, %s20
      %p301 = scmp.lt.s32.totalorder %s20, 3
      %p302 = pnand %p300, %p301
      %p303 = pneg %p302
      // Predicated region
      $region9: #{tpu_custom_call.1} parent=5 // pred_check
        _
      $region10: #{tpu_custom_call.1} parent=5 // pred_check_branch
        %305 = sbr.rel (%p302) target = $region12
      $region11: #{tpu_custom_call.1} parent=5 // pred_region
        %s306 = ssub.s32 %s20, 1
        // Predicated region
        $region13: #{tpu_custom_call.1} parent=11 // pred_check
          %p307 = pneg %p119
        $region14: #{tpu_custom_call.1} parent=11 // pred_check_branch
          %309 = sbr.rel (%p307) target = $region16
        $region15: #{tpu_custom_call.1} parent=11 // pred_region
          _
        $region16: #{tpu_custom_call.1} parent=11 // pred_fallthru
          _
        // Predicated region
        $region17: #{tpu_custom_call.1} parent=11 // pred_check
          %p310 = pneg %p140
        $region18: #{tpu_custom_call.1} parent=11 // pred_check_branch
          %312 = sbr.rel (%p310) target = $region20
        $region19: #{tpu_custom_call.1} parent=11 // pred_region
          _
        $region20: #{tpu_custom_call.1} parent=11 // pred_fallthru
          _
        // Predicated region
        $region21: #{tpu_custom_call.1} parent=11 // pred_check
          %p313 = pneg %p161
        $region22: #{tpu_custom_call.1} parent=11 // pred_check_branch
          %315 = sbr.rel (%p313) target = $region24
        $region23: #{tpu_custom_call.1} parent=11 // pred_region
          _
        $region24: #{tpu_custom_call.1} parent=11 // pred_fallthru
          _
        // Predicated region
        $region25: #{tpu_custom_call.1} parent=11 // pred_check
          %p316 = pneg %p182
        $region26: #{tpu_custom_call.1} parent=11 // pred_check_branch
          %318 = sbr.rel (%p316) target = $region28
        $region27: #{tpu_custom_call.1} parent=11 // pred_region
          _
        $region28: #{tpu_custom_call.1} parent=11 // pred_fallthru
          _
        // Predicated region
        $region29: #{tpu_custom_call.1} parent=11 // pred_check
          %p319 = pneg %p203
        $region30: #{tpu_custom_call.1} parent=11 // pred_check_branch
          %321 = sbr.rel (%p319) target = $region32
        $region31: #{tpu_custom_call.1} parent=11 // pred_region
          _
        $region32: #{tpu_custom_call.1} parent=11 // pred_fallthru
          _
        // Predicated region
        $region33: #{tpu_custom_call.1} parent=11 // pred_check
          %p322 = pneg %p224
        $region34: #{tpu_custom_call.1} parent=11 // pred_check_branch
          %324 = sbr.rel (%p322) target = $region36
        $region35: #{tpu_custom_call.1} parent=11 // pred_region
          _
        $region36: #{tpu_custom_call.1} parent=11 // pred_fallthru
          _
        // Predicated region
        $region37: #{tpu_custom_call.1} parent=11 // pred_check
          %p325 = pneg %p245
        $region38: #{tpu_custom_call.1} parent=11 // pred_check_branch
          %327 = sbr.rel (%p325) target = $region40
        $region39: #{tpu_custom_call.1} parent=11 // pred_region
          _
        $region40: #{tpu_custom_call.1} parent=11 // pred_fallthru
          _
        // Predicated region
        $region41: #{tpu_custom_call.1} parent=11 // pred_check
          %p328 = pneg %p266
        $region42: #{tpu_custom_call.1} parent=11 // pred_check_branch
          %330 = sbr.rel (%p328) target = $region44
        $region43: #{tpu_custom_call.1} parent=11 // pred_region
          _
        $region44: #{tpu_custom_call.1} parent=11 // pred_fallthru
          _
      $region12: #{tpu_custom_call.1} parent=5 // pred_fallthru
        _
      %p331 = scmp.lt.s32.totalorder %s20, 2
      // Predicated region
      $region45: #{tpu_custom_call.1} parent=5 // pred_check
        %p332 = pneg %p331
      $region46: #{tpu_custom_call.1} parent=5 // pred_check_branch
        %334 = sbr.rel (%p332) target = $region48
      $region47: #{tpu_custom_call.1} parent=5 // pred_region
        // Predicated region
        $region49: #{tpu_custom_call.1} parent=47 // pred_check
          %p335 = pneg %p40
        $region50: #{tpu_custom_call.1} parent=47 // pred_check_branch
          %337 = sbr.rel (%p335) target = $region52
        $region51: #{tpu_custom_call.1} parent=47 // pred_region
          %p338 = scmp.lt.s32.totalorder %s20, 1
          %s339 = scalar_select %p338, %s20, 1
          %s340 = smul.addr %s339, 4
          %s341 = scalar_lea.vmem %s0, %s340
        $region52: #{tpu_custom_call.1} parent=47 // pred_fallthru
          _
        // Predicated region
        $region53: #{tpu_custom_call.1} parent=47 // pred_check
          %p342 = pneg %p66
        $region54: #{tpu_custom_call.1} parent=47 // pred_check_branch
          %344 = sbr.rel (%p342) target = $region56
        $region55: #{tpu_custom_call.1} parent=47 // pred_region
          %p345 = scmp.lt.s32.totalorder %s20, 1
          %s346 = scalar_select %p345, %s20, 1
          %s347 = smul.addr %s346, 4
          %s348 = scalar_lea.vmem %s1, %s347
        $region56: #{tpu_custom_call.1} parent=47 // pred_fallthru
          _
        // Predicated region
        $region57: #{tpu_custom_call.1} parent=47 // pred_check
          %p349 = pneg %p92
        $region58: #{tpu_custom_call.1} parent=47 // pred_check_branch
          %351 = sbr.rel (%p349) target = $region60
        $region59: #{tpu_custom_call.1} parent=47 // pred_region
          %p352 = scmp.lt.s32.totalorder %s20, 1
          %s353 = scalar_select %p352, %s20, 1
          %s354 = smul.addr %s353, 4
          %s355 = scalar_lea.vmem %s2, %s354
        $region60: #{tpu_custom_call.1} parent=47 // pred_fallthru
          _
      $region48: #{tpu_custom_call.1} parent=5 // pred_fallthru
        _
      %p356 = scmp.le.s32.totalorder 1, %s20
      %p357 = scmp.lt.s32.totalorder %s20, 3
      %p358 = pnand %p356, %p357
      %p359 = pneg %p358
      // Predicated region
      $region61: #{tpu_custom_call.1} parent=5 // pred_check
        _
      $region62: #{tpu_custom_call.1} parent=5 // pred_check_branch
        %361 = sbr.rel (%p358) target = $region64
      $region63: #{tpu_custom_call.1} parent=5 // pred_region
        %s362 = ssub.s32 %s20, 1
        %p363 = scmp.lt.s32.totalorder %s25, 1
        %s364 = scalar_select %p363, %s25, 1
        %s365 = smul.addr %s364, 4
        %s366 = scalar_lea.vmem %s0, %s365
        %p367 = pneg %p46
        %p368 = pneg %p43
        %p369 = scmp.lt.s32.totalorder %s25, 1
        %s370 = scalar_select %p369, %s25, 1
        %s371 = smul.addr %s370, 4
        %s372 = scalar_lea.vmem %s1, %s371
        %p373 = pneg %p72
        %p374 = pneg %p69
        %p375 = scmp.lt.s32.totalorder %s25, 1
        %s376 = scalar_select %p375, %s25, 1
        %s377 = smul.addr %s376, 4
        %s378 = scalar_lea.vmem %s2, %s377
        %p379 = pneg %p98
        %p380 = pneg %p95
        %p381 = pneg %p119
        %p382 = pneg %p116
        %p383 = pneg %p140
        %p384 = pneg %p137
        %p385 = pneg %p161
        %p386 = pneg %p158
        %p387 = pneg %p182
        %p388 = pneg %p179
        %p389 = pneg %p203
        %p390 = pneg %p200
        %p391 = pneg %p224
        %p392 = pneg %p221
        %p393 = pneg %p245
        %p394 = pneg %p242
        %p395 = pneg %p266
        %p396 = pneg %p263
        %p397 = pneg %p292
        %p398 = pneg %p289
        %s399 = sand.u32 %s279, 1
        %s400 = scalar_lea.sflag [#allocation3], %s399
        %s401 = sand.u32 %s279, 1
        %s402 = smul.addr %s401, 8
        %s403 = scalar_lea.vmem [#allocation2], %s402
        %p404 = scmp.lt.s32.totalorder %s25, 1
        %s405 = scalar_select %p404, %s25, 1
        %s406 = smul.addr %s405, 4
        %s407 = scalar_lea.vmem %s0, %s406
        %p408 = scmp.lt.s32.totalorder %s25, 1
        %s409 = scalar_select %p408, %s25, 1
        %s410 = smul.addr %s409, 4
        %s411 = scalar_lea.vmem %s1, %s410
        %p412 = scmp.lt.s32.totalorder %s25, 1
        %s413 = scalar_select %p412, %s25, 1
        %s414 = smul.addr %s413, 4
        %s415 = scalar_lea.vmem %s2, %s414
        %v417 = vld [vmem:[%s407] sm:$0xf]
        %v418 = vld [vmem:[%s411] sm:$0xf]
        %v419 = vld [vmem:[%s415] sm:$0xf]
        %v420 = vld [vmem:[%s3] sm:$0xf]
        %v421 = vld [vmem:[%s3 + $0x4] sm:$0xf]
        %v422 = vld [vmem:[%s3 + $0x8] sm:$0xf]
        %v423 = vld [vmem:[%s3 + $0xc] sm:$0xf]
        %v424 = vld [vmem:[%s7] sm:$0x1]
        %v426 = vlaneseq
        %v427 = vshrl.u32 %v426, 7
        %v428 = vsub.s32 0, %v427
        %v429 = vrot.slane %v424, %v428
        %v435 = vunpack.c.l.b16 %v420
        %v436 = vunpack.c.l.b16 %v421
        %v437 = vunpack.c.l.b16 %v422
        %v438 = vunpack.c.l.b16 %v423
        %v439 = vpack.c.b16 %v436, %v435
        %v440 = vpack.c.b16 %v438, %v437
        %vm443 = vcmask 261120
        %v445 = vsel %vm443, %v417, 0
        %447 = vmatprep.subr.bf16.mxu0 0
        %448 = vmatpush1.bf16.msra.mxu0 %v439
        %449 = vmatprep.subr.bf16.mxu0 0
        %450 = vmatpush1.bf16.msra.mxu0 %v440
        %451 = vmatprep.subr.bf16.mxu0 0
        %452 = vmatpush1.bf16.msra.mxu0 0
        %453 = vmatprep.subr.bf16.mxu0 0
        %454 = vmatpush1.bf16.msra.mxu0 0
        %455 = vmatprep.subr.bf16.mxu0 0
        %456 = vmatpush1.bf16.msra.mxu0 0
        %457 = vmatprep.subr.bf16.mxu0 0
        %458 = vmatpush1.bf16.msra.mxu0 0
        %459 = vmatprep.subr.bf16.mxu0 0
        %460 = vmatpush1.bf16.msra.mxu0 0
        %461 = vmatprep.subr.bf16.mxu0 0
        %462 = vmatpush1.bf16.msra.mxu0 0
        %463 = vmatprep.subr.bf16.mxu0 0
        %464 = vmatpush1.bf16.msra.mxu0 0
        %465 = vmatprep.subr.bf16.mxu0 0
        %466 = vmatpush1.bf16.msra.mxu0 0
        %467 = vmatprep.subr.bf16.mxu0 0
        %468 = vmatpush1.bf16.msra.mxu0 0
        %469 = vmatprep.subr.bf16.mxu0 0
        %470 = vmatpush1.bf16.msra.mxu0 0
        %471 = vmatprep.subr.bf16.mxu0 0
        %472 = vmatpush1.bf16.msra.mxu0 0
        %473 = vmatprep.subr.bf16.mxu0 0
        %474 = vmatpush1.bf16.msra.mxu0 0
        %475 = vmatprep.subr.bf16.mxu0 0
        %476 = vmatpush1.bf16.msra.mxu0 0
        %477 = vmatprep.subr.bf16.mxu0 0
        %478 = vmatpush1.bf16.msra.mxu0 0
        %479 = vmatprep.mubr.bf16.mxu0 0
        %480 = vmatmul.mubr.bf16.gmra.mrb[0].mxu0 %v445
        %v481 = vpop.f32.mrb[0].mxu0
        %v482 = vadd.f32 %v429, %v481
        %v483 = vpop.f32.mrb[0].mxu0
        %v484 = vpop.f32.mrb[0].mxu0
        %v485 = vpop.f32.mrb[0].mxu0
        %486 = vdwg.mxu0
        %s487 = scalar_lea.vmem %s3, 16
        %v488 = vld [vmem:[%s487] sm:$0xf]
        %v489 = vld [vmem:[%s487 + $0x4] sm:$0xf]
        %v490 = vld [vmem:[%s487 + $0x8] sm:$0xf]
        %v491 = vld [vmem:[%s487 + $0xc] sm:$0xf]
        %s492 = scalar_lea.vmem %s7, 1
        %v493 = vld [vmem:[%s492] sm:$0x1]
        %v495 = vlaneseq
        %v496 = vshrl.u32 %v495, 7
        %v497 = vsub.s32 0, %v496
        %v498 = vrot.slane %v493, %v497
        %v504 = vunpack.c.l.b16 %v488
        %v505 = vunpack.c.l.b16 %v489
        %v506 = vunpack.c.l.b16 %v490
        %v507 = vunpack.c.l.b16 %v491
        %v508 = vpack.c.b16 %v505, %v504
        %v509 = vpack.c.b16 %v507, %v506
        %512 = vmatprep.subr.bf16.mxu0 0
        %513 = vmatpush1.bf16.msra.mxu0 %v508
        %514 = vmatprep.subr.bf16.mxu0 0
        %515 = vmatpush1.bf16.msra.mxu0 %v509
        %516 = vmatprep.subr.bf16.mxu0 0
        %517 = vmatpush1.bf16.msra.mxu0 0
        %518 = vmatprep.subr.bf16.mxu0 0
        %519 = vmatpush1.bf16.msra.mxu0 0
        %520 = vmatprep.subr.bf16.mxu0 0
        %521 = vmatpush1.bf16.msra.mxu0 0
        %522 = vmatprep.subr.bf16.mxu0 0
        %523 = vmatpush1.bf16.msra.mxu0 0
        %524 = vmatprep.subr.bf16.mxu0 0
        %525 = vmatpush1.bf16.msra.mxu0 0
        %526 = vmatprep.subr.bf16.mxu0 0
        %527 = vmatpush1.bf16.msra.mxu0 0
        %528 = vmatprep.subr.bf16.mxu0 0
        %529 = vmatpush1.bf16.msra.mxu0 0
        %530 = vmatprep.subr.bf16.mxu0 0
        %531 = vmatpush1.bf16.msra.mxu0 0
        %532 = vmatprep.subr.bf16.mxu0 0
        %533 = vmatpush1.bf16.msra.mxu0 0
        %534 = vmatprep.subr.bf16.mxu0 0
        %535 = vmatpush1.bf16.msra.mxu0 0
        %536 = vmatprep.subr.bf16.mxu0 0
        %537 = vmatpush1.bf16.msra.mxu0 0
        %538 = vmatprep.subr.bf16.mxu0 0
        %539 = vmatpush1.bf16.msra.mxu0 0
        %540 = vmatprep.subr.bf16.mxu0 0
        %541 = vmatpush1.bf16.msra.mxu0 0
        %542 = vmatprep.subr.bf16.mxu0 0
        %543 = vmatpush1.bf16.msra.mxu0 0
        %544 = vmatprep.mubr.bf16.mxu0 0
        %545 = vmatmul.mubr.bf16.gmra.mrb[0].mxu0 %v445
        %v546 = vpop.f32.mrb[0].mxu0
        %v547 = vadd.f32 %v498, %v546
        %v548 = vpop.f32.mrb[0].mxu0
        %v549 = vpop.f32.mrb[0].mxu0
        %v550 = vpop.f32.mrb[0].mxu0
        %551 = vdwg.mxu0
        %s552 = scalar_lea.vmem %s3, 32
        %v553 = vld [vmem:[%s552] sm:$0xf]
        %v554 = vld [vmem:[%s552 + $0x4] sm:$0xf]
        %v555 = vld [vmem:[%s552 + $0x8] sm:$0xf]
        %v556 = vld [vmem:[%s552 + $0xc] sm:$0xf]
        %s557 = scalar_lea.vmem %s7, 2
        %v558 = vld [vmem:[%s557] sm:$0x1]
        %v560 = vlaneseq
        %v561 = vshrl.u32 %v560, 7
        %v562 = vsub.s32 0, %v561
        %v563 = vrot.slane %v558, %v562
        %v569 = vunpack.c.l.b16 %v553
        %v570 = vunpack.c.l.b16 %v554
        %v571 = vunpack.c.l.b16 %v555
        %v572 = vunpack.c.l.b16 %v556
        %v573 = vpack.c.b16 %v570, %v569
        %v574 = vpack.c.b16 %v572, %v571
        %577 = vmatprep.subr.bf16.mxu0 0
        %578 = vmatpush1.bf16.msra.mxu0 %v573
        %579 = vmatprep.subr.bf16.mxu0 0
        %580 = vmatpush1.bf16.msra.mxu0 %v574
        %581 = vmatprep.subr.bf16.mxu0 0
        %582 = vmatpush1.bf16.msra.mxu0 0
        %583 = vmatprep.subr.bf16.mxu0 0
        %584 = vmatpush1.bf16.msra.mxu0 0
        %585 = vmatprep.subr.bf16.mxu0 0
        %586 = vmatpush1.bf16.msra.mxu0 0
        %587 = vmatprep.subr.bf16.mxu0 0
        %588 = vmatpush1.bf16.msra.mxu0 0
        %589 = vmatprep.subr.bf16.mxu0 0
        %590 = vmatpush1.bf16.msra.mxu0 0
        %591 = vmatprep.subr.bf16.mxu0 0
        %592 = vmatpush1.bf16.msra.mxu0 0
        %593 = vmatprep.subr.bf16.mxu0 0
        %594 = vmatpush1.bf16.msra.mxu0 0
        %595 = vmatprep.subr.bf16.mxu0 0
        %596 = vmatpush1.bf16.msra.mxu0 0
        %597 = vmatprep.subr.bf16.mxu0 0
        %598 = vmatpush1.bf16.msra.mxu0 0
        %599 = vmatprep.subr.bf16.mxu0 0
        %600 = vmatpush1.bf16.msra.mxu0 0
        %601 = vmatprep.subr.bf16.mxu0 0
        %602 = vmatpush1.bf16.msra.mxu0 0
        %603 = vmatprep.subr.bf16.mxu0 0
        %604 = vmatpush1.bf16.msra.mxu0 0
        %605 = vmatprep.subr.bf16.mxu0 0
        %606 = vmatpush1.bf16.msra.mxu0 0
        %607 = vmatprep.subr.bf16.mxu0 0
        %608 = vmatpush1.bf16.msra.mxu0 0
        %609 = vmatprep.mubr.bf16.mxu0 0
        %610 = vmatmul.mubr.bf16.gmra.mrb[0].mxu0 %v445
        %v611 = vpop.f32.mrb[0].mxu0
        %v612 = vadd.f32 %v563, %v611
        %v613 = vpop.f32.mrb[0].mxu0
        %v614 = vpop.f32.mrb[0].mxu0
        %v615 = vpop.f32.mrb[0].mxu0
        %616 = vdwg.mxu0
        %s617 = scalar_lea.vmem %s3, 48
        %v618 = vld [vmem:[%s617] sm:$0xf]
        %v619 = vld [vmem:[%s617 + $0x4] sm:$0xf]
        %v620 = vld [vmem:[%s617 + $0x8] sm:$0xf]
        %v621 = vld [vmem:[%s617 + $0xc] sm:$0xf]
        %s622 = scalar_lea.vmem %s7, 3
        %v623 = vld [vmem:[%s622] sm:$0x1]
        %v625 = vlaneseq
        %v626 = vshrl.u32 %v625, 7
        %v627 = vsub.s32 0, %v626
        %v628 = vrot.slane %v623, %v627
        %v634 = vunpack.c.l.b16 %v618
        %v635 = vunpack.c.l.b16 %v619
        %v636 = vunpack.c.l.b16 %v620
        %v637 = vunpack.c.l.b16 %v621
        %v638 = vpack.c.b16 %v635, %v634
        %v639 = vpack.c.b16 %v637, %v636
        %642 = vmatprep.subr.bf16.mxu0 0
        %643 = vmatpush1.bf16.msra.mxu0 %v638
        %644 = vmatprep.subr.bf16.mxu0 0
        %645 = vmatpush1.bf16.msra.mxu0 %v639
        %646 = vmatprep.subr.bf16.mxu0 0
        %647 = vmatpush1.bf16.msra.mxu0 0
        %648 = vmatprep.subr.bf16.mxu0 0
        %649 = vmatpush1.bf16.msra.mxu0 0
        %650 = vmatprep.subr.bf16.mxu0 0
        %651 = vmatpush1.bf16.msra.mxu0 0
        %652 = vmatprep.subr.bf16.mxu0 0
        %653 = vmatpush1.bf16.msra.mxu0 0
        %654 = vmatprep.subr.bf16.mxu0 0
        %655 = vmatpush1.bf16.msra.mxu0 0
        %656 = vmatprep.subr.bf16.mxu0 0
        %657 = vmatpush1.bf16.msra.mxu0 0
        %658 = vmatprep.subr.bf16.mxu0 0
        %659 = vmatpush1.bf16.msra.mxu0 0
        %660 = vmatprep.subr.bf16.mxu0 0
        %661 = vmatpush1.bf16.msra.mxu0 0
        %662 = vmatprep.subr.bf16.mxu0 0
        %663 = vmatpush1.bf16.msra.mxu0 0
        %664 = vmatprep.subr.bf16.mxu0 0
        %665 = vmatpush1.bf16.msra.mxu0 0
        %666 = vmatprep.subr.bf16.mxu0 0
        %667 = vmatpush1.bf16.msra.mxu0 0
        %668 = vmatprep.subr.bf16.mxu0 0
        %669 = vmatpush1.bf16.msra.mxu0 0
        %670 = vmatprep.subr.bf16.mxu0 0
        %671 = vmatpush1.bf16.msra.mxu0 0
        %672 = vmatprep.subr.bf16.mxu0 0
        %673 = vmatpush1.bf16.msra.mxu0 0
        %674 = vmatprep.mubr.bf16.mxu0 0
        %675 = vmatmul.mubr.bf16.gmra.mrb[0].mxu0 %v445
        %v676 = vpop.f32.mrb[0].mxu0
        %v677 = vadd.f32 %v628, %v676
        %v678 = vpop.f32.mrb[0].mxu0
        %v679 = vpop.f32.mrb[0].mxu0
        %v680 = vpop.f32.mrb[0].mxu0
        %681 = vdwg.mxu0
        %v682 = vmul.f32 %v482, 0.35355338
        %v683 = vmul.f32 %v547, 0.35355338
        %v684 = vmul.f32 %v612, 0.35355338
        %v685 = vmul.f32 %v677, 0.35355338
        %v686 = vpack.c.bf16 %v682, %v682
        %v687 = vpack.c.bf16 %v683, %v683
        %v688 = vpack.c.bf16 %v684, %v684
        %v689 = vpack.c.bf16 %v685, %v685
        %v690 = vld [vmem:[%s4] sm:$0xf]
        %v691 = vld [vmem:[%s4 + $0x4] sm:$0xf]
        %v692 = vld [vmem:[%s4 + $0x8] sm:$0xf]
        %v693 = vld [vmem:[%s4 + $0xc] sm:$0xf]
        %v694 = vld [vmem:[%s8] sm:$0x1]
        %v696 = vlaneseq
        %v697 = vshrl.u32 %v696, 7
        %v698 = vsub.s32 0, %v697
        %v699 = vrot.slane %v694, %v698
        %v705 = vunpack.c.l.b16 %v690
        %v706 = vunpack.c.l.b16 %v691
        %v707 = vunpack.c.l.b16 %v692
        %v708 = vunpack.c.l.b16 %v693
        %v709 = vpack.c.b16 %v706, %v705
        %v710 = vpack.c.b16 %v708, %v707
        %v714 = vsel %vm443, %v418, 0
        %716 = vmatprep.subr.bf16.mxu0 0
        %717 = vmatpush1.bf16.msra.mxu0 %v709
        %718 = vmatprep.subr.bf16.mxu0 0
        %719 = vmatpush1.bf16.msra.mxu0 %v710
        %720 = vmatprep.subr.bf16.mxu0 0
        %721 = vmatpush1.bf16.msra.mxu0 0
        %722 = vmatprep.subr.bf16.mxu0 0
        %723 = vmatpush1.bf16.msra.mxu0 0
        %724 = vmatprep.subr.bf16.mxu0 0
        %725 = vmatpush1.bf16.msra.mxu0 0
        %726 = vmatprep.subr.bf16.mxu0 0
        %727 = vmatpush1.bf16.msra.mxu0 0
        %728 = vmatprep.subr.bf16.mxu0 0
        %729 = vmatpush1.bf16.msra.mxu0 0
        %730 = vmatprep.subr.bf16.mxu0 0
        %731 = vmatpush1.bf16.msra.mxu0 0
        %732 = vmatprep.subr.bf16.mxu0 0
        %733 = vmatpush1.bf16.msra.mxu0 0
        %734 = vmatprep.subr.bf16.mxu0 0
        %735 = vmatpush1.bf16.msra.mxu0 0
        %736 = vmatprep.subr.bf16.mxu0 0
        %737 = vmatpush1.bf16.msra.mxu0 0
        %738 = vmatprep.subr.bf16.mxu0 0
        %739 = vmatpush1.bf16.msra.mxu0 0
        %740 = vmatprep.subr.bf16.mxu0 0
        %741 = vmatpush1.bf16.msra.mxu0 0
        %742 = vmatprep.subr.bf16.mxu0 0
        %743 = vmatpush1.bf16.msra.mxu0 0
        %744 = vmatprep.subr.bf16.mxu0 0
        %745 = vmatpush1.bf16.msra.mxu0 0
        %746 = vmatprep.subr.bf16.mxu0 0
        %747 = vmatpush1.bf16.msra.mxu0 0
        %748 = vmatprep.mubr.bf16.mxu0 0
        %749 = vmatmul.mubr.bf16.gmra.mrb[0].mxu0 %v714
        %v750 = vpop.f32.mrb[0].mxu0
        %v751 = vadd.f32 %v699, %v750
        %v752 = vpop.f32.mrb[0].mxu0
        %v753 = vpop.f32.mrb[0].mxu0
        %v754 = vpop.f32.mrb[0].mxu0
        %755 = vdwg.mxu0
        %s756 = scalar_lea.vmem %s4, 16
        %v757 = vld [vmem:[%s756] sm:$0xf]
        %v758 = vld [vmem:[%s756 + $0x4] sm:$0xf]
        %v759 = vld [vmem:[%s756 + $0x8] sm:$0xf]
        %v760 = vld [vmem:[%s756 + $0xc] sm:$0xf]
        %s761 = scalar_lea.vmem %s8, 1
        %v762 = vld [vmem:[%s761] sm:$0x1]
        %v764 = vlaneseq
        %v765 = vshrl.u32 %v764, 7
        %v766 = vsub.s32 0, %v765
        %v767 = vrot.slane %v762, %v766
        %v773 = vunpack.c.l.b16 %v757
        %v774 = vunpack.c.l.b16 %v758
        %v775 = vunpack.c.l.b16 %v759
        %v776 = vunpack.c.l.b16 %v760
        %v777 = vpack.c.b16 %v774, %v773
        %v778 = vpack.c.b16 %v776, %v775
        %781 = vmatprep.subr.bf16.mxu0 0
        %782 = vmatpush1.bf16.msra.mxu0 %v777
        %783 = vmatprep.subr.bf16.mxu0 0
        %784 = vmatpush1.bf16.msra.mxu0 %v778
        %785 = vmatprep.subr.bf16.mxu0 0
        %786 = vmatpush1.bf16.msra.mxu0 0
        %787 = vmatprep.subr.bf16.mxu0 0
        %788 = vmatpush1.bf16.msra.mxu0 0
        %789 = vmatprep.subr.bf16.mxu0 0
        %790 = vmatpush1.bf16.msra.mxu0 0
        %791 = vmatprep.subr.bf16.mxu0 0
        %792 = vmatpush1.bf16.msra.mxu0 0
        %793 = vmatprep.subr.bf16.mxu0 0
        %794 = vmatpush1.bf16.msra.mxu0 0
        %795 = vmatprep.subr.bf16.mxu0 0
        %796 = vmatpush1.bf16.msra.mxu0 0
        %797 = vmatprep.subr.bf16.mxu0 0
        %798 = vmatpush1.bf16.msra.mxu0 0
        %799 = vmatprep.subr.bf16.mxu0 0
        %800 = vmatpush1.bf16.msra.mxu0 0
        %801 = vmatprep.subr.bf16.mxu0 0
        %802 = vmatpush1.bf16.msra.mxu0 0
        %803 = vmatprep.subr.bf16.mxu0 0
        %804 = vmatpush1.bf16.msra.mxu0 0
        %805 = vmatprep.subr.bf16.mxu0 0
        %806 = vmatpush1.bf16.msra.mxu0 0
        %807 = vmatprep.subr.bf16.mxu0 0
        %808 = vmatpush1.bf16.msra.mxu0 0
        %809 = vmatprep.subr.bf16.mxu0 0
        %810 = vmatpush1.bf16.msra.mxu0 0
        %811 = vmatprep.subr.bf16.mxu0 0
        %812 = vmatpush1.bf16.msra.mxu0 0
        %813 = vmatprep.mubr.bf16.mxu0 0
        %814 = vmatmul.mubr.bf16.gmra.mrb[0].mxu0 %v714
        %v815 = vpop.f32.mrb[0].mxu0
        %v816 = vadd.f32 %v767, %v815
        %v817 = vpop.f32.mrb[0].mxu0
        %v818 = vpop.f32.mrb[0].mxu0
        %v819 = vpop.f32.mrb[0].mxu0
        %820 = vdwg.mxu0
        %s821 = scalar_lea.vmem %s4, 32
        %v822 = vld [vmem:[%s821] sm:$0xf]
        %v823 = vld [vmem:[%s821 + $0x4] sm:$0xf]
        %v824 = vld [vmem:[%s821 + $0x8] sm:$0xf]
        %v825 = vld [vmem:[%s821 + $0xc] sm:$0xf]
        %s826 = scalar_lea.vmem %s8, 2
        %v827 = vld [vmem:[%s826] sm:$0x1]
        %v829 = vlaneseq
        %v830 = vshrl.u32 %v829, 7
        %v831 = vsub.s32 0, %v830
        %v832 = vrot.slane %v827, %v831
        %v838 = vunpack.c.l.b16 %v822
        %v839 = vunpack.c.l.b16 %v823
        %v840 = vunpack.c.l.b16 %v824
        %v841 = vunpack.c.l.b16 %v825
        %v842 = vpack.c.b16 %v839, %v838
        %v843 = vpack.c.b16 %v841, %v840
        %846 = vmatprep.subr.bf16.mxu0 0
        %847 = vmatpush1.bf16.msra.mxu0 %v842
        %848 = vmatprep.subr.bf16.mxu0 0
        %849 = vmatpush1.bf16.msra.mxu0 %v843
        %850 = vmatprep.subr.bf16.mxu0 0
        %851 = vmatpush1.bf16.msra.mxu0 0
        %852 = vmatprep.subr.bf16.mxu0 0
        %853 = vmatpush1.bf16.msra.mxu0 0
        %854 = vmatprep.subr.bf16.mxu0 0
        %855 = vmatpush1.bf16.msra.mxu0 0
        %856 = vmatprep.subr.bf16.mxu0 0
        %857 = vmatpush1.bf16.msra.mxu0 0
        %858 = vmatprep.subr.bf16.mxu0 0
        %859 = vmatpush1.bf16.msra.mxu0 0
        %860 = vmatprep.subr.bf16.mxu0 0
        %861 = vmatpush1.bf16.msra.mxu0 0
        %862 = vmatprep.subr.bf16.mxu0 0
        %863 = vmatpush1.bf16.msra.mxu0 0
        %864 = vmatprep.subr.bf16.mxu0 0
        %865 = vmatpush1.bf16.msra.mxu0 0
        %866 = vmatprep.subr.bf16.mxu0 0
        %867 = vmatpush1.bf16.msra.mxu0 0
        %868 = vmatprep.subr.bf16.mxu0 0
        %869 = vmatpush1.bf16.msra.mxu0 0
        %870 = vmatprep.subr.bf16.mxu0 0
        %871 = vmatpush1.bf16.msra.mxu0 0
        %872 = vmatprep.subr.bf16.mxu0 0
        %873 = vmatpush1.bf16.msra.mxu0 0
        %874 = vmatprep.subr.bf16.mxu0 0
        %875 = vmatpush1.bf16.msra.mxu0 0
        %876 = vmatprep.subr.bf16.mxu0 0
        %877 = vmatpush1.bf16.msra.mxu0 0
        %878 = vmatprep.mubr.bf16.mxu0 0
        %879 = vmatmul.mubr.bf16.gmra.mrb[0].mxu0 %v714
        %v880 = vpop.f32.mrb[0].mxu0
        %v881 = vadd.f32 %v832, %v880
        %v882 = vpop.f32.mrb[0].mxu0
        %v883 = vpop.f32.mrb[0].mxu0
        %v884 = vpop.f32.mrb[0].mxu0
        %885 = vdwg.mxu0
        %s886 = scalar_lea.vmem %s4, 48
        %v887 = vld [vmem:[%s886] sm:$0xf]
        %v888 = vld [vmem:[%s886 + $0x4] sm:$0xf]
        %v889 = vld [vmem:[%s886 + $0x8] sm:$0xf]
        %v890 = vld [vmem:[%s886 + $0xc] sm:$0xf]
        %s891 = scalar_lea.vmem %s8, 3
        %v892 = vld [vmem:[%s891] sm:$0x1]
        %v894 = vlaneseq
        %v895 = vshrl.u32 %v894, 7
        %v896 = vsub.s32 0, %v895
        %v897 = vrot.slane %v892, %v896
        %v903 = vunpack.c.l.b16 %v887
        %v904 = vunpack.c.l.b16 %v888
        %v905 = vunpack.c.l.b16 %v889
        %v906 = vunpack.c.l.b16 %v890
        %v907 = vpack.c.b16 %v904, %v903
        %v908 = vpack.c.b16 %v906, %v905
        %911 = vmatprep.subr.bf16.mxu0 0
        %912 = vmatpush1.bf16.msra.mxu0 %v907
        %913 = vmatprep.subr.bf16.mxu0 0
        %914 = vmatpush1.bf16.msra.mxu0 %v908
        %915 = vmatprep.subr.bf16.mxu0 0
        %916 = vmatpush1.bf16.msra.mxu0 0
        %917 = vmatprep.subr.bf16.mxu0 0
        %918 = vmatpush1.bf16.msra.mxu0 0
        %919 = vmatprep.subr.bf16.mxu0 0
        %920 = vmatpush1.bf16.msra.mxu0 0
        %921 = vmatprep.subr.bf16.mxu0 0
        %922 = vmatpush1.bf16.msra.mxu0 0
        %923 = vmatprep.subr.bf16.mxu0 0
        %924 = vmatpush1.bf16.msra.mxu0 0
        %925 = vmatprep.subr.bf16.mxu0 0
        %926 = vmatpush1.bf16.msra.mxu0 0
        %927 = vmatprep.subr.bf16.mxu0 0
        %928 = vmatpush1.bf16.msra.mxu0 0
        %929 = vmatprep.subr.bf16.mxu0 0
        %930 = vmatpush1.bf16.msra.mxu0 0
        %931 = vmatprep.subr.bf16.mxu0 0
        %932 = vmatpush1.bf16.msra.mxu0 0
        %933 = vmatprep.subr.bf16.mxu0 0
        %934 = vmatpush1.bf16.msra.mxu0 0
        %935 = vmatprep.subr.bf16.mxu0 0
        %936 = vmatpush1.bf16.msra.mxu0 0
        %937 = vmatprep.subr.bf16.mxu0 0
        %938 = vmatpush1.bf16.msra.mxu0 0
        %939 = vmatprep.subr.bf16.mxu0 0
        %940 = vmatpush1.bf16.msra.mxu0 0
        %941 = vmatprep.subr.bf16.mxu0 0
        %942 = vmatpush1.bf16.msra.mxu0 0
        %943 = vmatprep.mubr.bf16.mxu0 0
        %944 = vmatmul.mubr.bf16.gmra.mrb[0].mxu0 %v714
        %v945 = vpop.f32.mrb[0].mxu0
        %v946 = vadd.f32 %v897, %v945
        %v947 = vpop.f32.mrb[0].mxu0
        %v948 = vpop.f32.mrb[0].mxu0
        %v949 = vpop.f32.mrb[0].mxu0
        %950 = vdwg.mxu0
        %v951 = vpack.c.bf16 %v751, %v751
        %v952 = vpack.c.bf16 %v816, %v816
        %v953 = vpack.c.bf16 %v881, %v881
        %v954 = vpack.c.bf16 %v946, %v946
        %v955 = vld [vmem:[%s5] sm:$0xf]
        %v956 = vld [vmem:[%s5 + $0x4] sm:$0xf]
        %v957 = vld [vmem:[%s5 + $0x8] sm:$0xf]
        %v958 = vld [vmem:[%s5 + $0xc] sm:$0xf]
        %v959 = vld [vmem:[%s9] sm:$0x1]
        %v961 = vlaneseq
        %v962 = vshrl.u32 %v961, 7
        %v963 = vsub.s32 0, %v962
        %v964 = vrot.slane %v959, %v963
        %v970 = vunpack.c.l.b16 %v955
        %v971 = vunpack.c.l.b16 %v956
        %v972 = vunpack.c.l.b16 %v957
        %v973 = vunpack.c.l.b16 %v958
        %v974 = vpack.c.b16 %v971, %v970
        %v975 = vpack.c.b16 %v973, %v972
        %v979 = vsel %vm443, %v419, 0
        %981 = vmatprep.subr.bf16.mxu0 0
        %982 = vmatpush1.bf16.msra.mxu0 %v974
        %983 = vmatprep.subr.bf16.mxu0 0
        %984 = vmatpush1.bf16.msra.mxu0 %v975
        %985 = vmatprep.subr.bf16.mxu0 0
        %986 = vmatpush1.bf16.msra.mxu0 0
        %987 = vmatprep.subr.bf16.mxu0 0
        %988 = vmatpush1.bf16.msra.mxu0 0
        %989 = vmatprep.subr.bf16.mxu0 0
        %990 = vmatpush1.bf16.msra.mxu0 0
        %991 = vmatprep.subr.bf16.mxu0 0
        %992 = vmatpush1.bf16.msra.mxu0 0
        %993 = vmatprep.subr.bf16.mxu0 0
        %994 = vmatpush1.bf16.msra.mxu0 0
        %995 = vmatprep.subr.bf16.mxu0 0
        %996 = vmatpush1.bf16.msra.mxu0 0
        %997 = vmatprep.subr.bf16.mxu0 0
        %998 = vmatpush1.bf16.msra.mxu0 0
        %999 = vmatprep.subr.bf16.mxu0 0
        %1000 = vmatpush1.bf16.msra.mxu0 0
        %1001 = vmatprep.subr.bf16.mxu0 0
        %1002 = vmatpush1.bf16.msra.mxu0 0
        %1003 = vmatprep.subr.bf16.mxu0 0
        %1004 = vmatpush1.bf16.msra.mxu0 0
        %1005 = vmatprep.subr.bf16.mxu0 0
        %1006 = vmatpush1.bf16.msra.mxu0 0
        %1007 = vmatprep.subr.bf16.mxu0 0
        %1008 = vmatpush1.bf16.msra.mxu0 0
        %1009 = vmatprep.subr.bf16.mxu0 0
        %1010 = vmatpush1.bf16.msra.mxu0 0
        %1011 = vmatprep.subr.bf16.mxu0 0
        %1012 = vmatpush1.bf16.msra.mxu0 0
        %1013 = vmatprep.mubr.bf16.mxu0 0
        %1014 = vmatmul.mubr.bf16.gmra.mrb[0].mxu0 %v979
        %v1015 = vpop.f32.mrb[0].mxu0
        %v1016 = vadd.f32 %v964, %v1015
        %v1017 = vpop.f32.mrb[0].mxu0
        %v1018 = vpop.f32.mrb[0].mxu0
        %v1019 = vpop.f32.mrb[0].mxu0
        %1020 = vdwg.mxu0
        %s1021 = scalar_lea.vmem %s5, 16
        %v1022 = vld [vmem:[%s1021] sm:$0xf]
        %v1023 = vld [vmem:[%s1021 + $0x4] sm:$0xf]
        %v1024 = vld [vmem:[%s1021 + $0x8] sm:$0xf]
        %v1025 = vld [vmem:[%s1021 + $0xc] sm:$0xf]
        %s1026 = scalar_lea.vmem %s9, 1
        %v1027 = vld [vmem:[%s1026] sm:$0x1]
        %v1029 = vlaneseq
        %v1030 = vshrl.u32 %v1029, 7
        %v1031 = vsub.s32 0, %v1030
        %v1032 = vrot.slane %v1027, %v1031
        %v1038 = vunpack.c.l.b16 %v1022
        %v1039 = vunpack.c.l.b16 %v1023
        %v1040 = vunpack.c.l.b16 %v1024
        %v1041 = vunpack.c.l.b16 %v1025
        %v1042 = vpack.c.b16 %v1039, %v1038
        %v1043 = vpack.c.b16 %v1041, %v1040
        %1046 = vmatprep.subr.bf16.mxu0 0
        %1047 = vmatpush1.bf16.msra.mxu0 %v1042
        %1048 = vmatprep.subr.bf16.mxu0 0
        %1049 = vmatpush1.bf16.msra.mxu0 %v1043
        %1050 = vmatprep.subr.bf16.mxu0 0
        %1051 = vmatpush1.bf16.msra.mxu0 0
        %1052 = vmatprep.subr.bf16.mxu0 0
        %1053 = vmatpush1.bf16.msra.mxu0 0
        %1054 = vmatprep.subr.bf16.mxu0 0
        %1055 = vmatpush1.bf16.msra.mxu0 0
        %1056 = vmatprep.subr.bf16.mxu0 0
        %1057 = vmatpush1.bf16.msra.mxu0 0
        %1058 = vmatprep.subr.bf16.mxu0 0
        %1059 = vmatpush1.bf16.msra.mxu0 0
        %1060 = vmatprep.subr.bf16.mxu0 0
        %1061 = vmatpush1.bf16.msra.mxu0 0
        %1062 = vmatprep.subr.bf16.mxu0 0
        %1063 = vmatpush1.bf16.msra.mxu0 0
        %1064 = vmatprep.subr.bf16.mxu0 0
        %1065 = vmatpush1.bf16.msra.mxu0 0
        %1066 = vmatprep.subr.bf16.mxu0 0
        %1067 = vmatpush1.bf16.msra.mxu0 0
        %1068 = vmatprep.subr.bf16.mxu0 0
        %1069 = vmatpush1.bf16.msra.mxu0 0
        %1070 = vmatprep.subr.bf16.mxu0 0
        %1071 = vmatpush1.bf16.msra.mxu0 0
        %1072 = vmatprep.subr.bf16.mxu0 0
        %1073 = vmatpush1.bf16.msra.mxu0 0
        %1074 = vmatprep.subr.bf16.mxu0 0
        %1075 = vmatpush1.bf16.msra.mxu0 0
        %1076 = vmatprep.subr.bf16.mxu0 0
        %1077 = vmatpush1.bf16.msra.mxu0 0
        %1078 = vmatprep.mubr.bf16.mxu0 0
        %1079 = vmatmul.mubr.bf16.gmra.mrb[0].mxu0 %v979
        %v1080 = vpop.f32.mrb[0].mxu0
        %v1081 = vadd.f32 %v1032, %v1080
        %v1082 = vpop.f32.mrb[0].mxu0
        %v1083 = vpop.f32.mrb[0].mxu0
        %v1084 = vpop.f32.mrb[0].mxu0
        %1085 = vdwg.mxu0
        %s1086 = scalar_lea.vmem %s5, 32
        %v1087 = vld [vmem:[%s1086] sm:$0xf]
        %v1088 = vld [vmem:[%s1086 + $0x4] sm:$0xf]
        %v1089 = vld [vmem:[%s1086 + $0x8] sm:$0xf]
        %v1090 = vld [vmem:[%s1086 + $0xc] sm:$0xf]
        %s1091 = scalar_lea.vmem %s9, 2
        %v1092 = vld [vmem:[%s1091] sm:$0x1]
        %v1094 = vlaneseq
        %v1095 = vshrl.u32 %v1094, 7
        %v1096 = vsub.s32 0, %v1095
        %v1097 = vrot.slane %v1092, %v1096
        %v1103 = vunpack.c.l.b16 %v1087
        %v1104 = vunpack.c.l.b16 %v1088
        %v1105 = vunpack.c.l.b16 %v1089
        %v1106 = vunpack.c.l.b16 %v1090
        %v1107 = vpack.c.b16 %v1104, %v1103
        %v1108 = vpack.c.b16 %v1106, %v1105
        %1111 = vmatprep.subr.bf16.mxu0 0
        %1112 = vmatpush1.bf16.msra.mxu0 %v1107
        %1113 = vmatprep.subr.bf16.mxu0 0
        %1114 = vmatpush1.bf16.msra.mxu0 %v1108
        %1115 = vmatprep.subr.bf16.mxu0 0
        %1116 = vmatpush1.bf16.msra.mxu0 0
        %1117 = vmatprep.subr.bf16.mxu0 0
        %1118 = vmatpush1.bf16.msra.mxu0 0
        %1119 = vmatprep.subr.bf16.mxu0 0
        %1120 = vmatpush1.bf16.msra.mxu0 0
        %1121 = vmatprep.subr.bf16.mxu0 0
        %1122 = vmatpush1.bf16.msra.mxu0 0
        %1123 = vmatprep.subr.bf16.mxu0 0
        %1124 = vmatpush1.bf16.msra.mxu0 0
        %1125 = vmatprep.subr.bf16.mxu0 0
        %1126 = vmatpush1.bf16.msra.mxu0 0
        %1127 = vmatprep.subr.bf16.mxu0 0
        %1128 = vmatpush1.bf16.msra.mxu0 0
        %1129 = vmatprep.subr.bf16.mxu0 0
        %1130 = vmatpush1.bf16.msra.mxu0 0
        %1131 = vmatprep.subr.bf16.mxu0 0
        %1132 = vmatpush1.bf16.msra.mxu0 0
        %1133 = vmatprep.subr.bf16.mxu0 0
        %1134 = vmatpush1.bf16.msra.mxu0 0
        %1135 = vmatprep.subr.bf16.mxu0 0
        %1136 = vmatpush1.bf16.msra.mxu0 0
        %1137 = vmatprep.subr.bf16.mxu0 0
        %1138 = vmatpush1.bf16.msra.mxu0 0
        %1139 = vmatprep.subr.bf16.mxu0 0
        %1140 = vmatpush1.bf16.msra.mxu0 0
        %1141 = vmatprep.subr.bf16.mxu0 0
        %1142 = vmatpush1.bf16.msra.mxu0 0
        %1143 = vmatprep.mubr.bf16.mxu0 0
        %1144 = vmatmul.mubr.bf16.gmra.mrb[0].mxu0 %v979
        %v1145 = vpop.f32.mrb[0].mxu0
        %v1146 = vadd.f32 %v1097, %v1145
        %v1147 = vpop.f32.mrb[0].mxu0
        %v1148 = vpop.f32.mrb[0].mxu0
        %v1149 = vpop.f32.mrb[0].mxu0
        %1150 = vdwg.mxu0
        %s1151 = scalar_lea.vmem %s5, 48
        %v1152 = vld [vmem:[%s1151] sm:$0xf]
        %v1153 = vld [vmem:[%s1151 + $0x4] sm:$0xf]
        %v1154 = vld [vmem:[%s1151 + $0x8] sm:$0xf]
        %v1155 = vld [vmem:[%s1151 + $0xc] sm:$0xf]
        %s1156 = scalar_lea.vmem %s9, 3
        %v1157 = vld [vmem:[%s1156] sm:$0x1]
        %v1159 = vlaneseq
        %v1160 = vshrl.u32 %v1159, 7
        %v1161 = vsub.s32 0, %v1160
        %v1162 = vrot.slane %v1157, %v1161
        %v1168 = vunpack.c.l.b16 %v1152
        %v1169 = vunpack.c.l.b16 %v1153
        %v1170 = vunpack.c.l.b16 %v1154
        %v1171 = vunpack.c.l.b16 %v1155
        %v1172 = vpack.c.b16 %v1169, %v1168
        %v1173 = vpack.c.b16 %v1171, %v1170
        %1176 = vmatprep.subr.bf16.mxu0 0
        %1177 = vmatpush1.bf16.msra.mxu0 %v1172
        %1178 = vmatprep.subr.bf16.mxu0 0
        %1179 = vmatpush1.bf16.msra.mxu0 %v1173
        %1180 = vmatprep.subr.bf16.mxu0 0
        %1181 = vmatpush1.bf16.msra.mxu0 0
        %1182 = vmatprep.subr.bf16.mxu0 0
        %1183 = vmatpush1.bf16.msra.mxu0 0
        %1184 = vmatprep.subr.bf16.mxu0 0
        %1185 = vmatpush1.bf16.msra.mxu0 0
        %1186 = vmatprep.subr.bf16.mxu0 0
        %1187 = vmatpush1.bf16.msra.mxu0 0
        %1188 = vmatprep.subr.bf16.mxu0 0
        %1189 = vmatpush1.bf16.msra.mxu0 0
        %1190 = vmatprep.subr.bf16.mxu0 0
        %1191 = vmatpush1.bf16.msra.mxu0 0
        %1192 = vmatprep.subr.bf16.mxu0 0
        %1193 = vmatpush1.bf16.msra.mxu0 0
        %1194 = vmatprep.subr.bf16.mxu0 0
        %1195 = vmatpush1.bf16.msra.mxu0 0
        %1196 = vmatprep.subr.bf16.mxu0 0
        %1197 = vmatpush1.bf16.msra.mxu0 0
        %1198 = vmatprep.subr.bf16.mxu0 0
        %1199 = vmatpush1.bf16.msra.mxu0 0
        %1200 = vmatprep.subr.bf16.mxu0 0
        %1201 = vmatpush1.bf16.msra.mxu0 0
        %1202 = vmatprep.subr.bf16.mxu0 0
        %1203 = vmatpush1.bf16.msra.mxu0 0
        %1204 = vmatprep.subr.bf16.mxu0 0
        %1205 = vmatpush1.bf16.msra.mxu0 0
        %1206 = vmatprep.subr.bf16.mxu0 0
        %1207 = vmatpush1.bf16.msra.mxu0 0
        %1208 = vmatprep.mubr.bf16.mxu0 0
        %1209 = vmatmul.mubr.bf16.gmra.mrb[0].mxu0 %v979
        %v1210 = vpop.f32.mrb[0].mxu0
        %v1211 = vadd.f32 %v1162, %v1210
        %v1212 = vpop.f32.mrb[0].mxu0
        %v1213 = vpop.f32.mrb[0].mxu0
        %v1214 = vpop.f32.mrb[0].mxu0
        %1215 = vdwg.mxu0
        %v1216 = vpack.c.bf16 %v1016, %v1016
        %v1217 = vpack.c.bf16 %v1081, %v1081
        %v1218 = vpack.c.bf16 %v1146, %v1146
        %v1219 = vpack.c.bf16 %v1211, %v1211
        %vm1220 = vcmask 64512
        %v1222 = vsel %vm1220, %v686, 0
        %v1225 = vsel %vm1220, %v951, 0
        %1227 = vmatprep.subr.bf16.mxu0 0
        %1228 = vmatpush1.bf16.xpose.msra.mxu0 %v1225
        %1229 = vmatprep.subr.bf16.mxu0 0
        %1230 = vmatpush1.bf16.xpose.msra.mxu0 0
        %1231 = vmatprep.subr.bf16.mxu0 0
        %1232 = vmatpush1.bf16.xpose.msra.mxu0 0
        %1233 = vmatprep.subr.bf16.mxu0 0
        %1234 = vmatpush1.bf16.xpose.msra.mxu0 0
        %1235 = vmatprep.subr.bf16.mxu0 0
        %1236 = vmatpush1.bf16.xpose.msra.mxu0 0
        %1237 = vmatprep.subr.bf16.mxu0 0
        %1238 = vmatpush1.bf16.xpose.msra.mxu0 0
        %1239 = vmatprep.subr.bf16.mxu0 0
        %1240 = vmatpush1.bf16.xpose.msra.mxu0 0
        %1241 = vmatprep.subr.bf16.mxu0 0
        %1242 = vmatpush1.bf16.xpose.msra.mxu0 0
        %1243 = vmatprep.subr.bf16.mxu0 0
        %1244 = vmatpush1.bf16.xpose.msra.mxu0 0
        %1245 = vmatprep.subr.bf16.mxu0 0
        %1246 = vmatpush1.bf16.xpose.msra.mxu0 0
        %1247 = vmatprep.subr.bf16.mxu0 0
        %1248 = vmatpush1.bf16.xpose.msra.mxu0 0
        %1249 = vmatprep.subr.bf16.mxu0 0
        %1250 = vmatpush1.bf16.xpose.msra.mxu0 0
        %1251 = vmatprep.subr.bf16.mxu0 0
        %1252 = vmatpush1.bf16.xpose.msra.mxu0 0
        %1253 = vmatprep.subr.bf16.mxu0 0
        %1254 = vmatpush1.bf16.xpose.msra.mxu0 0
        %1255 = vmatprep.subr.bf16.mxu0 0
        %1256 = vmatpush1.bf16.xpose.msra.mxu0 0
        %1257 = vmatprep.subr.bf16.mxu0 0
        %1258 = vmatpush1.bf16.xpose.msra.mxu0 0
        %1259 = vmatprep.mubr.bf16.mxu0 0
        %1260 = vmatmul.mubr.bf16.gmra.mrb[0].mxu0 %v1222
        %v1261 = vpop.f32.mrb[0].mxu0
        %v1262 = vadd.f32 0.0, %v1261
        %v1263 = vpop.f32.mrb[0].mxu0
        %v1264 = vpop.f32.mrb[0].mxu0
        %v1265 = vpop.f32.mrb[0].mxu0
        %1266 = vdwg.mxu0
        %v1268 = vsel %vm1220, %v687, 0
        %v1271 = vsel %vm1220, %v952, 0
        %1273 = vmatprep.subr.bf16.mxu0 0
        %1274 = vmatpush1.bf16.xpose.msra.mxu0 %v1271
        %1275 = vmatprep.subr.bf16.mxu0 0
        %1276 = vmatpush1.bf16.xpose.msra.mxu0 0
        %1277 = vmatprep.subr.bf16.mxu0 0
        %1278 = vmatpush1.bf16.xpose.msra.mxu0 0
        %1279 = vmatprep.subr.bf16.mxu0 0
        %1280 = vmatpush1.bf16.xpose.msra.mxu0 0
        %1281 = vmatprep.subr.bf16.mxu0 0
        %1282 = vmatpush1.bf16.xpose.msra.mxu0 0
        %1283 = vmatprep.subr.bf16.mxu0 0
        %1284 = vmatpush1.bf16.xpose.msra.mxu0 0
        %1285 = vmatprep.subr.bf16.mxu0 0
        %1286 = vmatpush1.bf16.xpose.msra.mxu0 0
        %1287 = vmatprep.subr.bf16.mxu0 0
        %1288 = vmatpush1.bf16.xpose.msra.mxu0 0
        %1289 = vmatprep.subr.bf16.mxu0 0
        %1290 = vmatpush1.bf16.xpose.msra.mxu0 0
        %1291 = vmatprep.subr.bf16.mxu0 0
        %1292 = vmatpush1.bf16.xpose.msra.mxu0 0
        %1293 = vmatprep.subr.bf16.mxu0 0
        %1294 = vmatpush1.bf16.xpose.msra.mxu0 0
        %1295 = vmatprep.subr.bf16.mxu0 0
        %1296 = vmatpush1.bf16.xpose.msra.mxu0 0
        %1297 = vmatprep.subr.bf16.mxu0 0
        %1298 = vmatpush1.bf16.xpose.msra.mxu0 0
        %1299 = vmatprep.subr.bf16.mxu0 0
        %1300 = vmatpush1.bf16.xpose.msra.mxu0 0
        %1301 = vmatprep.subr.bf16.mxu0 0
        %1302 = vmatpush1.bf16.xpose.msra.mxu0 0
        %1303 = vmatprep.subr.bf16.mxu0 0
        %1304 = vmatpush1.bf16.xpose.msra.mxu0 0
        %1305 = vmatprep.mubr.bf16.mxu0 0
        %1306 = vmatmul.mubr.bf16.gmra.mrb[0].mxu0 %v1268
        %v1307 = vpop.f32.mrb[0].mxu0
        %v1308 = vadd.f32 0.0, %v1307
        %v1309 = vpop.f32.mrb[0].mxu0
        %v1310 = vpop.f32.mrb[0].mxu0
        %v1311 = vpop.f32.mrb[0].mxu0
        %1312 = vdwg.mxu0
        %v1314 = vsel %vm1220, %v688, 0
        %v1317 = vsel %vm1220, %v953, 0
        %1319 = vmatprep.subr.bf16.mxu0 0
        %1320 = vmatpush1.bf16.xpose.msra.mxu0 %v1317
        %1321 = vmatprep.subr.bf16.mxu0 0
        %1322 = vmatpush1.bf16.xpose.msra.mxu0 0
        %1323 = vmatprep.subr.bf16.mxu0 0
        %1324 = vmatpush1.bf16.xpose.msra.mxu0 0
        %1325 = vmatprep.subr.bf16.mxu0 0
        %1326 = vmatpush1.bf16.xpose.msra.mxu0 0
        %1327 = vmatprep.subr.bf16.mxu0 0
        %1328 = vmatpush1.bf16.xpose.msra.mxu0 0
        %1329 = vmatprep.subr.bf16.mxu0 0
        %1330 = vmatpush1.bf16.xpose.msra.mxu0 0
        %1331 = vmatprep.subr.bf16.mxu0 0
        %1332 = vmatpush1.bf16.xpose.msra.mxu0 0
        %1333 = vmatprep.subr.bf16.mxu0 0
        %1334 = vmatpush1.bf16.xpose.msra.mxu0 0
        %1335 = vmatprep.subr.bf16.mxu0 0
        %1336 = vmatpush1.bf16.xpose.msra.mxu0 0
        %1337 = vmatprep.subr.bf16.mxu0 0
        %1338 = vmatpush1.bf16.xpose.msra.mxu0 0
        %1339 = vmatprep.subr.bf16.mxu0 0
        %1340 = vmatpush1.bf16.xpose.msra.mxu0 0
        %1341 = vmatprep.subr.bf16.mxu0 0
        %1342 = vmatpush1.bf16.xpose.msra.mxu0 0
        %1343 = vmatprep.subr.bf16.mxu0 0
        %1344 = vmatpush1.bf16.xpose.msra.mxu0 0
        %1345 = vmatprep.subr.bf16.mxu0 0
        %1346 = vmatpush1.bf16.xpose.msra.mxu0 0
        %1347 = vmatprep.subr.bf16.mxu0 0
        %1348 = vmatpush1.bf16.xpose.msra.mxu0 0
        %1349 = vmatprep.subr.bf16.mxu0 0
        %1350 = vmatpush1.bf16.xpose.msra.mxu0 0
        %1351 = vmatprep.mubr.bf16.mxu0 0
        %1352 = vmatmul.mubr.bf16.gmra.mrb[0].mxu0 %v1314
        %v1353 = vpop.f32.mrb[0].mxu0
        %v1354 = vadd.f32 0.0, %v1353
        %v1355 = vpop.f32.mrb[0].mxu0
        %v1356 = vpop.f32.mrb[0].mxu0
        %v1357 = vpop.f32.mrb[0].mxu0
        %1358 = vdwg.mxu0
        %v1360 = vsel %vm1220, %v689, 0
        %v1363 = vsel %vm1220, %v954, 0
        %1365 = vmatprep.subr.bf16.mxu0 0
        %1366 = vmatpush1.bf16.xpose.msra.mxu0 %v1363
        %1367 = vmatprep.subr.bf16.mxu0 0
        %1368 = vmatpush1.bf16.xpose.msra.mxu0 0
        %1369 = vmatprep.subr.bf16.mxu0 0
        %1370 = vmatpush1.bf16.xpose.msra.mxu0 0
        %1371 = vmatprep.subr.bf16.mxu0 0
        %1372 = vmatpush1.bf16.xpose.msra.mxu0 0
        %1373 = vmatprep.subr.bf16.mxu0 0
        %1374 = vmatpush1.bf16.xpose.msra.mxu0 0
        %1375 = vmatprep.subr.bf16.mxu0 0
        %1376 = vmatpush1.bf16.xpose.msra.mxu0 0
        %1377 = vmatprep.subr.bf16.mxu0 0
        %1378 = vmatpush1.bf16.xpose.msra.mxu0 0
        %1379 = vmatprep.subr.bf16.mxu0 0
        %1380 = vmatpush1.bf16.xpose.msra.mxu0 0
        %1381 = vmatprep.subr.bf16.mxu0 0
        %1382 = vmatpush1.bf16.xpose.msra.mxu0 0
        %1383 = vmatprep.subr.bf16.mxu0 0
        %1384 = vmatpush1.bf16.xpose.msra.mxu0 0
        %1385 = vmatprep.subr.bf16.mxu0 0
        %1386 = vmatpush1.bf16.xpose.msra.mxu0 0
        %1387 = vmatprep.subr.bf16.mxu0 0
        %1388 = vmatpush1.bf16.xpose.msra.mxu0 0
        %1389 = vmatprep.subr.bf16.mxu0 0
        %1390 = vmatpush1.bf16.xpose.msra.mxu0 0
        %1391 = vmatprep.subr.bf16.mxu0 0
        %1392 = vmatpush1.bf16.xpose.msra.mxu0 0
        %1393 = vmatprep.subr.bf16.mxu0 0
        %1394 = vmatpush1.bf16.xpose.msra.mxu0 0
        %1395 = vmatprep.subr.bf16.mxu0 0
        %1396 = vmatpush1.bf16.xpose.msra.mxu0 0
        %1397 = vmatprep.mubr.bf16.mxu0 0
        %1398 = vmatmul.mubr.bf16.gmra.mrb[0].mxu0 %v1360
        %v1399 = vpop.f32.mrb[0].mxu0
        %v1400 = vadd.f32 0.0, %v1399
        %v1401 = vpop.f32.mrb[0].mxu0
        %v1402 = vpop.f32.mrb[0].mxu0
        %v1403 = vpop.f32.mrb[0].mxu0
        %1404 = vdwg.mxu0
        %v1405 = vsel %vm1220, %v1262, -inf
        %1406 = vmax.xlane.f32.xlu0 %v1405
        %v1407 = vpop.xlane.xlu0 %1406
        %v1408 = vsel %vm1220, %v1308, -inf
        %1409 = vmax.xlane.f32.xlu0 %v1408
        %v1410 = vpop.xlane.xlu0 %1409
        %v1411 = vsel %vm1220, %v1354, -inf
        %1412 = vmax.xlane.f32.xlu0 %v1411
        %v1413 = vpop.xlane.xlu0 %1412
        %v1414 = vsel %vm1220, %v1400, -inf
        %1415 = vmax.xlane.f32.xlu0 %v1414
        %v1416 = vpop.xlane.xlu0 %1415
        %v1417 = vsub.f32 %v1262, %v1407
        %v1418 = vsub.f32 %v1308, %v1410
        %v1419 = vsub.f32 %v1354, %v1413
        %v1420 = vsub.f32 %v1400, %v1416
        %v1421 = vmul.f32 %v1417, 1.442695
        %v1422 = vpow.pop %v1421
        %v1423 = vmul.f32 %v1418, 1.442695
        %v1424 = vpow.pop %v1423
        %v1425 = vmul.f32 %v1419, 1.442695
        %v1426 = vpow.pop %v1425
        %v1427 = vmul.f32 %v1420, 1.442695
        %v1428 = vpow.pop %v1427
        %v1429 = vsel %vm1220, %v1422, 0.0
        %1430 = vadd.xlane.f32.xlu0 %v1429
        %v1431 = vpop.xlane.xlu0 %1430
        %v1432 = vsel %vm1220, %v1424, 0.0
        %1433 = vadd.xlane.f32.xlu0 %v1432
        %v1434 = vpop.xlane.xlu0 %1433
        %v1435 = vsel %vm1220, %v1426, 0.0
        %1436 = vadd.xlane.f32.xlu0 %v1435
        %v1437 = vpop.xlane.xlu0 %1436
        %v1438 = vsel %vm1220, %v1428, 0.0
        %1439 = vadd.xlane.f32.xlu0 %v1438
        %v1440 = vpop.xlane.xlu0 %1439
        %v1441 = vpack.c.bf16 %v1422, %v1422
        %v1442 = vpack.c.bf16 %v1424, %v1424
        %v1443 = vpack.c.bf16 %v1426, %v1426
        %v1444 = vpack.c.bf16 %v1428, %v1428
        %v1446 = vsel %vm1220, %v1441, 0
        %vm1448 = vcmask 1043456
        %v1450 = vsel %vm1448, %v1216, 0
        %1452 = vmatprep.subr.bf16.mxu0 0
        %1453 = vmatpush1.bf16.msra.mxu0 %v1450
        %1454 = vmatprep.subr.bf16.mxu0 0
        %1455 = vmatpush1.bf16.msra.mxu0 0
        %1456 = vmatprep.subr.bf16.mxu0 0
        %1457 = vmatpush1.bf16.msra.mxu0 0
        %1458 = vmatprep.subr.bf16.mxu0 0
        %1459 = vmatpush1.bf16.msra.mxu0 0
        %1460 = vmatprep.subr.bf16.mxu0 0
        %1461 = vmatpush1.bf16.msra.mxu0 0
        %1462 = vmatprep.subr.bf16.mxu0 0
        %1463 = vmatpush1.bf16.msra.mxu0 0
        %1464 = vmatprep.subr.bf16.mxu0 0
        %1465 = vmatpush1.bf16.msra.mxu0 0
        %1466 = vmatprep.subr.bf16.mxu0 0
        %1467 = vmatpush1.bf16.msra.mxu0 0
        %1468 = vmatprep.subr.bf16.mxu0 0
        %1469 = vmatpush1.bf16.msra.mxu0 0
        %1470 = vmatprep.subr.bf16.mxu0 0
        %1471 = vmatpush1.bf16.msra.mxu0 0
        %1472 = vmatprep.subr.bf16.mxu0 0
        %1473 = vmatpush1.bf16.msra.mxu0 0
        %1474 = vmatprep.subr.bf16.mxu0 0
        %1475 = vmatpush1.bf16.msra.mxu0 0
        %1476 = vmatprep.subr.bf16.mxu0 0
        %1477 = vmatpush1.bf16.msra.mxu0 0
        %1478 = vmatprep.subr.bf16.mxu0 0
        %1479 = vmatpush1.bf16.msra.mxu0 0
        %1480 = vmatprep.subr.bf16.mxu0 0
        %1481 = vmatpush1.bf16.msra.mxu0 0
        %1482 = vmatprep.subr.bf16.mxu0 0
        %1483 = vmatpush1.bf16.msra.mxu0 0
        %1484 = vmatprep.mubr.bf16.mxu0 0
        %1485 = vmatmul.mubr.bf16.gmra.mrb[0].mxu0 %v1446
        %v1486 = vpop.f32.mrb[0].mxu0
        %v1487 = vadd.f32 0.0, %v1486
        %v1488 = vpop.f32.mrb[0].mxu0
        %v1489 = vpop.f32.mrb[0].mxu0
        %v1490 = vpop.f32.mrb[0].mxu0
        %1491 = vdwg.mxu0
        %v1493 = vsel %vm1220, %v1442, 0
        %v1496 = vsel %vm1448, %v1217, 0
        %1498 = vmatprep.subr.bf16.mxu0 0
        %1499 = vmatpush1.bf16.msra.mxu0 %v1496
        %1500 = vmatprep.subr.bf16.mxu0 0
        %1501 = vmatpush1.bf16.msra.mxu0 0
        %1502 = vmatprep.subr.bf16.mxu0 0
        %1503 = vmatpush1.bf16.msra.mxu0 0
        %1504 = vmatprep.subr.bf16.mxu0 0
        %1505 = vmatpush1.bf16.msra.mxu0 0
        %1506 = vmatprep.subr.bf16.mxu0 0
        %1507 = vmatpush1.bf16.msra.mxu0 0
        %1508 = vmatprep.subr.bf16.mxu0 0
        %1509 = vmatpush1.bf16.msra.mxu0 0
        %1510 = vmatprep.subr.bf16.mxu0 0
        %1511 = vmatpush1.bf16.msra.mxu0 0
        %1512 = vmatprep.subr.bf16.mxu0 0
        %1513 = vmatpush1.bf16.msra.mxu0 0
        %1514 = vmatprep.subr.bf16.mxu0 0
        %1515 = vmatpush1.bf16.msra.mxu0 0
        %1516 = vmatprep.subr.bf16.mxu0 0
        %1517 = vmatpush1.bf16.msra.mxu0 0
        %1518 = vmatprep.subr.bf16.mxu0 0
        %1519 = vmatpush1.bf16.msra.mxu0 0
        %1520 = vmatprep.subr.bf16.mxu0 0
        %1521 = vmatpush1.bf16.msra.mxu0 0
        %1522 = vmatprep.subr.bf16.mxu0 0
        %1523 = vmatpush1.bf16.msra.mxu0 0
        %1524 = vmatprep.subr.bf16.mxu0 0
        %1525 = vmatpush1.bf16.msra.mxu0 0
        %1526 = vmatprep.subr.bf16.mxu0 0
        %1527 = vmatpush1.bf16.msra.mxu0 0
        %1528 = vmatprep.subr.bf16.mxu0 0
        %1529 = vmatpush1.bf16.msra.mxu0 0
        %1530 = vmatprep.mubr.bf16.mxu0 0
        %1531 = vmatmul.mubr.bf16.gmra.mrb[0].mxu0 %v1493
        %v1532 = vpop.f32.mrb[0].mxu0
        %v1533 = vadd.f32 0.0, %v1532
        %v1534 = vpop.f32.mrb[0].mxu0
        %v1535 = vpop.f32.mrb[0].mxu0
        %v1536 = vpop.f32.mrb[0].mxu0
        %1537 = vdwg.mxu0
        %v1539 = vsel %vm1220, %v1443, 0
        %v1542 = vsel %vm1448, %v1218, 0
        %1544 = vmatprep.subr.bf16.mxu0 0
        %1545 = vmatpush1.bf16.msra.mxu0 %v1542
        %1546 = vmatprep.subr.bf16.mxu0 0
        %1547 = vmatpush1.bf16.msra.mxu0 0
        %1548 = vmatprep.subr.bf16.mxu0 0
        %1549 = vmatpush1.bf16.msra.mxu0 0
        %1550 = vmatprep.subr.bf16.mxu0 0
        %1551 = vmatpush1.bf16.msra.mxu0 0
        %1552 = vmatprep.subr.bf16.mxu0 0
        %1553 = vmatpush1.bf16.msra.mxu0 0
        %1554 = vmatprep.subr.bf16.mxu0 0
        %1555 = vmatpush1.bf16.msra.mxu0 0
        %1556 = vmatprep.subr.bf16.mxu0 0
        %1557 = vmatpush1.bf16.msra.mxu0 0
        %1558 = vmatprep.subr.bf16.mxu0 0
        %1559 = vmatpush1.bf16.msra.mxu0 0
        %1560 = vmatprep.subr.bf16.mxu0 0
        %1561 = vmatpush1.bf16.msra.mxu0 0
        %1562 = vmatprep.subr.bf16.mxu0 0
        %1563 = vmatpush1.bf16.msra.mxu0 0
        %1564 = vmatprep.subr.bf16.mxu0 0
        %1565 = vmatpush1.bf16.msra.mxu0 0
        %1566 = vmatprep.subr.bf16.mxu0 0
        %1567 = vmatpush1.bf16.msra.mxu0 0
        %1568 = vmatprep.subr.bf16.mxu0 0
        %1569 = vmatpush1.bf16.msra.mxu0 0
        %1570 = vmatprep.subr.bf16.mxu0 0
        %1571 = vmatpush1.bf16.msra.mxu0 0
        %1572 = vmatprep.subr.bf16.mxu0 0
        %1573 = vmatpush1.bf16.msra.mxu0 0
        %1574 = vmatprep.subr.bf16.mxu0 0
        %1575 = vmatpush1.bf16.msra.mxu0 0
        %1576 = vmatprep.mubr.bf16.mxu0 0
        %1577 = vmatmul.mubr.bf16.gmra.mrb[0].mxu0 %v1539
        %v1578 = vpop.f32.mrb[0].mxu0
        %v1579 = vadd.f32 0.0, %v1578
        %v1580 = vpop.f32.mrb[0].mxu0
        %v1581 = vpop.f32.mrb[0].mxu0
        %v1582 = vpop.f32.mrb[0].mxu0
        %1583 = vdwg.mxu0
        %v1585 = vsel %vm1220, %v1444, 0
        %v1588 = vsel %vm1448, %v1219, 0
        %1590 = vmatprep.subr.bf16.mxu0 0
        %1591 = vmatpush1.bf16.msra.mxu0 %v1588
        %1592 = vmatprep.subr.bf16.mxu0 0
        %1593 = vmatpush1.bf16.msra.mxu0 0
        %1594 = vmatprep.subr.bf16.mxu0 0
        %1595 = vmatpush1.bf16.msra.mxu0 0
        %1596 = vmatprep.subr.bf16.mxu0 0
        %1597 = vmatpush1.bf16.msra.mxu0 0
        %1598 = vmatprep.subr.bf16.mxu0 0
        %1599 = vmatpush1.bf16.msra.mxu0 0
        %1600 = vmatprep.subr.bf16.mxu0 0
        %1601 = vmatpush1.bf16.msra.mxu0 0
        %1602 = vmatprep.subr.bf16.mxu0 0
        %1603 = vmatpush1.bf16.msra.mxu0 0
        %1604 = vmatprep.subr.bf16.mxu0 0
        %1605 = vmatpush1.bf16.msra.mxu0 0
        %1606 = vmatprep.subr.bf16.mxu0 0
        %1607 = vmatpush1.bf16.msra.mxu0 0
        %1608 = vmatprep.subr.bf16.mxu0 0
        %1609 = vmatpush1.bf16.msra.mxu0 0
        %1610 = vmatprep.subr.bf16.mxu0 0
        %1611 = vmatpush1.bf16.msra.mxu0 0
        %1612 = vmatprep.subr.bf16.mxu0 0
        %1613 = vmatpush1.bf16.msra.mxu0 0
        %1614 = vmatprep.subr.bf16.mxu0 0
        %1615 = vmatpush1.bf16.msra.mxu0 0
        %1616 = vmatprep.subr.bf16.mxu0 0
        %1617 = vmatpush1.bf16.msra.mxu0 0
        %1618 = vmatprep.subr.bf16.mxu0 0
        %1619 = vmatpush1.bf16.msra.mxu0 0
        %1620 = vmatprep.subr.bf16.mxu0 0
        %1621 = vmatpush1.bf16.msra.mxu0 0
        %1622 = vmatprep.mubr.bf16.mxu0 0
        %1623 = vmatmul.mubr.bf16.gmra.mrb[0].mxu0 %v1585
        %v1624 = vpop.f32.mrb[0].mxu0
        %v1625 = vadd.f32 0.0, %v1624
        %v1626 = vpop.f32.mrb[0].mxu0
        %v1627 = vpop.f32.mrb[0].mxu0
        %v1628 = vpop.f32.mrb[0].mxu0
        %1629 = vdwg.mxu0
        %v1630 = vrcp.pop %v1431
        %v1631 = vrcp.pop %v1434
        %v1632 = vrcp.pop %v1437
        %v1633 = vrcp.pop %v1440
        %v1634 = vmul.f32 %v1487, %v1630
        %v1635 = vmul.f32 %v1533, %v1631
        %v1636 = vmul.f32 %v1579, %v1632
        %v1637 = vmul.f32 %v1625, %v1633
        %v1638 = vpack.c.bf16 %v1634, %v1634
        %v1639 = vpack.c.bf16 %v1635, %v1635
        %v1640 = vpack.c.bf16 %v1636, %v1636
        %v1641 = vpack.c.bf16 %v1637, %v1637
        %v1642 = vld [vmem:[%s6] sm:$0xf]
        %s1643 = scalar_lea.vmem %s6, 4
        %v1644 = vld [vmem:[%s1643] sm:$0xf]
        %v1646 = vsel %vm1220, %v1639, 0
        %v1649 = vsel %vm1448, %v1644, 0
        %1651 = vmatprep.subr.bf16.mxu0 0
        %1652 = vmatpush1.bf16.msra.mxu0 %v1649
        %1653 = vmatprep.subr.bf16.mxu0 0
        %1654 = vmatpush1.bf16.msra.mxu0 0
        %1655 = vmatprep.subr.bf16.mxu0 0
        %1656 = vmatpush1.bf16.msra.mxu0 0
        %1657 = vmatprep.subr.bf16.mxu0 0
        %1658 = vmatpush1.bf16.msra.mxu0 0
        %1659 = vmatprep.subr.bf16.mxu0 0
        %1660 = vmatpush1.bf16.msra.mxu0 0
        %1661 = vmatprep.subr.bf16.mxu0 0
        %1662 = vmatpush1.bf16.msra.mxu0 0
        %1663 = vmatprep.subr.bf16.mxu0 0
        %1664 = vmatpush1.bf16.msra.mxu0 0
        %1665 = vmatprep.subr.bf16.mxu0 0
        %1666 = vmatpush1.bf16.msra.mxu0 0
        %1667 = vmatprep.subr.bf16.mxu0 0
        %1668 = vmatpush1.bf16.msra.mxu0 0
        %1669 = vmatprep.subr.bf16.mxu0 0
        %1670 = vmatpush1.bf16.msra.mxu0 0
        %1671 = vmatprep.subr.bf16.mxu0 0
        %1672 = vmatpush1.bf16.msra.mxu0 0
        %1673 = vmatprep.subr.bf16.mxu0 0
        %1674 = vmatpush1.bf16.msra.mxu0 0
        %1675 = vmatprep.subr.bf16.mxu0 0
        %1676 = vmatpush1.bf16.msra.mxu0 0
        %1677 = vmatprep.subr.bf16.mxu0 0
        %1678 = vmatpush1.bf16.msra.mxu0 0
        %1679 = vmatprep.subr.bf16.mxu0 0
        %1680 = vmatpush1.bf16.msra.mxu0 0
        %1681 = vmatprep.subr.bf16.mxu0 0
        %1682 = vmatpush1.bf16.msra.mxu0 0
        %1683 = vmatprep.mubr.bf16.mxu0 0
        %1684 = vmatmul.mubr.bf16.gmra.mrb[0].mxu0 %v1646
        %v1685 = vpop.f32.mrb[0].mxu0
        %v1686 = vadd.f32 0.0, %v1685
        %v1687 = vpop.f32.mrb[0].mxu0
        %v1688 = vpop.f32.mrb[0].mxu0
        %v1689 = vpop.f32.mrb[0].mxu0
        %1690 = vdwg.mxu0
        %v1692 = vsel %vm1220, %v1638, 0
        %v1695 = vsel %vm1448, %v1642, 0
        %1697 = vmatprep.subr.bf16.mxu0 0
        %1698 = vmatpush1.bf16.msra.mxu0 %v1695
        %1699 = vmatprep.subr.bf16.mxu0 0
        %1700 = vmatpush1.bf16.msra.mxu0 0
        %1701 = vmatprep.subr.bf16.mxu0 0
        %1702 = vmatpush1.bf16.msra.mxu0 0
        %1703 = vmatprep.subr.bf16.mxu0 0
        %1704 = vmatpush1.bf16.msra.mxu0 0
        %1705 = vmatprep.subr.bf16.mxu0 0
        %1706 = vmatpush1.bf16.msra.mxu0 0
        %1707 = vmatprep.subr.bf16.mxu0 0
        %1708 = vmatpush1.bf16.msra.mxu0 0
        %1709 = vmatprep.subr.bf16.mxu0 0
        %1710 = vmatpush1.bf16.msra.mxu0 0
        %1711 = vmatprep.subr.bf16.mxu0 0
        %1712 = vmatpush1.bf16.msra.mxu0 0
        %1713 = vmatprep.subr.bf16.mxu0 0
        %1714 = vmatpush1.bf16.msra.mxu0 0
        %1715 = vmatprep.subr.bf16.mxu0 0
        %1716 = vmatpush1.bf16.msra.mxu0 0
        %1717 = vmatprep.subr.bf16.mxu0 0
        %1718 = vmatpush1.bf16.msra.mxu0 0
        %1719 = vmatprep.subr.bf16.mxu0 0
        %1720 = vmatpush1.bf16.msra.mxu0 0
        %1721 = vmatprep.subr.bf16.mxu0 0
        %1722 = vmatpush1.bf16.msra.mxu0 0
        %1723 = vmatprep.subr.bf16.mxu0 0
        %1724 = vmatpush1.bf16.msra.mxu0 0
        %1725 = vmatprep.subr.bf16.mxu0 0
        %1726 = vmatpush1.bf16.msra.mxu0 0
        %1727 = vmatprep.subr.bf16.mxu0 0
        %1728 = vmatpush1.bf16.msra.mxu0 0
        %1729 = vmatprep.mubr.bf16.mxu0 0
        %1730 = vmatmul.mubr.bf16.gmra.mrb[0].mxu0 %v1692
        %v1731 = vpop.f32.mrb[0].mxu0
        %v1732 = vadd.f32 %v1686, %v1731
        %v1733 = vpop.f32.mrb[0].mxu0
        %v1734 = vpop.f32.mrb[0].mxu0
        %v1735 = vpop.f32.mrb[0].mxu0
        %1736 = vdwg.mxu0
        %s1737 = scalar_lea.vmem %s6, 8
        %v1738 = vld [vmem:[%s1737] sm:$0xf]
        %v1740 = vsel %vm1220, %v1640, 0
        %v1743 = vsel %vm1448, %v1738, 0
        %1745 = vmatprep.subr.bf16.mxu0 0
        %1746 = vmatpush1.bf16.msra.mxu0 %v1743
        %1747 = vmatprep.subr.bf16.mxu0 0
        %1748 = vmatpush1.bf16.msra.mxu0 0
        %1749 = vmatprep.subr.bf16.mxu0 0
        %1750 = vmatpush1.bf16.msra.mxu0 0
        %1751 = vmatprep.subr.bf16.mxu0 0
        %1752 = vmatpush1.bf16.msra.mxu0 0
        %1753 = vmatprep.subr.bf16.mxu0 0
        %1754 = vmatpush1.bf16.msra.mxu0 0
        %1755 = vmatprep.subr.bf16.mxu0 0
        %1756 = vmatpush1.bf16.msra.mxu0 0
        %1757 = vmatprep.subr.bf16.mxu0 0
        %1758 = vmatpush1.bf16.msra.mxu0 0
        %1759 = vmatprep.subr.bf16.mxu0 0
        %1760 = vmatpush1.bf16.msra.mxu0 0
        %1761 = vmatprep.subr.bf16.mxu0 0
        %1762 = vmatpush1.bf16.msra.mxu0 0
        %1763 = vmatprep.subr.bf16.mxu0 0
        %1764 = vmatpush1.bf16.msra.mxu0 0
        %1765 = vmatprep.subr.bf16.mxu0 0
        %1766 = vmatpush1.bf16.msra.mxu0 0
        %1767 = vmatprep.subr.bf16.mxu0 0
        %1768 = vmatpush1.bf16.msra.mxu0 0
        %1769 = vmatprep.subr.bf16.mxu0 0
        %1770 = vmatpush1.bf16.msra.mxu0 0
        %1771 = vmatprep.subr.bf16.mxu0 0
        %1772 = vmatpush1.bf16.msra.mxu0 0
        %1773 = vmatprep.subr.bf16.mxu0 0
        %1774 = vmatpush1.bf16.msra.mxu0 0
        %1775 = vmatprep.subr.bf16.mxu0 0
        %1776 = vmatpush1.bf16.msra.mxu0 0
        %1777 = vmatprep.mubr.bf16.mxu0 0
        %1778 = vmatmul.mubr.bf16.gmra.mrb[0].mxu0 %v1740
        %v1779 = vpop.f32.mrb[0].mxu0
        %v1780 = vadd.f32 0.0, %v1779
        %v1781 = vpop.f32.mrb[0].mxu0
        %v1782 = vpop.f32.mrb[0].mxu0
        %v1783 = vpop.f32.mrb[0].mxu0
        %1784 = vdwg.mxu0
        %v1785 = vadd.f32 %v1732, %v1780
        %s1786 = scalar_lea.vmem %s6, 12
        %v1787 = vld [vmem:[%s1786] sm:$0xf]
        %v1789 = vsel %vm1220, %v1641, 0
        %v1792 = vsel %vm1448, %v1787, 0
        %1794 = vmatprep.subr.bf16.mxu0 0
        %1795 = vmatpush1.bf16.msra.mxu0 %v1792
        %1796 = vmatprep.subr.bf16.mxu0 0
        %1797 = vmatpush1.bf16.msra.mxu0 0
        %1798 = vmatprep.subr.bf16.mxu0 0
        %1799 = vmatpush1.bf16.msra.mxu0 0
        %1800 = vmatprep.subr.bf16.mxu0 0
        %1801 = vmatpush1.bf16.msra.mxu0 0
        %1802 = vmatprep.subr.bf16.mxu0 0
        %1803 = vmatpush1.bf16.msra.mxu0 0
        %1804 = vmatprep.subr.bf16.mxu0 0
        %1805 = vmatpush1.bf16.msra.mxu0 0
        %1806 = vmatprep.subr.bf16.mxu0 0
        %1807 = vmatpush1.bf16.msra.mxu0 0
        %1808 = vmatprep.subr.bf16.mxu0 0
        %1809 = vmatpush1.bf16.msra.mxu0 0
        %1810 = vmatprep.subr.bf16.mxu0 0
        %1811 = vmatpush1.bf16.msra.mxu0 0
        %1812 = vmatprep.subr.bf16.mxu0 0
        %1813 = vmatpush1.bf16.msra.mxu0 0
        %1814 = vmatprep.subr.bf16.mxu0 0
        %1815 = vmatpush1.bf16.msra.mxu0 0
        %1816 = vmatprep.subr.bf16.mxu0 0
        %1817 = vmatpush1.bf16.msra.mxu0 0
        %1818 = vmatprep.subr.bf16.mxu0 0
        %1819 = vmatpush1.bf16.msra.mxu0 0
        %1820 = vmatprep.subr.bf16.mxu0 0
        %1821 = vmatpush1.bf16.msra.mxu0 0
        %1822 = vmatprep.subr.bf16.mxu0 0
        %1823 = vmatpush1.bf16.msra.mxu0 0
        %1824 = vmatprep.subr.bf16.mxu0 0
        %1825 = vmatpush1.bf16.msra.mxu0 0
        %1826 = vmatprep.mubr.bf16.mxu0 0
        %1827 = vmatmul.mubr.bf16.gmra.mrb[0].mxu0 %v1789
        %v1828 = vpop.f32.mrb[0].mxu0
        %v1829 = vadd.f32 0.0, %v1828
        %v1830 = vpop.f32.mrb[0].mxu0
        %v1831 = vpop.f32.mrb[0].mxu0
        %v1832 = vpop.f32.mrb[0].mxu0
        %1833 = vdwg.mxu0
        %v1834 = vadd.f32 %v1785, %v1829
        %v1835 = vld [vmem:[%s10] sm:$0x1]
        %v1837 = vlaneseq
        %v1838 = vshrl.u32 %v1837, 7
        %v1839 = vsub.s32 0, %v1838
        %v1840 = vrot.slane %v1835, %v1839
        %v1842 = vadd.f32 %v1834, %v1840
        %1843 = vst.msk [vmem:[%s403] sm:$0xff] %vm443, %v1842
        %s1844 = sand.u32 %s279, 1
        %s1845 = scalar_lea.sflag [#allocation3], %s1844
        %s1846 = sand.u32 %s279, 1
        %s1847 = smul.addr %s1846, 8
        %s1848 = scalar_lea.vmem [#allocation2], %s1847
        // Predicated region
        $region65: #{tpu_custom_call.1} parent=63 // pred_check
          %p1849 = pneg %p289
        $region66: #{tpu_custom_call.1} parent=63 // pred_check_branch
          %1851 = sbr.rel (%p1849) target = $region68
        $region67: #{tpu_custom_call.1} parent=63 // pred_region
          %s1853 = ssub.s32 128, 128
          %1854 = vsyncadd %s1845, %s1853
          %s1855 = smul.addr %s25, 128
          %s1856 = scalar_lea.hbm %s11, %s1855
          %s1858 = sshll.u32 %s1848, 4
          %s1859 = int_to_ptr.vmem [resolvable:$true] %s1858
          %1861 = dma.vmem_to_hbm [thread:$0]  %s1859, 128, %s1856, %s1845
        $region68: #{tpu_custom_call.1} parent=63 // pred_fallthru
          _
      $region64: #{tpu_custom_call.1} parent=5 // pred_fallthru
        _
      %p1862 = scmp.le.s32.totalorder 2, %s20
      // Predicated region
      $region69: #{tpu_custom_call.1} parent=5 // pred_check
        %p1863 = pneg %p1862
      $region70: #{tpu_custom_call.1} parent=5 // pred_check_branch
        %1865 = sbr.rel (%p1863) target = $region72
      $region71: #{tpu_custom_call.1} parent=5 // pred_region
        %s1866 = ssub.s32 %s20, 2
        // Predicated region
        $region73: #{tpu_custom_call.1} parent=71 // pred_check
          %p1867 = pneg %p295
        $region74: #{tpu_custom_call.1} parent=71 // pred_check_branch
          %1869 = sbr.rel (%p1867) target = $region76
        $region75: #{tpu_custom_call.1} parent=71 // pred_region
          %s1870 = sand.u32 %s280, 1
          %s1871 = scalar_lea.sflag [#allocation3], %s1870
          %s1872 = sand.u32 %s280, 1
          %s1873 = smul.addr %s1872, 8
          %s1874 = scalar_lea.vmem [#allocation2], %s1873
          %1875 = dma.done %s1871, 128
        $region76: #{tpu_custom_call.1} parent=71 // pred_fallthru
          _
      $region72: #{tpu_custom_call.1} parent=5 // pred_fallthru
        _
    $region6: #{tpu_custom_call.1} parent=1 // loop_footer
      %s24 = sadd.s32 1, %s20
    $region7: #{tpu_custom_call.1} parent=1 // loop_footer_branch
      %19 = sbr.rel target = $region3
    $region8: #{tpu_custom_call.1} parent=1 // loop_exit
      _
    %1876 = vsyncpa [#allocation3], 1
    %s1877 = scalar_lea.sflag [#allocation3], 1
    %1878 = vsyncpa %s1877, 1

// kernel: tpu_custom_call.1
$region0: #{tpu_custom_call.1}
  #allocation0 [shape = 'u32[]', space=smem, size = 0x4, offset = 0x4, fixed_abs, tag = 'smem constant byte address 0x4 - core index']
  #allocation1 [shape = 'u32[144,128]{1,0:T(1,128)}', space=vmem, size = 0x12000, scoped, tag = 'internal scratch']
  %s0 = inlined_call_operand.vmem [shape: bf16[2,8,32], index: 0, kind: input, shape index: {}]
  %s1 = inlined_call_operand.vmem [shape: bf16[2,8,32], index: 1, kind: input, shape index: {}]
  %s2 = inlined_call_operand.vmem [shape: bf16[2,8,32], index: 2, kind: input, shape index: {}]
  %s3 = inlined_call_operand.vmem [shape: bf16[4,32,8], index: 3, kind: input, shape index: {}]
  %s4 = inlined_call_operand.vmem [shape: bf16[4,32,8], index: 4, kind: input, shape index: {}]
  %s5 = inlined_call_operand.vmem [shape: bf16[4,32,8], index: 5, kind: input, shape index: {}]
  %s6 = inlined_call_operand.vmem [shape: bf16[4,8,32], index: 6, kind: input, shape index: {}]
  %s7 = inlined_call_operand.vmem [shape: f32[4,1,8], index: 7, kind: input, shape index: {}]
  %s8 = inlined_call_operand.vmem [shape: f32[4,1,8], index: 8, kind: input, shape index: {}]
  %s9 = inlined_call_operand.vmem [shape: f32[4,1,8], index: 9, kind: input, shape index: {}]
  %s10 = inlined_call_operand.vmem [shape: f32[1,32], index: 10, kind: input, shape index: {}]
  %s11 = inlined_call_operand.hbm [shape: f32[2,8,32], index: 11, kind: output, shape index: {}]
  %s12 = sld [smem:[#allocation0]]
  $region77: #{tpu_custom_call.1} parent=0
    _
  %s14 = ssub.s32 1, %s12
  %s15 = scalar_select 0, %s14, %s12
  $region1: #{tpu_custom_call.1} parent=0
    #allocation2 [shape = 'u8[8192]{0}', space=vmem, size = 0x2000, scoped, tag = 'output window, operand 0']
    #allocation3 [shape = 's32[2]{0}', space=sflag, size = 0x8, scoped, tag = 'scoped memory for tpu_custom_call.1']
    %16 = vsyncpa [#allocation3], 0
    %s17 = scalar_lea.sflag [#allocation3], 1
    %18 = vsyncpa %s17, 0
    loop: start=0, step=1, limit=4
    $region2: #{tpu_custom_call.1} parent=1 // loop_pre_header
      _
    $region3: #{tpu_custom_call.1} parent=1 // loop_header
      %s20 = sphi 0, %s24
      %p21 = scmp.ge.s32.totalorder %s20, 4
      %s30 = sphi 0, %s32
      %s33 = sphi 0, %s30
      %s34 = sphi 0, %s33
      %s50 = sphi 0, %s34
      %s56 = sphi 0, %s58
      %s59 = sphi 0, %s56
      %s60 = sphi 0, %s59
      %s76 = sphi 0, %s60
      %s82 = sphi 0, %s84
      %s85 = sphi 0, %s82
      %s86 = sphi 0, %s85
      %s102 = sphi 0, %s86
      %s106 = sphi 0, %s106
      %s108 = sphi 0, %s106
      %s109 = sphi 0, %s108
      %s123 = sphi 0, %s109
      %s127 = sphi 0, %s127
      %s129 = sphi 0, %s127
      %s130 = sphi 0, %s129
      %s144 = sphi 0, %s130
      %s148 = sphi 0, %s148
      %s150 = sphi 0, %s148
      %s151 = sphi 0, %s150
      %s165 = sphi 0, %s151
      %s169 = sphi 0, %s169
      %s171 = sphi 0, %s169
      %s172 = sphi 0, %s171
      %s186 = sphi 0, %s172
      %s190 = sphi 0, %s190
      %s192 = sphi 0, %s190
      %s193 = sphi 0, %s192
      %s207 = sphi 0, %s193
      %s211 = sphi 0, %s211
      %s213 = sphi 0, %s211
      %s214 = sphi 0, %s213
      %s228 = sphi 0, %s214
      %s232 = sphi 0, %s232
      %s234 = sphi 0, %s232
      %s235 = sphi 0, %s234
      %s249 = sphi 0, %s235
      %s253 = sphi 0, %s253
      %s255 = sphi 0, %s253
      %s256 = sphi 0, %s255
      %s270 = sphi 0, %s256
      %s276 = sphi 0, %s278
      %s279 = sphi 0, %s276
      %s280 = sphi 0, %s279
      %s296 = sphi 0, %s280
    $region4: #{tpu_custom_call.1} parent=1 // loop_header_branch
      %23 = sbr.rel (%p21) target = $region8
    $region5: #{tpu_custom_call.1} parent=1 // loop_body
      %s25 = ssub.s32 %s20, 1
      %s26 = ssub.s32 %s20, 2
      %s27 = sadd.s32 %s20, 1
      %s28 = ssub.s32 %s20, %s27
      %p29 = scmp.eq.s32.totalorder %s28, 0
      %s31 = sadd.s32 %s30, 1
      %s32 = scalar_select %p29, %s30, %s31
      %p35 = pneg %p29
      %p36 = scmp.eq.s32.totalorder %s20, 1
      %p37 = por %p35, %p36
      %p38 = scmp.ne.s32.totalorder %s30, %s33
      %p39 = scmp.eq.s32.totalorder %s20, 0
      %p40 = por %p38, %p39
      %p41 = scmp.ne.s32.totalorder %s30, %s33
      %p42 = scmp.eq.s32.totalorder %s25, 1
      %p43 = por %p41, %p42
      %p44 = scmp.ne.s32.totalorder %s33, %s34
      %p45 = scmp.eq.s32.totalorder %s25, 0
      %p46 = por %p44, %p45
      %p47 = scmp.ne.s32.totalorder %s33, %s34
      %p48 = scmp.eq.s32.totalorder %s26, 1
      %p49 = por %p47, %p48
      %p51 = scmp.ne.s32.totalorder %s34, %s50
      %p52 = scmp.eq.s32.totalorder %s26, 0
      %p53 = por %p51, %p52
      %s54 = ssub.s32 %s20, %s27
      %p55 = scmp.eq.s32.totalorder %s54, 0
      %s57 = sadd.s32 %s56, 1
      %s58 = scalar_select %p55, %s56, %s57
      %p61 = pneg %p55
      %p62 = scmp.eq.s32.totalorder %s20, 1
      %p63 = por %p61, %p62
      %p64 = scmp.ne.s32.totalorder %s56, %s59
      %p65 = scmp.eq.s32.totalorder %s20, 0
      %p66 = por %p64, %p65
      %p67 = scmp.ne.s32.totalorder %s56, %s59
      %p68 = scmp.eq.s32.totalorder %s25, 1
      %p69 = por %p67, %p68
      %p70 = scmp.ne.s32.totalorder %s59, %s60
      %p71 = scmp.eq.s32.totalorder %s25, 0
      %p72 = por %p70, %p71
      %p73 = scmp.ne.s32.totalorder %s59, %s60
      %p74 = scmp.eq.s32.totalorder %s26, 1
      %p75 = por %p73, %p74
      %p77 = scmp.ne.s32.totalorder %s60, %s76
      %p78 = scmp.eq.s32.totalorder %s26, 0
      %p79 = por %p77, %p78
      %s80 = ssub.s32 %s20, %s27
      %p81 = scmp.eq.s32.totalorder %s80, 0
      %s83 = sadd.s32 %s82, 1
      %s84 = scalar_select %p81, %s82, %s83
      %p87 = pneg %p81
      %p88 = scmp.eq.s32.totalorder %s20, 1
      %p89 = por %p87, %p88
      %p90 = scmp.ne.s32.totalorder %s82, %s85
      %p91 = scmp.eq.s32.totalorder %s20, 0
      %p92 = por %p90, %p91
      %p93 = scmp.ne.s32.totalorder %s82, %s85
      %p94 = scmp.eq.s32.totalorder %s25, 1
      %p95 = por %p93, %p94
      %p96 = scmp.ne.s32.totalorder %s85, %s86
      %p97 = scmp.eq.s32.totalorder %s25, 0
      %p98 = por %p96, %p97
      %p99 = scmp.ne.s32.totalorder %s85, %s86
      %p100 = scmp.eq.s32.totalorder %s26, 1
      %p101 = por %p99, %p100
      %p103 = scmp.ne.s32.totalorder %s86, %s102
      %p104 = scmp.eq.s32.totalorder %s26, 0
      %p105 = por %p103, %p104
      %s107 = sadd.s32 %s106, 1
      %p110 = scmp.eq.s32.totalorder %s20, 1
      %p111 = scmp.ne.s32.totalorder %s106, %s108
      %p112 = scmp.eq.s32.totalorder %s20, 0
      %p113 = por %p111, %p112
      %p114 = scmp.ne.s32.totalorder %s106, %s108
      %p115 = scmp.eq.s32.totalorder %s25, 1
      %p116 = por %p114, %p115
      %p117 = scmp.ne.s32.totalorder %s108, %s109
      %p118 = scmp.eq.s32.totalorder %s25, 0
      %p119 = por %p117, %p118
      %p120 = scmp.ne.s32.totalorder %s108, %s109
      %p121 = scmp.eq.s32.totalorder %s26, 1
      %p122 = por %p120, %p121
      %p124 = scmp.ne.s32.totalorder %s109, %s123
      %p125 = scmp.eq.s32.totalorder %s26, 0
      %p126 = por %p124, %p125
      %s128 = sadd.s32 %s127, 1
      %p131 = scmp.eq.s32.totalorder %s20, 1
      %p132 = scmp.ne.s32.totalorder %s127, %s129
      %p133 = scmp.eq.s32.totalorder %s20, 0
      %p134 = por %p132, %p133
      %p135 = scmp.ne.s32.totalorder %s127, %s129
      %p136 = scmp.eq.s32.totalorder %s25, 1
      %p137 = por %p135, %p136
      %p138 = scmp.ne.s32.totalorder %s129, %s130
      %p139 = scmp.eq.s32.totalorder %s25, 0
      %p140 = por %p138, %p139
      %p141 = scmp.ne.s32.totalorder %s129, %s130
      %p142 = scmp.eq.s32.totalorder %s26, 1
      %p143 = por %p141, %p142
      %p145 = scmp.ne.s32.totalorder %s130, %s144
      %p146 = scmp.eq.s32.totalorder %s26, 0
      %p147 = por %p145, %p146
      %s149 = sadd.s32 %s148, 1
      %p152 = scmp.eq.s32.totalorder %s20, 1
      %p153 = scmp.ne.s32.totalorder %s148, %s150
      %p154 = scmp.eq.s32.totalorder %s20, 0
      %p155 = por %p153, %p154
      %p156 = scmp.ne.s32.totalorder %s148, %s150
      %p157 = scmp.eq.s32.totalorder %s25, 1
      %p158 = por %p156, %p157
      %p159 = scmp.ne.s32.totalorder %s150, %s151
      %p160 = scmp.eq.s32.totalorder %s25, 0
      %p161 = por %p159, %p160
      %p162 = scmp.ne.s32.totalorder %s150, %s151
      %p163 = scmp.eq.s32.totalorder %s26, 1
      %p164 = por %p162, %p163
      %p166 = scmp.ne.s32.totalorder %s151, %s165
      %p167 = scmp.eq.s32.totalorder %s26, 0
      %p168 = por %p166, %p167
      %s170 = sadd.s32 %s169, 1
      %p173 = scmp.eq.s32.totalorder %s20, 1
      %p174 = scmp.ne.s32.totalorder %s169, %s171
      %p175 = scmp.eq.s32.totalorder %s20, 0
      %p176 = por %p174, %p175
      %p177 = scmp.ne.s32.totalorder %s169, %s171
      %p178 = scmp.eq.s32.totalorder %s25, 1
      %p179 = por %p177, %p178
      %p180 = scmp.ne.s32.totalorder %s171, %s172
      %p181 = scmp.eq.s32.totalorder %s25, 0
      %p182 = por %p180, %p181
      %p183 = scmp.ne.s32.totalorder %s171, %s172
      %p184 = scmp.eq.s32.totalorder %s26, 1
      %p185 = por %p183, %p184
      %p187 = scmp.ne.s32.totalorder %s172, %s186
      %p188 = scmp.eq.s32.totalorder %s26, 0
      %p189 = por %p187, %p188
      %s191 = sadd.s32 %s190, 1
      %p194 = scmp.eq.s32.totalorder %s20, 1
      %p195 = scmp.ne.s32.totalorder %s190, %s192
      %p196 = scmp.eq.s32.totalorder %s20, 0
      %p197 = por %p195, %p196
      %p198 = scmp.ne.s32.totalorder %s190, %s192
      %p199 = scmp.eq.s32.totalorder %s25, 1
      %p200 = por %p198, %p199
      %p201 = scmp.ne.s32.totalorder %s192, %s193
      %p202 = scmp.eq.s32.totalorder %s25, 0
      %p203 = por %p201, %p202
      %p204 = scmp.ne.s32.totalorder %s192, %s193
      %p205 = scmp.eq.s32.totalorder %s26, 1
      %p206 = por %p204, %p205
      %p208 = scmp.ne.s32.totalorder %s193, %s207
      %p209 = scmp.eq.s32.totalorder %s26, 0
      %p210 = por %p208, %p209
      %s212 = sadd.s32 %s211, 1
      %p215 = scmp.eq.s32.totalorder %s20, 1
      %p216 = scmp.ne.s32.totalorder %s211, %s213
      %p217 = scmp.eq.s32.totalorder %s20, 0
      %p218 = por %p216, %p217
      %p219 = scmp.ne.s32.totalorder %s211, %s213
      %p220 = scmp.eq.s32.totalorder %s25, 1
      %p221 = por %p219, %p220
      %p222 = scmp.ne.s32.totalorder %s213, %s214
      %p223 = scmp.eq.s32.totalorder %s25, 0
      %p224 = por %p222, %p223
      %p225 = scmp.ne.s32.totalorder %s213, %s214
      %p226 = scmp.eq.s32.totalorder %s26, 1
      %p227 = por %p225, %p226
      %p229 = scmp.ne.s32.totalorder %s214, %s228
      %p230 = scmp.eq.s32.totalorder %s26, 0
      %p231 = por %p229, %p230
      %s233 = sadd.s32 %s232, 1
      %p236 = scmp.eq.s32.totalorder %s20, 1
      %p237 = scmp.ne.s32.totalorder %s232, %s234
      %p238 = scmp.eq.s32.totalorder %s20, 0
      %p239 = por %p237, %p238
      %p240 = scmp.ne.s32.totalorder %s232, %s234
      %p241 = scmp.eq.s32.totalorder %s25, 1
      %p242 = por %p240, %p241
      %p243 = scmp.ne.s32.totalorder %s234, %s235
      %p244 = scmp.eq.s32.totalorder %s25, 0
      %p245 = por %p243, %p244
      %p246 = scmp.ne.s32.totalorder %s234, %s235
      %p247 = scmp.eq.s32.totalorder %s26, 1
      %p248 = por %p246, %p247
      %p250 = scmp.ne.s32.totalorder %s235, %s249
      %p251 = scmp.eq.s32.totalorder %s26, 0
      %p252 = por %p250, %p251
      %s254 = sadd.s32 %s253, 1
      %p257 = scmp.eq.s32.totalorder %s20, 1
      %p258 = scmp.ne.s32.totalorder %s253, %s255
      %p259 = scmp.eq.s32.totalorder %s20, 0
      %p260 = por %p258, %p259
      %p261 = scmp.ne.s32.totalorder %s253, %s255
      %p262 = scmp.eq.s32.totalorder %s25, 1
      %p263 = por %p261, %p262
      %p264 = scmp.ne.s32.totalorder %s255, %s256
      %p265 = scmp.eq.s32.totalorder %s25, 0
      %p266 = por %p264, %p265
      %p267 = scmp.ne.s32.totalorder %s255, %s256
      %p268 = scmp.eq.s32.totalorder %s26, 1
      %p269 = por %p267, %p268
      %p271 = scmp.ne.s32.totalorder %s256, %s270
      %p272 = scmp.eq.s32.totalorder %s26, 0
      %p273 = por %p271, %p272
      %s274 = ssub.s32 %s20, %s27
      %p275 = scmp.eq.s32.totalorder %s274, 0
      %s277 = sadd.s32 %s276, 1
      %s278 = scalar_select %p275, %s276, %s277
      %p281 = pneg %p275
      %p282 = scmp.eq.s32.totalorder %s20, 1
      %p283 = por %p281, %p282
      %p284 = scmp.ne.s32.totalorder %s276, %s279
      %p285 = scmp.eq.s32.totalorder %s20, 0
      %p286 = por %p284, %p285
      %p287 = scmp.ne.s32.totalorder %s276, %s279
      %p288 = scmp.eq.s32.totalorder %s25, 1
      %p289 = por %p287, %p288
      %p290 = scmp.ne.s32.totalorder %s279, %s280
      %p291 = scmp.eq.s32.totalorder %s25, 0
      %p292 = por %p290, %p291
      %p293 = scmp.ne.s32.totalorder %s279, %s280
      %p294 = scmp.eq.s32.totalorder %s26, 1
      %p295 = por %p293, %p294
      %p297 = scmp.ne.s32.totalorder %s280, %s296
      %p298 = scmp.eq.s32.totalorder %s26, 0
      %p299 = por %p297, %p298
      %p300 = scmp.le.s32.totalorder 1, %s20
      %p301 = scmp.lt.s32.totalorder %s20, 3
      %p302 = pnand %p300, %p301
      %p303 = pneg %p302
      // Predicated region
      $region9: #{tpu_custom_call.1} parent=5 // pred_check
        _
      $region10: #{tpu_custom_call.1} parent=5 // pred_check_branch
        %305 = sbr.rel (%p302) target = $region12
      $region11: #{tpu_custom_call.1} parent=5 // pred_region
        %s306 = ssub.s32 %s20, 1
        // Predicated region
        $region13: #{tpu_custom_call.1} parent=11 // pred_check
          %p307 = pneg %p119
        $region14: #{tpu_custom_call.1} parent=11 // pred_check_branch
          %309 = sbr.rel (%p307) target = $region16
        $region15: #{tpu_custom_call.1} parent=11 // pred_region
          _
        $region16: #{tpu_custom_call.1} parent=11 // pred_fallthru
          _
        // Predicated region
        $region17: #{tpu_custom_call.1} parent=11 // pred_check
          %p310 = pneg %p140
        $region18: #{tpu_custom_call.1} parent=11 // pred_check_branch
          %312 = sbr.rel (%p310) target = $region20
        $region19: #{tpu_custom_call.1} parent=11 // pred_region
          _
        $region20: #{tpu_custom_call.1} parent=11 // pred_fallthru
          _
        // Predicated region
        $region21: #{tpu_custom_call.1} parent=11 // pred_check
          %p313 = pneg %p161
        $region22: #{tpu_custom_call.1} parent=11 // pred_check_branch
          %315 = sbr.rel (%p313) target = $region24
        $region23: #{tpu_custom_call.1} parent=11 // pred_region
          _
        $region24: #{tpu_custom_call.1} parent=11 // pred_fallthru
          _
        // Predicated region
        $region25: #{tpu_custom_call.1} parent=11 // pred_check
          %p316 = pneg %p182
        $region26: #{tpu_custom_call.1} parent=11 // pred_check_branch
          %318 = sbr.rel (%p316) target = $region28
        $region27: #{tpu_custom_call.1} parent=11 // pred_region
          _
        $region28: #{tpu_custom_call.1} parent=11 // pred_fallthru
          _
        // Predicated region
        $region29: #{tpu_custom_call.1} parent=11 // pred_check
          %p319 = pneg %p203
        $region30: #{tpu_custom_call.1} parent=11 // pred_check_branch
          %321 = sbr.rel (%p319) target = $region32
        $region31: #{tpu_custom_call.1} parent=11 // pred_region
          _
        $region32: #{tpu_custom_call.1} parent=11 // pred_fallthru
          _
        // Predicated region
        $region33: #{tpu_custom_call.1} parent=11 // pred_check
          %p322 = pneg %p224
        $region34: #{tpu_custom_call.1} parent=11 // pred_check_branch
          %324 = sbr.rel (%p322) target = $region36
        $region35: #{tpu_custom_call.1} parent=11 // pred_region
          _
        $region36: #{tpu_custom_call.1} parent=11 // pred_fallthru
          _
        // Predicated region
        $region37: #{tpu_custom_call.1} parent=11 // pred_check
          %p325 = pneg %p245
        $region38: #{tpu_custom_call.1} parent=11 // pred_check_branch
          %327 = sbr.rel (%p325) target = $region40
        $region39: #{tpu_custom_call.1} parent=11 // pred_region
          _
        $region40: #{tpu_custom_call.1} parent=11 // pred_fallthru
          _
        // Predicated region
        $region41: #{tpu_custom_call.1} parent=11 // pred_check
          %p328 = pneg %p266
        $region42: #{tpu_custom_call.1} parent=11 // pred_check_branch
          %330 = sbr.rel (%p328) target = $region44
        $region43: #{tpu_custom_call.1} parent=11 // pred_region
          _
        $region44: #{tpu_custom_call.1} parent=11 // pred_fallthru
          _
      $region12: #{tpu_custom_call.1} parent=5 // pred_fallthru
        _
      %p331 = scmp.lt.s32.totalorder %s20, 2
      // Predicated region
      $region45: #{tpu_custom_call.1} parent=5 // pred_check
        %p332 = pneg %p331
      $region46: #{tpu_custom_call.1} parent=5 // pred_check_branch
        %334 = sbr.rel (%p332) target = $region48
      $region47: #{tpu_custom_call.1} parent=5 // pred_region
        // Predicated region
        $region49: #{tpu_custom_call.1} parent=47 // pred_check
          %p335 = pneg %p40
        $region50: #{tpu_custom_call.1} parent=47 // pred_check_branch
          %337 = sbr.rel (%p335) target = $region52
        $region51: #{tpu_custom_call.1} parent=47 // pred_region
          %p338 = scmp.lt.s32.totalorder %s20, 1
          %s339 = scalar_select %p338, %s20, 1
          %s340 = smul.addr %s339, 4
          %s341 = scalar_lea.vmem %s0, %s340
        $region52: #{tpu_custom_call.1} parent=47 // pred_fallthru
          _
        // Predicated region
        $region53: #{tpu_custom_call.1} parent=47 // pred_check
          %p342 = pneg %p66
        $region54: #{tpu_custom_call.1} parent=47 // pred_check_branch
          %344 = sbr.rel (%p342) target = $region56
        $region55: #{tpu_custom_call.1} parent=47 // pred_region
          %p345 = scmp.lt.s32.totalorder %s20, 1
          %s346 = scalar_select %p345, %s20, 1
          %s347 = smul.addr %s346, 4
          %s348 = scalar_lea.vmem %s1, %s347
        $region56: #{tpu_custom_call.1} parent=47 // pred_fallthru
          _
        // Predicated region
        $region57: #{tpu_custom_call.1} parent=47 // pred_check
          %p349 = pneg %p92
        $region58: #{tpu_custom_call.1} parent=47 // pred_check_branch
          %351 = sbr.rel (%p349) target = $region60
        $region59: #{tpu_custom_call.1} parent=47 // pred_region
          %p352 = scmp.lt.s32.totalorder %s20, 1
          %s353 = scalar_select %p352, %s20, 1
          %s354 = smul.addr %s353, 4
          %s355 = scalar_lea.vmem %s2, %s354
        $region60: #{tpu_custom_call.1} parent=47 // pred_fallthru
          _
      $region48: #{tpu_custom_call.1} parent=5 // pred_fallthru
        _
      %p356 = scmp.le.s32.totalorder 1, %s20
      %p357 = scmp.lt.s32.totalorder %s20, 3
      %p358 = pnand %p356, %p357
      %p359 = pneg %p358
      // Predicated region
      $region61: #{tpu_custom_call.1} parent=5 // pred_check
        _
      $region62: #{tpu_custom_call.1} parent=5 // pred_check_branch
        %361 = sbr.rel (%p358) target = $region64
      $region63: #{tpu_custom_call.1} parent=5 // pred_region
        %s362 = ssub.s32 %s20, 1
        %p363 = scmp.lt.s32.totalorder %s25, 1
        %s364 = scalar_select %p363, %s25, 1
        %s365 = smul.addr %s364, 4
        %s366 = scalar_lea.vmem %s0, %s365
        %p367 = pneg %p46
        %p368 = pneg %p43
        %p369 = scmp.lt.s32.totalorder %s25, 1
        %s370 = scalar_select %p369, %s25, 1
        %s371 = smul.addr %s370, 4
        %s372 = scalar_lea.vmem %s1, %s371
        %p373 = pneg %p72
        %p374 = pneg %p69
        %p375 = scmp.lt.s32.totalorder %s25, 1
        %s376 = scalar_select %p375, %s25, 1
        %s377 = smul.addr %s376, 4
        %s378 = scalar_lea.vmem %s2, %s377
        %p379 = pneg %p98
        %p380 = pneg %p95
        %p381 = pneg %p119
        %p382 = pneg %p116
        %p383 = pneg %p140
        %p384 = pneg %p137
        %p385 = pneg %p161
        %p386 = pneg %p158
        %p387 = pneg %p182
        %p388 = pneg %p179
        %p389 = pneg %p203
        %p390 = pneg %p200
        %p391 = pneg %p224
        %p392 = pneg %p221
        %p393 = pneg %p245
        %p394 = pneg %p242
        %p395 = pneg %p266
        %p396 = pneg %p263
        %p397 = pneg %p292
        %p398 = pneg %p289
        %s399 = sand.u32 %s279, 1
        %s400 = scalar_lea.sflag [#allocation3], %s399
        %s401 = sand.u32 %s279, 1
        %s402 = smul.addr %s401, 8
        %s403 = scalar_lea.vmem [#allocation2], %s402
        %p404 = scmp.lt.s32.totalorder %s25, 1
        %s405 = scalar_select %p404, %s25, 1
        %s406 = smul.addr %s405, 4
        %s407 = scalar_lea.vmem %s0, %s406
        %p408 = scmp.lt.s32.totalorder %s25, 1
        %s409 = scalar_select %p408, %s25, 1
        %s410 = smul.addr %s409, 4
        %s411 = scalar_lea.vmem %s1, %s410
        %p412 = scmp.lt.s32.totalorder %s25, 1
        %s413 = scalar_select %p412, %s25, 1
        %s414 = smul.addr %s413, 4
        %s415 = scalar_lea.vmem %s2, %s414
        %v417 = vld [vmem:[%s407] sm:$0xf]
        %v418 = vld [vmem:[%s411] sm:$0xf]
        %v419 = vld [vmem:[%s415] sm:$0xf]
        %v420 = vld [vmem:[%s3] sm:$0xf]
        %v421 = vld [vmem:[%s3 + $0x4] sm:$0xf]
        %v422 = vld [vmem:[%s3 + $0x8] sm:$0xf]
        %v423 = vld [vmem:[%s3 + $0xc] sm:$0xf]
        %v424 = vld [vmem:[%s7] sm:$0x1]
        %v426 = vlaneseq
        %v427 = vshrl.u32 %v426, 7
        %v428 = vsub.s32 0, %v427
        %v429 = vrot.slane %v424, %v428
        %v435 = vunpack.c.l.b16 %v420
        %v436 = vunpack.c.l.b16 %v421
        %v437 = vunpack.c.l.b16 %v422
        %v438 = vunpack.c.l.b16 %v423
        %v439 = vpack.c.b16 %v436, %v435
        %v440 = vpack.c.b16 %v438, %v437
        %vm443 = vcmask 261120
        %v445 = vsel %vm443, %v417, 0
        %447 = vmatprep.subr.bf16.mxu0 0
        %448 = vmatpush1.bf16.msra.mxu0 %v439
        %449 = vmatprep.subr.bf16.mxu0 0
        %450 = vmatpush1.bf16.msra.mxu0 %v440
        %451 = vmatprep.subr.bf16.mxu0 0
        %452 = vmatpush1.bf16.msra.mxu0 0
        %453 = vmatprep.subr.bf16.mxu0 0
        %454 = vmatpush1.bf16.msra.mxu0 0
        %455 = vmatprep.subr.bf16.mxu0 0
        %456 = vmatpush1.bf16.msra.mxu0 0
        %457 = vmatprep.subr.bf16.mxu0 0
        %458 = vmatpush1.bf16.msra.mxu0 0
        %459 = vmatprep.subr.bf16.mxu0 0
        %460 = vmatpush1.bf16.msra.mxu0 0
        %461 = vmatprep.subr.bf16.mxu0 0
        %462 = vmatpush1.bf16.msra.mxu0 0
        %463 = vmatprep.subr.bf16.mxu0 0
        %464 = vmatpush1.bf16.msra.mxu0 0
        %465 = vmatprep.subr.bf16.mxu0 0
        %466 = vmatpush1.bf16.msra.mxu0 0
        %467 = vmatprep.subr.bf16.mxu0 0
        %468 = vmatpush1.bf16.msra.mxu0 0
        %469 = vmatprep.subr.bf16.mxu0 0
        %470 = vmatpush1.bf16.msra.mxu0 0
        %471 = vmatprep.subr.bf16.mxu0 0
        %472 = vmatpush1.bf16.msra.mxu0 0
        %473 = vmatprep.subr.bf16.mxu0 0
        %474 = vmatpush1.bf16.msra.mxu0 0
        %475 = vmatprep.subr.bf16.mxu0 0
        %476 = vmatpush1.bf16.msra.mxu0 0
        %477 = vmatprep.subr.bf16.mxu0 0
        %478 = vmatpush1.bf16.msra.mxu0 0
        %479 = vmatprep.mubr.bf16.mxu0 0
        %480 = vmatmul.mubr.bf16.gmra.mrb[0].mxu0 %v445
        %v481 = vpop.f32.mrb[0].mxu0
        %v482 = vadd.f32 %v429, %v481
        %v483 = vpop.f32.mrb[0].mxu0
        %v484 = vpop.f32.mrb[0].mxu0
        %v485 = vpop.f32.mrb[0].mxu0
        %486 = vdwg.mxu0
        %s487 = scalar_lea.vmem %s3, 16
        %v488 = vld [vmem:[%s487] sm:$0xf]
        %v489 = vld [vmem:[%s487 + $0x4] sm:$0xf]
        %v490 = vld [vmem:[%s487 + $0x8] sm:$0xf]
        %v491 = vld [vmem:[%s487 + $0xc] sm:$0xf]
        %s492 = scalar_lea.vmem %s7, 1
        %v493 = vld [vmem:[%s492] sm:$0x1]
        %v495 = vlaneseq
        %v496 = vshrl.u32 %v495, 7
        %v497 = vsub.s32 0, %v496
        %v498 = vrot.slane %v493, %v497
        %v504 = vunpack.c.l.b16 %v488
        %v505 = vunpack.c.l.b16 %v489
        %v506 = vunpack.c.l.b16 %v490
        %v507 = vunpack.c.l.b16 %v491
        %v508 = vpack.c.b16 %v505, %v504
        %v509 = vpack.c.b16 %v507, %v506
        %512 = vmatprep.subr.bf16.mxu0 0
        %513 = vmatpush1.bf16.msra.mxu0 %v508
        %514 = vmatprep.subr.bf16.mxu0 0
        %515 = vmatpush1.bf16.msra.mxu0 %v509
        %516 = vmatprep.subr.bf16.mxu0 0
        %517 = vmatpush1.bf16.msra.mxu0 0
        %518 = vmatprep.subr.bf16.mxu0 0
        %519 = vmatpush1.bf16.msra.mxu0 0
        %520 = vmatprep.subr.bf16.mxu0 0
        %521 = vmatpush1.bf16.msra.mxu0 0
        %522 = vmatprep.subr.bf16.mxu0 0
        %523 = vmatpush1.bf16.msra.mxu0 0
        %524 = vmatprep.subr.bf16.mxu0 0
        %525 = vmatpush1.bf16.msra.mxu0 0
        %526 = vmatprep.subr.bf16.mxu0 0
        %527 = vmatpush1.bf16.msra.mxu0 0
        %528 = vmatprep.subr.bf16.mxu0 0
        %529 = vmatpush1.bf16.msra.mxu0 0
        %530 = vmatprep.subr.bf16.mxu0 0
        %531 = vmatpush1.bf16.msra.mxu0 0
        %532 = vmatprep.subr.bf16.mxu0 0
        %533 = vmatpush1.bf16.msra.mxu0 0
        %534 = vmatprep.subr.bf16.mxu0 0
        %535 = vmatpush1.bf16.msra.mxu0 0
        %536 = vmatprep.subr.bf16.mxu0 0
        %537 = vmatpush1.bf16.msra.mxu0 0
        %538 = vmatprep.subr.bf16.mxu0 0
        %539 = vmatpush1.bf16.msra.mxu0 0
        %540 = vmatprep.subr.bf16.mxu0 0
        %541 = vmatpush1.bf16.msra.mxu0 0
        %542 = vmatprep.subr.bf16.mxu0 0
        %543 = vmatpush1.bf16.msra.mxu0 0
        %544 = vmatprep.mubr.bf16.mxu0 0
        %545 = vmatmul.mubr.bf16.gmra.mrb[0].mxu0 %v445
        %v546 = vpop.f32.mrb[0].mxu0
        %v547 = vadd.f32 %v498, %v546
        %v548 = vpop.f32.mrb[0].mxu0
        %v549 = vpop.f32.mrb[0].mxu0
        %v550 = vpop.f32.mrb[0].mxu0
        %551 = vdwg.mxu0
        %s552 = scalar_lea.vmem %s3, 32
        %v553 = vld [vmem:[%s552] sm:$0xf]
        %v554 = vld [vmem:[%s552 + $0x4] sm:$0xf]
        %v555 = vld [vmem:[%s552 + $0x8] sm:$0xf]
        %v556 = vld [vmem:[%s552 + $0xc] sm:$0xf]
        %s557 = scalar_lea.vmem %s7, 2
        %v558 = vld [vmem:[%s557] sm:$0x1]
        %v560 = vlaneseq
        %v561 = vshrl.u32 %v560, 7
        %v562 = vsub.s32 0, %v561
        %v563 = vrot.slane %v558, %v562
        %v569 = vunpack.c.l.b16 %v553
        %v570 = vunpack.c.l.b16 %v554
        %v571 = vunpack.c.l.b16 %v555
        %v572 = vunpack.c.l.b16 %v556
        %v573 = vpack.c.b16 %v570, %v569
        %v574 = vpack.c.b16 %v572, %v571
        %577 = vmatprep.subr.bf16.mxu0 0
        %578 = vmatpush1.bf16.msra.mxu0 %v573
        %579 = vmatprep.subr.bf16.mxu0 0
        %580 = vmatpush1.bf16.msra.mxu0 %v574
        %581 = vmatprep.subr.bf16.mxu0 0
        %582 = vmatpush1.bf16.msra.mxu0 0
        %583 = vmatprep.subr.bf16.mxu0 0
        %584 = vmatpush1.bf16.msra.mxu0 0
        %585 = vmatprep.subr.bf16.mxu0 0
        %586 = vmatpush1.bf16.msra.mxu0 0
        %587 = vmatprep.subr.bf16.mxu0 0
        %588 = vmatpush1.bf16.msra.mxu0 0
        %589 = vmatprep.subr.bf16.mxu0 0
        %590 = vmatpush1.bf16.msra.mxu0 0
        %591 = vmatprep.subr.bf16.mxu0 0
        %592 = vmatpush1.bf16.msra.mxu0 0
        %593 = vmatprep.subr.bf16.mxu0 0
        %594 = vmatpush1.bf16.msra.mxu0 0
        %595 = vmatprep.subr.bf16.mxu0 0
        %596 = vmatpush1.bf16.msra.mxu0 0
        %597 = vmatprep.subr.bf16.mxu0 0
        %598 = vmatpush1.bf16.msra.mxu0 0
        %599 = vmatprep.subr.bf16.mxu0 0
        %600 = vmatpush1.bf16.msra.mxu0 0
        %601 = vmatprep.subr.bf16.mxu0 0
        %602 = vmatpush1.bf16.msra.mxu0 0
        %603 = vmatprep.subr.bf16.mxu0 0
        %604 = vmatpush1.bf16.msra.mxu0 0
        %605 = vmatprep.subr.bf16.mxu0 0
        %606 = vmatpush1.bf16.msra.mxu0 0
        %607 = vmatprep.subr.bf16.mxu0 0
        %608 = vmatpush1.bf16.msra.mxu0 0
        %609 = vmatprep.mubr.bf16.mxu0 0
        %610 = vmatmul.mubr.bf16.gmra.mrb[0].mxu0 %v445
        %v611 = vpop.f32.mrb[0].mxu0
        %v612 = vadd.f32 %v563, %v611
        %v613 = vpop.f32.mrb[0].mxu0
        %v614 = vpop.f32.mrb[0].mxu0
        %v615 = vpop.f32.mrb[0].mxu0
        %616 = vdwg.mxu0
        %s617 = scalar_lea.vmem %s3, 48
        %v618 = vld [vmem:[%s617] sm:$0xf]
        %v619 = vld [vmem:[%s617 + $0x4] sm:$0xf]
        %v620 = vld [vmem:[%s617 + $0x8] sm:$0xf]
        %v621 = vld [vmem:[%s617 + $0xc] sm:$0xf]
        %s622 = scalar_lea.vmem %s7, 3
        %v623 = vld [vmem:[%s622] sm:$0x1]
        %v625 = vlaneseq
        %v626 = vshrl.u32 %v625, 7
        %v627 = vsub.s32 0, %v626
        %v628 = vrot.slane %v623, %v627
        %v634 = vunpack.c.l.b16 %v618
        %v635 = vunpack.c.l.b16 %v619
        %v636 = vunpack.c.l.b16 %v620
        %v637 = vunpack.c.l.b16 %v621
        %v638 = vpack.c.b16 %v635, %v634
        %v639 = vpack.c.b16 %v637, %v636
        %642 = vmatprep.subr.bf16.mxu0 0
        %643 = vmatpush1.bf16.msra.mxu0 %v638
        %644 = vmatprep.subr.bf16.mxu0 0
        %645 = vmatpush1.bf16.msra.mxu0 %v639
        %646 = vmatprep.subr.bf16.mxu0 0
        %647 = vmatpush1.bf16.msra.mxu0 0
        %648 = vmatprep.subr.bf16.mxu0 0
        %649 = vmatpush1.bf16.msra.mxu0 0
        %650 = vmatprep.subr.bf16.mxu0 0
        %651 = vmatpush1.bf16.msra.mxu0 0
        %652 = vmatprep.subr.bf16.mxu0 0
        %653 = vmatpush1.bf16.msra.mxu0 0
        %654 = vmatprep.subr.bf16.mxu0 0
        %655 = vmatpush1.bf16.msra.mxu0 0
        %656 = vmatprep.subr.bf16.mxu0 0
        %657 = vmatpush1.bf16.msra.mxu0 0
        %658 = vmatprep.subr.bf16.mxu0 0
        %659 = vmatpush1.bf16.msra.mxu0 0
        %660 = vmatprep.subr.bf16.mxu0 0
        %661 = vmatpush1.bf16.msra.mxu0 0
        %662 = vmatprep.subr.bf16.mxu0 0
        %663 = vmatpush1.bf16.msra.mxu0 0
        %664 = vmatprep.subr.bf16.mxu0 0
        %665 = vmatpush1.bf16.msra.mxu0 0
        %666 = vmatprep.subr.bf16.mxu0 0
        %667 = vmatpush1.bf16.msra.mxu0 0
        %668 = vmatprep.subr.bf16.mxu0 0
        %669 = vmatpush1.bf16.msra.mxu0 0
        %670 = vmatprep.subr.bf16.mxu0 0
        %671 = vmatpush1.bf16.msra.mxu0 0
        %672 = vmatprep.subr.bf16.mxu0 0
        %673 = vmatpush1.bf16.msra.mxu0 0
        %674 = vmatprep.mubr.bf16.mxu0 0
        %675 = vmatmul.mubr.bf16.gmra.mrb[0].mxu0 %v445
        %v676 = vpop.f32.mrb[0].mxu0
        %v677 = vadd.f32 %v628, %v676
        %v678 = vpop.f32.mrb[0].mxu0
        %v679 = vpop.f32.mrb[0].mxu0
        %v680 = vpop.f32.mrb[0].mxu0
        %681 = vdwg.mxu0
        %v682 = vmul.f32 %v482, 0.35355338
        %v683 = vmul.f32 %v547, 0.35355338
        %v684 = vmul.f32 %v612, 0.35355338
        %v685 = vmul.f32 %v677, 0.35355338
        %v686 = vpack.c.bf16 %v682, %v682
        %v687 = vpack.c.bf16 %v683, %v683
        %v688 = vpack.c.bf16 %v684, %v684
        %v689 = vpack.c.bf16 %v685, %v685
        %v690 = vld [vmem:[%s4] sm:$0xf]
        %v691 = vld [vmem:[%s4 + $0x4] sm:$0xf]
        %v692 = vld [vmem:[%s4 + $0x8] sm:$0xf]
        %v693 = vld [vmem:[%s4 + $0xc] sm:$0xf]
        %v694 = vld [vmem:[%s8] sm:$0x1]
        %v696 = vlaneseq
        %v697 = vshrl.u32 %v696, 7
        %v698 = vsub.s32 0, %v697
        %v699 = vrot.slane %v694, %v698
        %v705 = vunpack.c.l.b16 %v690
        %v706 = vunpack.c.l.b16 %v691
        %v707 = vunpack.c.l.b16 %v692
        %v708 = vunpack.c.l.b16 %v693
        %v709 = vpack.c.b16 %v706, %v705
        %v710 = vpack.c.b16 %v708, %v707
        %v714 = vsel %vm443, %v418, 0
        %716 = vmatprep.subr.bf16.mxu0 0
        %717 = vmatpush1.bf16.msra.mxu0 %v709
        %718 = vmatprep.subr.bf16.mxu0 0
        %719 = vmatpush1.bf16.msra.mxu0 %v710
        %720 = vmatprep.subr.bf16.mxu0 0
        %721 = vmatpush1.bf16.msra.mxu0 0
        %722 = vmatprep.subr.bf16.mxu0 0
        %723 = vmatpush1.bf16.msra.mxu0 0
        %724 = vmatprep.subr.bf16.mxu0 0
        %725 = vmatpush1.bf16.msra.mxu0 0
        %726 = vmatprep.subr.bf16.mxu0 0
        %727 = vmatpush1.bf16.msra.mxu0 0
        %728 = vmatprep.subr.bf16.mxu0 0
        %729 = vmatpush1.bf16.msra.mxu0 0
        %730 = vmatprep.subr.bf16.mxu0 0
        %731 = vmatpush1.bf16.msra.mxu0 0
        %732 = vmatprep.subr.bf16.mxu0 0
        %733 = vmatpush1.bf16.msra.mxu0 0
        %734 = vmatprep.subr.bf16.mxu0 0
        %735 = vmatpush1.bf16.msra.mxu0 0
        %736 = vmatprep.subr.bf16.mxu0 0
        %737 = vmatpush1.bf16.msra.mxu0 0
        %738 = vmatprep.subr.bf16.mxu0 0
        %739 = vmatpush1.bf16.msra.mxu0 0
        %740 = vmatprep.subr.bf16.mxu0 0
        %741 = vmatpush1.bf16.msra.mxu0 0
        %742 = vmatprep.subr.bf16.mxu0 0
        %743 = vmatpush1.bf16.msra.mxu0 0
        %744 = vmatprep.subr.bf16.mxu0 0
        %745 = vmatpush1.bf16.msra.mxu0 0
        %746 = vmatprep.subr.bf16.mxu0 0
        %747 = vmatpush1.bf16.msra.mxu0 0
        %748 = vmatprep.mubr.bf16.mxu0 0
        %749 = vmatmul.mubr.bf16.gmra.mrb[0].mxu0 %v714
        %v750 = vpop.f32.mrb[0].mxu0
        %v751 = vadd.f32 %v699, %v750
        %v752 = vpop.f32.mrb[0].mxu0
        %v753 = vpop.f32.mrb[0].mxu0
        %v754 = vpop.f32.mrb[0].mxu0
        %755 = vdwg.mxu0
        %s756 = scalar_lea.vmem %s4, 16
        %v757 = vld [vmem:[%s756] sm:$0xf]
        %v758 = vld [vmem:[%s756 + $0x4] sm:$0xf]
        %v759 = vld [vmem:[%s756 + $0x8] sm:$0xf]
        %v760 = vld [vmem:[%s756 + $0xc] sm:$0xf]
        %s761 = scalar_lea.vmem %s8, 1
        %v762 = vld [vmem:[%s761] sm:$0x1]
        %v764 = vlaneseq
        %v765 = vshrl.u32 %v764, 7
        %v766 = vsub.s32 0, %v765
        %v767 = vrot.slane %v762, %v766
        %v773 = vunpack.c.l.b16 %v757
        %v774 = vunpack.c.l.b16 %v758
        %v775 = vunpack.c.l.b16 %v759
        %v776 = vunpack.c.l.b16 %v760
        %v777 = vpack.c.b16 %v774, %v773
        %v778 = vpack.c.b16 %v776, %v775
        %781 = vmatprep.subr.bf16.mxu0 0
        %782 = vmatpush1.bf16.msra.mxu0 %v777
        %783 = vmatprep.subr.bf16.mxu0 0
        %784 = vmatpush1.bf16.msra.mxu0 %v778
        %785 = vmatprep.subr.bf16.mxu0 0
        %786 = vmatpush1.bf16.msra.mxu0 0
        %787 = vmatprep.subr.bf16.mxu0 0
        %788 = vmatpush1.bf16.msra.mxu0 0
        %789 = vmatprep.subr.bf16.mxu0 0
        %790 = vmatpush1.bf16.msra.mxu0 0
        %791 = vmatprep.subr.bf16.mxu0 0
        %792 = vmatpush1.bf16.msra.mxu0 0
        %793 = vmatprep.subr.bf16.mxu0 0
        %794 = vmatpush1.bf16.msra.mxu0 0
        %795 = vmatprep.subr.bf16.mxu0 0
        %796 = vmatpush1.bf16.msra.mxu0 0
        %797 = vmatprep.subr.bf16.mxu0 0
        %798 = vmatpush1.bf16.msra.mxu0 0
        %799 = vmatprep.subr.bf16.mxu0 0
        %800 = vmatpush1.bf16.msra.mxu0 0
        %801 = vmatprep.subr.bf16.mxu0 0
        %802 = vmatpush1.bf16.msra.mxu0 0
        %803 = vmatprep.subr.bf16.mxu0 0
        %804 = vmatpush1.bf16.msra.mxu0 0
        %805 = vmatprep.subr.bf16.mxu0 0
        %806 = vmatpush1.bf16.msra.mxu0 0
        %807 = vmatprep.subr.bf16.mxu0 0
        %808 = vmatpush1.bf16.msra.mxu0 0
        %809 = vmatprep.subr.bf16.mxu0 0
        %810 = vmatpush1.bf16.msra.mxu0 0
        %811 = vmatprep.subr.bf16.mxu0 0
        %812 = vmatpush1.bf16.msra.mxu0 0
        %813 = vmatprep.mubr.bf16.mxu0 0
        %814 = vmatmul.mubr.bf16.gmra.mrb[0].mxu0 %v714
        %v815 = vpop.f32.mrb[0].mxu0
        %v816 = vadd.f32 %v767, %v815
        %v817 = vpop.f32.mrb[0].mxu0
        %v818 = vpop.f32.mrb[0].mxu0
        %v819 = vpop.f32.mrb[0].mxu0
        %820 = vdwg.mxu0
        %s821 = scalar_lea.vmem %s4, 32
        %v822 = vld [vmem:[%s821] sm:$0xf]
        %v823 = vld [vmem:[%s821 + $0x4] sm:$0xf]
        %v824 = vld [vmem:[%s821 + $0x8] sm:$0xf]
        %v825 = vld [vmem:[%s821 + $0xc] sm:$0xf]
        %s826 = scalar_lea.vmem %s8, 2
        %v827 = vld [vmem:[%s826] sm:$0x1]
        %v829 = vlaneseq
        %v830 = vshrl.u32 %v829, 7
        %v831 = vsub.s32 0, %v830
        %v832 = vrot.slane %v827, %v831
        %v838 = vunpack.c.l.b16 %v822
        %v839 = vunpack.c.l.b16 %v823
        %v840 = vunpack.c.l.b16 %v824
        %v841 = vunpack.c.l.b16 %v825
        %v842 = vpack.c.b16 %v839, %v838
        %v843 = vpack.c.b16 %v841, %v840
        %846 = vmatprep.subr.bf16.mxu0 0
        %847 = vmatpush1.bf16.msra.mxu0 %v842
        %848 = vmatprep.subr.bf16.mxu0 0
        %849 = vmatpush1.bf16.msra.mxu0 %v843
        %850 = vmatprep.subr.bf16.mxu0 0
        %851 = vmatpush1.bf16.msra.mxu0 0
        %852 = vmatprep.subr.bf16.mxu0 0
        %853 = vmatpush1.bf16.msra.mxu0 0
        %854 = vmatprep.subr.bf16.mxu0 0
        %855 = vmatpush1.bf16.msra.mxu0 0
        %856 = vmatprep.subr.bf16.mxu0 0
        %857 = vmatpush1.bf16.msra.mxu0 0
        %858 = vmatprep.subr.bf16.mxu0 0
        %859 = vmatpush1.bf16.msra.mxu0 0
        %860 = vmatprep.subr.bf16.mxu0 0
        %861 = vmatpush1.bf16.msra.mxu0 0
        %862 = vmatprep.subr.bf16.mxu0 0
        %863 = vmatpush1.bf16.msra.mxu0 0
        %864 = vmatprep.subr.bf16.mxu0 0
        %865 = vmatpush1.bf16.msra.mxu0 0
        %866 = vmatprep.subr.bf16.mxu0 0
        %867 = vmatpush1.bf16.msra.mxu0 0
        %868 = vmatprep.subr.bf16.mxu0 0
        %869 = vmatpush1.bf16.msra.mxu0 0
        %870 = vmatprep.subr.bf16.mxu0 0
        %871 = vmatpush1.bf16.msra.mxu0 0
        %872 = vmatprep.subr.bf16.mxu0 0
        %873 = vmatpush1.bf16.msra.mxu0 0
        %874 = vmatprep.subr.bf16.mxu0 0
        %875 = vmatpush1.bf16.msra.mxu0 0
        %876 = vmatprep.subr.bf16.mxu0 0
        %877 = vmatpush1.bf16.msra.mxu0 0
        %878 = vmatprep.mubr.bf16.mxu0 0
        %879 = vmatmul.mubr.bf16.gmra.mrb[0].mxu0 %v714
        %v880 = vpop.f32.mrb[0].mxu0
        %v881 = vadd.f32 %v832, %v880
        %v882 = vpop.f32.mrb[0].mxu0
        %v883 = vpop.f32.mrb[0].mxu0
        %v884 = vpop.f32.mrb[0].mxu0
        %885 = vdwg.mxu0
        %s886 = scalar_lea.vmem %s4, 48
        %v887 = vld [vmem:[%s886] sm:$0xf]
        %v888 = vld [vmem:[%s886 + $0x4] sm:$0xf]
        %v889 = vld [vmem:[%s886 + $0x8] sm:$0xf]
        %v890 = vld [vmem:[%s886 + $0xc] sm:$0xf]
        %s891 = scalar_lea.vmem %s8, 3
        %v892 = vld [vmem:[%s891] sm:$0x1]
        %v894 = vlaneseq
        %v895 = vshrl.u32 %v894, 7
        %v896 = vsub.s32 0, %v895
        %v897 = vrot.slane %v892, %v896
        %v903 = vunpack.c.l.b16 %v887
        %v904 = vunpack.c.l.b16 %v888
        %v905 = vunpack.c.l.b16 %v889
        %v906 = vunpack.c.l.b16 %v890
        %v907 = vpack.c.b16 %v904, %v903
        %v908 = vpack.c.b16 %v906, %v905
        %911 = vmatprep.subr.bf16.mxu0 0
        %912 = vmatpush1.bf16.msra.mxu0 %v907
        %913 = vmatprep.subr.bf16.mxu0 0
        %914 = vmatpush1.bf16.msra.mxu0 %v908
        %915 = vmatprep.subr.bf16.mxu0 0
        %916 = vmatpush1.bf16.msra.mxu0 0
        %917 = vmatprep.subr.bf16.mxu0 0
        %918 = vmatpush1.bf16.msra.mxu0 0
        %919 = vmatprep.subr.bf16.mxu0 0
        %920 = vmatpush1.bf16.msra.mxu0 0
        %921 = vmatprep.subr.bf16.mxu0 0
        %922 = vmatpush1.bf16.msra.mxu0 0
        %923 = vmatprep.subr.bf16.mxu0 0
        %924 = vmatpush1.bf16.msra.mxu0 0
        %925 = vmatprep.subr.bf16.mxu0 0
        %926 = vmatpush1.bf16.msra.mxu0 0
        %927 = vmatprep.subr.bf16.mxu0 0
        %928 = vmatpush1.bf16.msra.mxu0 0
        %929 = vmatprep.subr.bf16.mxu0 0
        %930 = vmatpush1.bf16.msra.mxu0 0
        %931 = vmatprep.subr.bf16.mxu0 0
        %932 = vmatpush1.bf16.msra.mxu0 0
        %933 = vmatprep.subr.bf16.mxu0 0
        %934 = vmatpush1.bf16.msra.mxu0 0
        %935 = vmatprep.subr.bf16.mxu0 0
        %936 = vmatpush1.bf16.msra.mxu0 0
        %937 = vmatprep.subr.bf16.mxu0 0
        %938 = vmatpush1.bf16.msra.mxu0 0
        %939 = vmatprep.subr.bf16.mxu0 0
        %940 = vmatpush1.bf16.msra.mxu0 0
        %941 = vmatprep.subr.bf16.mxu0 0
        %942 = vmatpush1.bf16.msra.mxu0 0
        %943 = vmatprep.mubr.bf16.mxu0 0
        %944 = vmatmul.mubr.bf16.gmra.mrb[0].mxu0 %v714
        %v945 = vpop.f32.mrb[0].mxu0
        %v946 = vadd.f32 %v897, %v945
        %v947 = vpop.f32.mrb[0].mxu0
        %v948 = vpop.f32.mrb[0].mxu0
        %v949 = vpop.f32.mrb[0].mxu0
        %950 = vdwg.mxu0
        %v951 = vpack.c.bf16 %v751, %v751
        %v952 = vpack.c.bf16 %v816, %v816
        %v953 = vpack.c.bf16 %v881, %v881
        %v954 = vpack.c.bf16 %v946, %v946
        %v955 = vld [vmem:[%s5] sm:$0xf]
        %v956 = vld [vmem:[%s5 + $0x4] sm:$0xf]
        %v957 = vld [vmem:[%s5 + $0x8] sm:$0xf]
        %v958 = vld [vmem:[%s5 + $0xc] sm:$0xf]
        %v959 = vld [vmem:[%s9] sm:$0x1]
        %v961 = vlaneseq
        %v962 = vshrl.u32 %v961, 7
        %v963 = vsub.s32 0, %v962
        %v964 = vrot.slane %v959, %v963
        %v970 = vunpack.c.l.b16 %v955
        %v971 = vunpack.c.l.b16 %v956
        %v972 = vunpack.c.l.b16 %v957
        %v973 = vunpack.c.l.b16 %v958
        %v974 = vpack.c.b16 %v971, %v970
        %v975 = vpack.c.b16 %v973, %v972
        %v979 = vsel %vm443, %v419, 0
        %981 = vmatprep.subr.bf16.mxu0 0
        %982 = vmatpush1.bf16.msra.mxu0 %v974
        %983 = vmatprep.subr.bf16.mxu0 0
        %984 = vmatpush1.bf16.msra.mxu0 %v975
        %985 = vmatprep.subr.bf16.mxu0 0
        %986 = vmatpush1.bf16.msra.mxu0 0
        %987 = vmatprep.subr.bf16.mxu0 0
        %988 = vmatpush1.bf16.msra.mxu0 0
        %989 = vmatprep.subr.bf16.mxu0 0
        %990 = vmatpush1.bf16.msra.mxu0 0
        %991 = vmatprep.subr.bf16.mxu0 0
        %992 = vmatpush1.bf16.msra.mxu0 0
        %993 = vmatprep.subr.bf16.mxu0 0
        %994 = vmatpush1.bf16.msra.mxu0 0
        %995 = vmatprep.subr.bf16.mxu0 0
        %996 = vmatpush1.bf16.msra.mxu0 0
        %997 = vmatprep.subr.bf16.mxu0 0
        %998 = vmatpush1.bf16.msra.mxu0 0
        %999 = vmatprep.subr.bf16.mxu0 0
        %1000 = vmatpush1.bf16.msra.mxu0 0
        %1001 = vmatprep.subr.bf16.mxu0 0
        %1002 = vmatpush1.bf16.msra.mxu0 0
        %1003 = vmatprep.subr.bf16.mxu0 0
        %1004 = vmatpush1.bf16.msra.mxu0 0
        %1005 = vmatprep.subr.bf16.mxu0 0
        %1006 = vmatpush1.bf16.msra.mxu0 0
        %1007 = vmatprep.subr.bf16.mxu0 0
        %1008 = vmatpush1.bf16.msra.mxu0 0
        %1009 = vmatprep.subr.bf16.mxu0 0
        %1010 = vmatpush1.bf16.msra.mxu0 0
        %1011 = vmatprep.subr.bf16.mxu0 0
        %1012 = vmatpush1.bf16.msra.mxu0 0
        %1013 = vmatprep.mubr.bf16.mxu0 0
        %1014 = vmatmul.mubr.bf16.gmra.mrb[0].mxu0 %v979
        %v1015 = vpop.f32.mrb[0].mxu0
        %v1016 = vadd.f32 %v964, %v1015
        %v1017 = vpop.f32.mrb[0].mxu0
        %v1018 = vpop.f32.mrb[0].mxu0
        %v1019 = vpop.f32.mrb[0].mxu0
        %1020 = vdwg.mxu0
        %s1021 = scalar_lea.vmem %s5, 16
        %v1022 = vld [vmem:[%s1021] sm:$0xf]
        %v1023 = vld [vmem:[%s1021 + $0x4] sm:$0xf]
        %v1024 = vld [vmem:[%s1021 + $0x8] sm:$0xf]
        %v1025 = vld [vmem:[%s1021 + $0xc] sm:$0xf]
        %s1026 = scalar_lea.vmem %s9, 1
        %v1027 = vld [vmem:[%s1026] sm:$0x1]
        %v1029 = vlaneseq
        %v1030 = vshrl.u32 %v1029, 7
        %v1031 = vsub.s32 0, %v1030
        %v1032 = vrot.slane %v1027, %v1031
        %v1038 = vunpack.c.l.b16 %v1022
        %v1039 = vunpack.c.l.b16 %v1023
        %v1040 = vunpack.c.l.b16 %v1024
        %v1041 = vunpack.c.l.b16 %v1025
        %v1042 = vpack.c.b16 %v1039, %v1038
        %v1043 = vpack.c.b16 %v1041, %v1040
        %1046 = vmatprep.subr.bf16.mxu0 0
        %1047 = vmatpush1.bf16.msra.mxu0 %v1042
        %1048 = vmatprep.subr.bf16.mxu0 0
        %1049 = vmatpush1.bf16.msra.mxu0 %v1043
        %1050 = vmatprep.subr.bf16.mxu0 0
        %1051 = vmatpush1.bf16.msra.mxu0 0
        %1052 = vmatprep.subr.bf16.mxu0 0
        %1053 = vmatpush1.bf16.msra.mxu0 0
        %1054 = vmatprep.subr.bf16.mxu0 0
        %1055 = vmatpush1.bf16.msra.mxu0 0
        %1056 = vmatprep.subr.bf16.mxu0 0
        %1057 = vmatpush1.bf16.msra.mxu0 0
        %1058 = vmatprep.subr.bf16.mxu0 0
        %1059 = vmatpush1.bf16.msra.mxu0 0
        %1060 = vmatprep.subr.bf16.mxu0 0
        %1061 = vmatpush1.bf16.msra.mxu0 0
        %1062 = vmatprep.subr.bf16.mxu0 0
        %1063 = vmatpush1.bf16.msra.mxu0 0
        %1064 = vmatprep.subr.bf16.mxu0 0
        %1065 = vmatpush1.bf16.msra.mxu0 0
        %1066 = vmatprep.subr.bf16.mxu0 0
        %1067 = vmatpush1.bf16.msra.mxu0 0
        %1068 = vmatprep.subr.bf16.mxu0 0
        %1069 = vmatpush1.bf16.msra.mxu0 0
        %1070 = vmatprep.subr.bf16.mxu0 0
        %1071 = vmatpush1.bf16.msra.mxu0 0
        %1072 = vmatprep.subr.bf16.mxu0 0
        %1073 = vmatpush1.bf16.msra.mxu0 0
        %1074 = vmatprep.subr.bf16.mxu0 0
        %1075 = vmatpush1.bf16.msra.mxu0 0
        %1076 = vmatprep.subr.bf16.mxu0 0
        %1077 = vmatpush1.bf16.msra.mxu0 0
        %1078 = vmatprep.mubr.bf16.mxu0 0
        %1079 = vmatmul.mubr.bf16.gmra.mrb[0].mxu0 %v979
        %v1080 = vpop.f32.mrb[0].mxu0
        %v1081 = vadd.f32 %v1032, %v1080
        %v1082 = vpop.f32.mrb[0].mxu0
        %v1083 = vpop.f32.mrb[0].mxu0
        %v1084 = vpop.f32.mrb[0].mxu0
        %1085 = vdwg.mxu0
        %s1086 = scalar_lea.vmem %s5, 32
        %v1087 = vld [vmem:[%s1086] sm:$0xf]
        %v1088 = vld [vmem:[%s1086 + $0x4] sm:$0xf]
        %v1089 = vld [vmem:[%s1086 + $0x8] sm:$0xf]
        %v1090 = vld [vmem:[%s1086 + $0xc] sm:$0xf]
        %s1091 = scalar_lea.vmem %s9, 2
        %v1092 = vld [vmem:[%s1091] sm:$0x1]
        %v1094 = vlaneseq
        %v1095 = vshrl.u32 %v1094, 7
        %v1096 = vsub.s32 0, %v1095
        %v1097 = vrot.slane %v1092, %v1096
        %v1103 = vunpack.c.l.b16 %v1087
        %v1104 = vunpack.c.l.b16 %v1088
        %v1105 = vunpack.c.l.b16 %v1089
        %v1106 = vunpack.c.l.b16 %v1090
        %v1107 = vpack.c.b16 %v1104, %v1103
        %v1108 = vpack.c.b16 %v1106, %v1105
        %1111 = vmatprep.subr.bf16.mxu0 0
        %1112 = vmatpush1.bf16.msra.mxu0 %v1107
        %1113 = vmatprep.subr.bf16.mxu0 0
        %1114 = vmatpush1.bf16.msra.mxu0 %v1108
        %1115 = vmatprep.subr.bf16.mxu0 0
        %1116 = vmatpush1.bf16.msra.mxu0 0
        %1117 = vmatprep.subr.bf16.mxu0 0
        %1118 = vmatpush1.bf16.msra.mxu0 0
        %1119 = vmatprep.subr.bf16.mxu0 0
        %1120 = vmatpush1.bf16.msra.mxu0 0
        %1121 = vmatprep.subr.bf16.mxu0 0
        %1122 = vmatpush1.bf16.msra.mxu0 0
        %1123 = vmatprep.subr.bf16.mxu0 0
        %1124 = vmatpush1.bf16.msra.mxu0 0
        %1125 = vmatprep.subr.bf16.mxu0 0
        %1126 = vmatpush1.bf16.msra.mxu0 0
        %1127 = vmatprep.subr.bf16.mxu0 0
        %1128 = vmatpush1.bf16.msra.mxu0 0
        %1129 = vmatprep.subr.bf16.mxu0 0
        %1130 = vmatpush1.bf16.msra.mxu0 0
        %1131 = vmatprep.subr.bf16.mxu0 0
        %1132 = vmatpush1.bf16.msra.mxu0 0
        %1133 = vmatprep.subr.bf16.mxu0 0
        %1134 = vmatpush1.bf16.msra.mxu0 0
        %1135 = vmatprep.subr.bf16.mxu0 0
        %1136 = vmatpush1.bf16.msra.mxu0 0
        %1137 = vmatprep.subr.bf16.mxu0 0
        %1138 = vmatpush1.bf16.msra.mxu0 0
        %1139 = vmatprep.subr.bf16.mxu0 0
        %1140 = vmatpush1.bf16.msra.mxu0 0
        %1141 = vmatprep.subr.bf16.mxu0 0
        %1142 = vmatpush1.bf16.msra.mxu0 0
        %1143 = vmatprep.mubr.bf16.mxu0 0
        %1144 = vmatmul.mubr.bf16.gmra.mrb[0].mxu0 %v979
        %v1145 = vpop.f32.mrb[0].mxu0
        %v1146 = vadd.f32 %v1097, %v1145
        %v1147 = vpop.f32.mrb[0].mxu0
        %v1148 = vpop.f32.mrb[0].mxu0
        %v1149 = vpop.f32.mrb[0].mxu0
        %1150 = vdwg.mxu0
        %s1151 = scalar_lea.vmem %s5, 48
        %v1152 = vld [vmem:[%s1151] sm:$0xf]
        %v1153 = vld [vmem:[%s1151 + $0x4] sm:$0xf]
        %v1154 = vld [vmem:[%s1151 + $0x8] sm:$0xf]
        %v1155 = vld [vmem:[%s1151 + $0xc] sm:$0xf]
        %s1156 = scalar_lea.vmem %s9, 3
        %v1157 = vld [vmem:[%s1156] sm:$0x1]
        %v1159 = vlaneseq
        %v1160 = vshrl.u32 %v1159, 7
        %v1161 = vsub.s32 0, %v1160
        %v1162 = vrot.slane %v1157, %v1161
        %v1168 = vunpack.c.l.b16 %v1152
        %v1169 = vunpack.c.l.b16 %v1153
        %v1170 = vunpack.c.l.b16 %v1154
        %v1171 = vunpack.c.l.b16 %v1155
        %v1172 = vpack.c.b16 %v1169, %v1168
        %v1173 = vpack.c.b16 %v1171, %v1170
        %1176 = vmatprep.subr.bf16.mxu0 0
        %1177 = vmatpush1.bf16.msra.mxu0 %v1172
        %1178 = vmatprep.subr.bf16.mxu0 0
        %1179 = vmatpush1.bf16.msra.mxu0 %v1173
        %1180 = vmatprep.subr.bf16.mxu0 0
        %1181 = vmatpush1.bf16.msra.mxu0 0
        %1182 = vmatprep.subr.bf16.mxu0 0
        %1183 = vmatpush1.bf16.msra.mxu0 0
        %1184 = vmatprep.subr.bf16.mxu0 0
        %1185 = vmatpush1.bf16.msra.mxu0 0
        %1186 = vmatprep.subr.bf16.mxu0 0
        %1187 = vmatpush1.bf16.msra.mxu0 0
        %1188 = vmatprep.subr.bf16.mxu0 0
        %1189 = vmatpush1.bf16.msra.mxu0 0
        %1190 = vmatprep.subr.bf16.mxu0 0
        %1191 = vmatpush1.bf16.msra.mxu0 0
        %1192 = vmatprep.subr.bf16.mxu0 0
        %1193 = vmatpush1.bf16.msra.mxu0 0
        %1194 = vmatprep.subr.bf16.mxu0 0
        %1195 = vmatpush1.bf16.msra.mxu0 0
        %1196 = vmatprep.subr.bf16.mxu0 0
        %1197 = vmatpush1.bf16.msra.mxu0 0
        %1198 = vmatprep.subr.bf16.mxu0 0
        %1199 = vmatpush1.bf16.msra.mxu0 0
        %1200 = vmatprep.subr.bf16.mxu0 0
        %1201 = vmatpush1.bf16.msra.mxu0 0
        %1202 = vmatprep.subr.bf16.mxu0 0
        %1203 = vmatpush1.bf16.msra.mxu0 0
        %1204 = vmatprep.subr.bf16.mxu0 0
        %1205 = vmatpush1.bf16.msra.mxu0 0
        %1206 = vmatprep.subr.bf16.mxu0 0
        %1207 = vmatpush1.bf16.msra.mxu0 0
        %1208 = vmatprep.mubr.bf16.mxu0 0
        %1209 = vmatmul.mubr.bf16.gmra.mrb[0].mxu0 %v979
        %v1210 = vpop.f32.mrb[0].mxu0
        %v1211 = vadd.f32 %v1162, %v1210
        %v1212 = vpop.f32.mrb[0].mxu0
        %v1213 = vpop.f32.mrb[0].mxu0
        %v1214 = vpop.f32.mrb[0].mxu0
        %1215 = vdwg.mxu0
        %v1216 = vpack.c.bf16 %v1016, %v1016
        %v1217 = vpack.c.bf16 %v1081, %v1081
        %v1218 = vpack.c.bf16 %v1146, %v1146
        %v1219 = vpack.c.bf16 %v1211, %v1211
        %vm1220 = vcmask 64512
        %v1222 = vsel %vm1220, %v686, 0
        %v1225 = vsel %vm1220, %v951, 0
        %1227 = vmatprep.subr.bf16.mxu0 0
        %1228 = vmatpush1.bf16.xpose.msra.mxu0 %v1225
        %1229 = vmatprep.subr.bf16.mxu0 0
        %1230 = vmatpush1.bf16.xpose.msra.mxu0 0
        %1231 = vmatprep.subr.bf16.mxu0 0
        %1232 = vmatpush1.bf16.xpose.msra.mxu0 0
        %1233 = vmatprep.subr.bf16.mxu0 0
        %1234 = vmatpush1.bf16.xpose.msra.mxu0 0
        %1235 = vmatprep.subr.bf16.mxu0 0
        %1236 = vmatpush1.bf16.xpose.msra.mxu0 0
        %1237 = vmatprep.subr.bf16.mxu0 0
        %1238 = vmatpush1.bf16.xpose.msra.mxu0 0
        %1239 = vmatprep.subr.bf16.mxu0 0
        %1240 = vmatpush1.bf16.xpose.msra.mxu0 0
        %1241 = vmatprep.subr.bf16.mxu0 0
        %1242 = vmatpush1.bf16.xpose.msra.mxu0 0
        %1243 = vmatprep.subr.bf16.mxu0 0
        %1244 = vmatpush1.bf16.xpose.msra.mxu0 0
        %1245 = vmatprep.subr.bf16.mxu0 0
        %1246 = vmatpush1.bf16.xpose.msra.mxu0 0
        %1247 = vmatprep.subr.bf16.mxu0 0
        %1248 = vmatpush1.bf16.xpose.msra.mxu0 0
        %1249 = vmatprep.subr.bf16.mxu0 0
        %1250 = vmatpush1.bf16.xpose.msra.mxu0 0
        %1251 = vmatprep.subr.bf16.mxu0 0
        %1252 = vmatpush1.bf16.xpose.msra.mxu0 0
        %1253 = vmatprep.subr.bf16.mxu0 0
        %1254 = vmatpush1.bf16.xpose.msra.mxu0 0
        %1255 = vmatprep.subr.bf16.mxu0 0
        %1256 = vmatpush1.bf16.xpose.msra.mxu0 0
        %1257 = vmatprep.subr.bf16.mxu0 0
        %1258 = vmatpush1.bf16.xpose.msra.mxu0 0
        %1259 = vmatprep.mubr.bf16.mxu0 0
        %1260 = vmatmul.mubr.bf16.gmra.mrb[0].mxu0 %v1222
        %v1261 = vpop.f32.mrb[0].mxu0
        %v1262 = vadd.f32 0.0, %v1261
        %v1263 = vpop.f32.mrb[0].mxu0
        %v1264 = vpop.f32.mrb[0].mxu0
        %v1265 = vpop.f32.mrb[0].mxu0
        %1266 = vdwg.mxu0
        %v1268 = vsel %vm1220, %v687, 0
        %v1271 = vsel %vm1220, %v952, 0
        %1273 = vmatprep.subr.bf16.mxu0 0
        %1274 = vmatpush1.bf16.xpose.msra.mxu0 %v1271
        %1275 = vmatprep.subr.bf16.mxu0 0
        %1276 = vmatpush1.bf16.xpose.msra.mxu0 0
        %1277 = vmatprep.subr.bf16.mxu0 0
        %1278 = vmatpush1.bf16.xpose.msra.mxu0 0
        %1279 = vmatprep.subr.bf16.mxu0 0
        %1280 = vmatpush1.bf16.xpose.msra.mxu0 0
        %1281 = vmatprep.subr.bf16.mxu0 0
        %1282 = vmatpush1.bf16.xpose.msra.mxu0 0
        %1283 = vmatprep.subr.bf16.mxu0 0
        %1284 = vmatpush1.bf16.xpose.msra.mxu0 0
        %1285 = vmatprep.subr.bf16.mxu0 0
        %1286 = vmatpush1.bf16.xpose.msra.mxu0 0
        %1287 = vmatprep.subr.bf16.mxu0 0
        %1288 = vmatpush1.bf16.xpose.msra.mxu0 0
        %1289 = vmatprep.subr.bf16.mxu0 0
        %1290 = vmatpush1.bf16.xpose.msra.mxu0 0
        %1291 = vmatprep.subr.bf16.mxu0 0
        %1292 = vmatpush1.bf16.xpose.msra.mxu0 0
        %1293 = vmatprep.subr.bf16.mxu0 0
        %1294 = vmatpush1.bf16.xpose.msra.mxu0 0
        %1295 = vmatprep.subr.bf16.mxu0 0
        %1296 = vmatpush1.bf16.xpose.msra.mxu0 0
        %1297 = vmatprep.subr.bf16.mxu0 0
        %1298 = vmatpush1.bf16.xpose.msra.mxu0 0
        %1299 = vmatprep.subr.bf16.mxu0 0
        %1300 = vmatpush1.bf16.xpose.msra.mxu0 0
        %1301 = vmatprep.subr.bf16.mxu0 0
        %1302 = vmatpush1.bf16.xpose.msra.mxu0 0
        %1303 = vmatprep.subr.bf16.mxu0 0
        %1304 = vmatpush1.bf16.xpose.msra.mxu0 0
        %1305 = vmatprep.mubr.bf16.mxu0 0
        %1306 = vmatmul.mubr.bf16.gmra.mrb[0].mxu0 %v1268
        %v1307 = vpop.f32.mrb[0].mxu0
        %v1308 = vadd.f32 0.0, %v1307
        %v1309 = vpop.f32.mrb[0].mxu0
        %v1310 = vpop.f32.mrb[0].mxu0
        %v1311 = vpop.f32.mrb[0].mxu0
        %1312 = vdwg.mxu0
        %v1314 = vsel %vm1220, %v688, 0
        %v1317 = vsel %vm1220, %v953, 0
        %1319 = vmatprep.subr.bf16.mxu0 0
        %1320 = vmatpush1.bf16.xpose.msra.mxu0 %v1317
        %1321 = vmatprep.subr.bf16.mxu0 0
        %1322 = vmatpush1.bf16.xpose.msra.mxu0 0
        %1323 = vmatprep.subr.bf16.mxu0 0
        %1324 = vmatpush1.bf16.xpose.msra.mxu0 0
        %1325 = vmatprep.subr.bf16.mxu0 0
        %1326 = vmatpush1.bf16.xpose.msra.mxu0 0
        %1327 = vmatprep.subr.bf16.mxu0 0
        %1328 = vmatpush1.bf16.xpose.msra.mxu0 0
        %1329 = vmatprep.subr.bf16.mxu0 0
        %1330 = vmatpush1.bf16.xpose.msra.mxu0 0
        %1331 = vmatprep.subr.bf16.mxu0 0
        %1332 = vmatpush1.bf16.xpose.msra.mxu0 0
        %1333 = vmatprep.subr.bf16.mxu0 0
        %1334 = vmatpush1.bf16.xpose.msra.mxu0 0
        %1335 = vmatprep.subr.bf16.mxu0 0
        %1336 = vmatpush1.bf16.xpose.msra.mxu0 0
        %1337 = vmatprep.subr.bf16.mxu0 0
        %1338 = vmatpush1.bf16.xpose.msra.mxu0 0
        %1339 = vmatprep.subr.bf16.mxu0 0
        %1340 = vmatpush1.bf16.xpose.msra.mxu0 0
        %1341 = vmatprep.subr.bf16.mxu0 0
        %1342 = vmatpush1.bf16.xpose.msra.mxu0 0
        %1343 = vmatprep.subr.bf16.mxu0 0
        %1344 = vmatpush1.bf16.xpose.msra.mxu0 0
        %1345 = vmatprep.subr.bf16.mxu0 0
        %1346 = vmatpush1.bf16.xpose.msra.mxu0 0
        %1347 = vmatprep.subr.bf16.mxu0 0
        %1348 = vmatpush1.bf16.xpose.msra.mxu0 0
        %1349 = vmatprep.subr.bf16.mxu0 0
        %1350 = vmatpush1.bf16.xpose.msra.mxu0 0
        %1351 = vmatprep.mubr.bf16.mxu0 0
        %1352 = vmatmul.mubr.bf16.gmra.mrb[0].mxu0 %v1314
        %v1353 = vpop.f32.mrb[0].mxu0
        %v1354 = vadd.f32 0.0, %v1353
        %v1355 = vpop.f32.mrb[0].mxu0
        %v1356 = vpop.f32.mrb[0].mxu0
        %v1357 = vpop.f32.mrb[0].mxu0
        %1358 = vdwg.mxu0
        %v1360 = vsel %vm1220, %v689, 0
        %v1363 = vsel %vm1220, %v954, 0
        %1365 = vmatprep.subr.bf16.mxu0 0
        %1366 = vmatpush1.bf16.xpose.msra.mxu0 %v1363
        %1367 = vmatprep.subr.bf16.mxu0 0
        %1368 = vmatpush1.bf16.xpose.msra.mxu0 0
        %1369 = vmatprep.subr.bf16.mxu0 0
        %1370 = vmatpush1.bf16.xpose.msra.mxu0 0
        %1371 = vmatprep.subr.bf16.mxu0 0
        %1372 = vmatpush1.bf16.xpose.msra.mxu0 0
        %1373 = vmatprep.subr.bf16.mxu0 0
        %1374 = vmatpush1.bf16.xpose.msra.mxu0 0
        %1375 = vmatprep.subr.bf16.mxu0 0
        %1376 = vmatpush1.bf16.xpose.msra.mxu0 0
        %1377 = vmatprep.subr.bf16.mxu0 0
        %1378 = vmatpush1.bf16.xpose.msra.mxu0 0
        %1379 = vmatprep.subr.bf16.mxu0 0
        %1380 = vmatpush1.bf16.xpose.msra.mxu0 0
        %1381 = vmatprep.subr.bf16.mxu0 0
        %1382 = vmatpush1.bf16.xpose.msra.mxu0 0
        %1383 = vmatprep.subr.bf16.mxu0 0
        %1384 = vmatpush1.bf16.xpose.msra.mxu0 0
        %1385 = vmatprep.subr.bf16.mxu0 0
        %1386 = vmatpush1.bf16.xpose.msra.mxu0 0
        %1387 = vmatprep.subr.bf16.mxu0 0
        %1388 = vmatpush1.bf16.xpose.msra.mxu0 0
        %1389 = vmatprep.subr.bf16.mxu0 0
        %1390 = vmatpush1.bf16.xpose.msra.mxu0 0
        %1391 = vmatprep.subr.bf16.mxu0 0
        %1392 = vmatpush1.bf16.xpose.msra.mxu0 0
        %1393 = vmatprep.subr.bf16.mxu0 0
        %1394 = vmatpush1.bf16.xpose.msra.mxu0 0
        %1395 = vmatprep.subr.bf16.mxu0 0
        %1396 = vmatpush1.bf16.xpose.msra.mxu0 0
        %1397 = vmatprep.mubr.bf16.mxu0 0
        %1398 = vmatmul.mubr.bf16.gmra.mrb[0].mxu0 %v1360
        %v1399 = vpop.f32.mrb[0].mxu0
        %v1400 = vadd.f32 0.0, %v1399
        %v1401 = vpop.f32.mrb[0].mxu0
        %v1402 = vpop.f32.mrb[0].mxu0
        %v1403 = vpop.f32.mrb[0].mxu0
        %1404 = vdwg.mxu0
        %v1405 = vsel %vm1220, %v1262, -inf
        %1406 = vmax.xlane.f32.xlu0 %v1405
        %v1407 = vpop.xlane.xlu0 %1406
        %v1408 = vsel %vm1220, %v1308, -inf
        %1409 = vmax.xlane.f32.xlu0 %v1408
        %v1410 = vpop.xlane.xlu0 %1409
        %v1411 = vsel %vm1220, %v1354, -inf
        %1412 = vmax.xlane.f32.xlu0 %v1411
        %v1413 = vpop.xlane.xlu0 %1412
        %v1414 = vsel %vm1220, %v1400, -inf
        %1415 = vmax.xlane.f32.xlu0 %v1414
        %v1416 = vpop.xlane.xlu0 %1415
        %v1417 = vsub.f32 %v1262, %v1407
        %v1418 = vsub.f32 %v1308, %v1410
        %v1419 = vsub.f32 %v1354, %v1413
        %v1420 = vsub.f32 %v1400, %v1416
        %v1421 = vmul.f32 %v1417, 1.442695
        %v1422 = vpow.pop %v1421
        %v1423 = vmul.f32 %v1418, 1.442695
        %v1424 = vpow.pop %v1423
        %v1425 = vmul.f32 %v1419, 1.442695
        %v1426 = vpow.pop %v1425
        %v1427 = vmul.f32 %v1420, 1.442695
        %v1428 = vpow.pop %v1427
        %v1429 = vsel %vm1220, %v1422, 0.0
        %1430 = vadd.xlane.f32.xlu0 %v1429
        %v1431 = vpop.xlane.xlu0 %1430
        %v1432 = vsel %vm1220, %v1424, 0.0
        %1433 = vadd.xlane.f32.xlu0 %v1432
        %v1434 = vpop.xlane.xlu0 %1433
        %v1435 = vsel %vm1220, %v1426, 0.0
        %1436 = vadd.xlane.f32.xlu0 %v1435
        %v1437 = vpop.xlane.xlu0 %1436
        %v1438 = vsel %vm1220, %v1428, 0.0
        %1439 = vadd.xlane.f32.xlu0 %v1438
        %v1440 = vpop.xlane.xlu0 %1439
        %v1441 = vpack.c.bf16 %v1422, %v1422
        %v1442 = vpack.c.bf16 %v1424, %v1424
        %v1443 = vpack.c.bf16 %v1426, %v1426
        %v1444 = vpack.c.bf16 %v1428, %v1428
        %v1446 = vsel %vm1220, %v1441, 0
        %vm1448 = vcmask 1043456
        %v1450 = vsel %vm1448, %v1216, 0
        %1452 = vmatprep.subr.bf16.mxu0 0
        %1453 = vmatpush1.bf16.msra.mxu0 %v1450
        %1454 = vmatprep.subr.bf16.mxu0 0
        %1455 = vmatpush1.bf16.msra.mxu0 0
        %1456 = vmatprep.subr.bf16.mxu0 0
        %1457 = vmatpush1.bf16.msra.mxu0 0
        %1458 = vmatprep.subr.bf16.mxu0 0
        %1459 = vmatpush1.bf16.msra.mxu0 0
        %1460 = vmatprep.subr.bf16.mxu0 0
        %1461 = vmatpush1.bf16.msra.mxu0 0
        %1462 = vmatprep.subr.bf16.mxu0 0
        %1463 = vmatpush1.bf16.msra.mxu0 0
        %1464 = vmatprep.subr.bf16.mxu0 0
        %1465 = vmatpush1.bf16.msra.mxu0 0
        %1466 = vmatprep.subr.bf16.mxu0 0
        %1467 = vmatpush1.bf16.msra.mxu0 0
        %1468 = vmatprep.subr.bf16.mxu0 0
        %1469 = vmatpush1.bf16.msra.mxu0 0
        %1470 = vmatprep.subr.bf16.mxu0 0
        %1471 = vmatpush1.bf16.msra.mxu0 0
        %1472 = vmatprep.subr.bf16.mxu0 0
        %1473 = vmatpush1.bf16.msra.mxu0 0
        %1474 = vmatprep.subr.bf16.mxu0 0
        %1475 = vmatpush1.bf16.msra.mxu0 0
        %1476 = vmatprep.subr.bf16.mxu0 0
        %1477 = vmatpush1.bf16.msra.mxu0 0
        %1478 = vmatprep.subr.bf16.mxu0 0
        %1479 = vmatpush1.bf16.msra.mxu0 0
        %1480 = vmatprep.subr.bf16.mxu0 0
        %1481 = vmatpush1.bf16.msra.mxu0 0
        %1482 = vmatprep.subr.bf16.mxu0 0
        %1483 = vmatpush1.bf16.msra.mxu0 0
        %1484 = vmatprep.mubr.bf16.mxu0 0
        %1485 = vmatmul.mubr.bf16.gmra.mrb[0].mxu0 %v1446
        %v1486 = vpop.f32.mrb[0].mxu0
        %v1487 = vadd.f32 0.0, %v1486
        %v1488 = vpop.f32.mrb[0].mxu0
        %v1489 = vpop.f32.mrb[0].mxu0
        %v1490 = vpop.f32.mrb[0].mxu0
        %1491 = vdwg.mxu0
        %v1493 = vsel %vm1220, %v1442, 0
        %v1496 = vsel %vm1448, %v1217, 0
        %1498 = vmatprep.subr.bf16.mxu0 0
        %1499 = vmatpush1.bf16.msra.mxu0 %v1496
        %1500 = vmatprep.subr.bf16.mxu0 0
        %1501 = vmatpush1.bf16.msra.mxu0 0
        %1502 = vmatprep.subr.bf16.mxu0 0
        %1503 = vmatpush1.bf16.msra.mxu0 0
        %1504 = vmatprep.subr.bf16.mxu0 0
        %1505 = vmatpush1.bf16.msra.mxu0 0
        %1506 = vmatprep.subr.bf16.mxu0 0
        %1507 = vmatpush1.bf16.msra.mxu0 0
        %1508 = vmatprep.subr.bf16.mxu0 0
        %1509 = vmatpush1.bf16.msra.mxu0 0
        %1510 = vmatprep.subr.bf16.mxu0 0
        %1511 = vmatpush1.bf16.msra.mxu0 0
        %1512 = vmatprep.subr.bf16.mxu0 0
        %1513 = vmatpush1.bf16.msra.mxu0 0
        %1514 = vmatprep.subr.bf16.mxu0 0
        %1515 = vmatpush1.bf16.msra.mxu0 0
        %1516 = vmatprep.subr.bf16.mxu0 0
        %1517 = vmatpush1.bf16.msra.mxu0 0
        %1518 = vmatprep.subr.bf16.mxu0 0
        %1519 = vmatpush1.bf16.msra.mxu0 0
        %1520 = vmatprep.subr.bf16.mxu0 0
        %1521 = vmatpush1.bf16.msra.mxu0 0
        %1522 = vmatprep.subr.bf16.mxu0 0
        %1523 = vmatpush1.bf16.msra.mxu0 0
        %1524 = vmatprep.subr.bf16.mxu0 0
        %1525 = vmatpush1.bf16.msra.mxu0 0
        %1526 = vmatprep.subr.bf16.mxu0 0
        %1527 = vmatpush1.bf16.msra.mxu0 0
        %1528 = vmatprep.subr.bf16.mxu0 0
        %1529 = vmatpush1.bf16.msra.mxu0 0
        %1530 = vmatprep.mubr.bf16.mxu0 0
        %1531 = vmatmul.mubr.bf16.gmra.mrb[0].mxu0 %v1493
        %v1532 = vpop.f32.mrb[0].mxu0
        %v1533 = vadd.f32 0.0, %v1532
        %v1534 = vpop.f32.mrb[0].mxu0
        %v1535 = vpop.f32.mrb[0].mxu0
        %v1536 = vpop.f32.mrb[0].mxu0
        %1537 = vdwg.mxu0
        %v1539 = vsel %vm1220, %v1443, 0
        %v1542 = vsel %vm1448, %v1218, 0
        %1544 = vmatprep.subr.bf16.mxu0 0
        %1545 = vmatpush1.bf16.msra.mxu0 %v1542
        %1546 = vmatprep.subr.bf16.mxu0 0
        %1547 = vmatpush1.bf16.msra.mxu0 0
        %1548 = vmatprep.subr.bf16.mxu0 0
        %1549 = vmatpush1.bf16.msra.mxu0 0
        %1550 = vmatprep.subr.bf16.mxu0 0
        %1551 = vmatpush1.bf16.msra.mxu0 0
        %1552 = vmatprep.subr.bf16.mxu0 0
        %1553 = vmatpush1.bf16.msra.mxu0 0
        %1554 = vmatprep.subr.bf16.mxu0 0
        %1555 = vmatpush1.bf16.msra.mxu0 0
        %1556 = vmatprep.subr.bf16.mxu0 0
        %1557 = vmatpush1.bf16.msra.mxu0 0
        %1558 = vmatprep.subr.bf16.mxu0 0
        %1559 = vmatpush1.bf16.msra.mxu0 0
        %1560 = vmatprep.subr.bf16.mxu0 0
        %1561 = vmatpush1.bf16.msra.mxu0 0
        %1562 = vmatprep.subr.bf16.mxu0 0
        %1563 = vmatpush1.bf16.msra.mxu0 0
        %1564 = vmatprep.subr.bf16.mxu0 0
        %1565 = vmatpush1.bf16.msra.mxu0 0
        %1566 = vmatprep.subr.bf16.mxu0 0
        %1567 = vmatpush1.bf16.msra.mxu0 0
        %1568 = vmatprep.subr.bf16.mxu0 0
        %1569 = vmatpush1.bf16.msra.mxu0 0
        %1570 = vmatprep.subr.bf16.mxu0 0
        %1571 = vmatpush1.bf16.msra.mxu0 0
        %1572 = vmatprep.subr.bf16.mxu0 0
        %1573 = vmatpush1.bf16.msra.mxu0 0
        %1574 = vmatprep.subr.bf16.mxu0 0
        %1575 = vmatpush1.bf16.msra.mxu0 0
        %1576 = vmatprep.mubr.bf16.mxu0 0
        %1577 = vmatmul.mubr.bf16.gmra.mrb[0].mxu0 %v1539
        %v1578 = vpop.f32.mrb[0].mxu0
        %v1579 = vadd.f32 0.0, %v1578
        %v1580 = vpop.f32.mrb[0].mxu0
        %v1581 = vpop.f32.mrb[0].mxu0
        %v1582 = vpop.f32.mrb[0].mxu0
        %1583 = vdwg.mxu0
        %v1585 = vsel %vm1220, %v1444, 0
        %v1588 = vsel %vm1448, %v1219, 0
        %1590 = vmatprep.subr.bf16.mxu0 0
        %1591 = vmatpush1.bf16.msra.mxu0 %v1588
        %1592 = vmatprep.subr.bf16.mxu0 0
        %1593 = vmatpush1.bf16.msra.mxu0 0
        %1594 = vmatprep.subr.bf16.mxu0 0
        %1595 = vmatpush1.bf16.msra.mxu0 0
        %1596 = vmatprep.subr.bf16.mxu0 0
        %1597 = vmatpush1.bf16.msra.mxu0 0
        %1598 = vmatprep.subr.bf16.mxu0 0
        %1599 = vmatpush1.bf16.msra.mxu0 0
        %1600 = vmatprep.subr.bf16.mxu0 0
        %1601 = vmatpush1.bf16.msra.mxu0 0
        %1602 = vmatprep.subr.bf16.mxu0 0
        %1603 = vmatpush1.bf16.msra.mxu0 0
        %1604 = vmatprep.subr.bf16.mxu0 0
        %1605 = vmatpush1.bf16.msra.mxu0 0
        %1606 = vmatprep.subr.bf16.mxu0 0
        %1607 = vmatpush1.bf16.msra.mxu0 0
        %1608 = vmatprep.subr.bf16.mxu0 0
        %1609 = vmatpush1.bf16.msra.mxu0 0
        %1610 = vmatprep.subr.bf16.mxu0 0
        %1611 = vmatpush1.bf16.msra.mxu0 0
        %1612 = vmatprep.subr.bf16.mxu0 0
        %1613 = vmatpush1.bf16.msra.mxu0 0
        %1614 = vmatprep.subr.bf16.mxu0 0
        %1615 = vmatpush1.bf16.msra.mxu0 0
        %1616 = vmatprep.subr.bf16.mxu0 0
        %1617 = vmatpush1.bf16.msra.mxu0 0
        %1618 = vmatprep.subr.bf16.mxu0 0
        %1619 = vmatpush1.bf16.msra.mxu0 0
        %1620 = vmatprep.subr.bf16.mxu0 0
        %1621 = vmatpush1.bf16.msra.mxu0 0
        %1622 = vmatprep.mubr.bf16.mxu0 0
        %1623 = vmatmul.mubr.bf16.gmra.mrb[0].mxu0 %v1585
        %v1624 = vpop.f32.mrb[0].mxu0
        %v1625 = vadd.f32 0.0, %v1624
        %v1626 = vpop.f32.mrb[0].mxu0
        %v1627 = vpop.f32.mrb[0].mxu0
        %v1628 = vpop.f32.mrb[0].mxu0
        %1629 = vdwg.mxu0
        %v1630 = vrcp.pop %v1431
        %v1631 = vrcp.pop %v1434
        %v1632 = vrcp.pop %v1437
        %v1633 = vrcp.pop %v1440
        %v1634 = vmul.f32 %v1487, %v1630
        %v1635 = vmul.f32 %v1533, %v1631
        %v1636 = vmul.f32 %v1579, %v1632
        %v1637 = vmul.f32 %v1625, %v1633
        %v1638 = vpack.c.bf16 %v1634, %v1634
        %v1639 = vpack.c.bf16 %v1635, %v1635
        %v1640 = vpack.c.bf16 %v1636, %v1636
        %v1641 = vpack.c.bf16 %v1637, %v1637
        %v1642 = vld [vmem:[%s6] sm:$0xf]
        %s1643 = scalar_lea.vmem %s6, 4
        %v1644 = vld [vmem:[%s1643] sm:$0xf]
        %v1646 = vsel %vm1220, %v1639, 0
        %v1649 = vsel %vm1448, %v1644, 0
        %1651 = vmatprep.subr.bf16.mxu0 0
        %1652 = vmatpush1.bf16.msra.mxu0 %v1649
        %1653 = vmatprep.subr.bf16.mxu0 0
        %1654 = vmatpush1.bf16.msra.mxu0 0
        %1655 = vmatprep.subr.bf16.mxu0 0
        %1656 = vmatpush1.bf16.msra.mxu0 0
        %1657 = vmatprep.subr.bf16.mxu0 0
        %1658 = vmatpush1.bf16.msra.mxu0 0
        %1659 = vmatprep.subr.bf16.mxu0 0
        %1660 = vmatpush1.bf16.msra.mxu0 0
        %1661 = vmatprep.subr.bf16.mxu0 0
        %1662 = vmatpush1.bf16.msra.mxu0 0
        %1663 = vmatprep.subr.bf16.mxu0 0
        %1664 = vmatpush1.bf16.msra.mxu0 0
        %1665 = vmatprep.subr.bf16.mxu0 0
        %1666 = vmatpush1.bf16.msra.mxu0 0
        %1667 = vmatprep.subr.bf16.mxu0 0
        %1668 = vmatpush1.bf16.msra.mxu0 0
        %1669 = vmatprep.subr.bf16.mxu0 0
        %1670 = vmatpush1.bf16.msra.mxu0 0
        %1671 = vmatprep.subr.bf16.mxu0 0
        %1672 = vmatpush1.bf16.msra.mxu0 0
        %1673 = vmatprep.subr.bf16.mxu0 0
        %1674 = vmatpush1.bf16.msra.mxu0 0
        %1675 = vmatprep.subr.bf16.mxu0 0
        %1676 = vmatpush1.bf16.msra.mxu0 0
        %1677 = vmatprep.subr.bf16.mxu0 0
        %1678 = vmatpush1.bf16.msra.mxu0 0
        %1679 = vmatprep.subr.bf16.mxu0 0
        %1680 = vmatpush1.bf16.msra.mxu0 0
        %1681 = vmatprep.subr.bf16.mxu0 0
        %1682 = vmatpush1.bf16.msra.mxu0 0
        %1683 = vmatprep.mubr.bf16.mxu0 0
        %1684 = vmatmul.mubr.bf16.gmra.mrb[0].mxu0 %v1646
        %v1685 = vpop.f32.mrb[0].mxu0
        %v1686 = vadd.f32 0.0, %v1685
        %v1687 = vpop.f32.mrb[0].mxu0
        %v1688 = vpop.f32.mrb[0].mxu0
        %v1689 = vpop.f32.mrb[0].mxu0
        %1690 = vdwg.mxu0
        %v1692 = vsel %vm1220, %v1638, 0
        %v1695 = vsel %vm1448, %v1642, 0
        %1697 = vmatprep.subr.bf16.mxu0 0
        %1698 = vmatpush1.bf16.msra.mxu0 %v1695
        %1699 = vmatprep.subr.bf16.mxu0 0
        %1700 = vmatpush1.bf16.msra.mxu0 0
        %1701 = vmatprep.subr.bf16.mxu0 0
        %1702 = vmatpush1.bf16.msra.mxu0 0
        %1703 = vmatprep.subr.bf16.mxu0 0
        %1704 = vmatpush1.bf16.msra.mxu0 0
        %1705 = vmatprep.subr.bf16.mxu0 0
        %1706 = vmatpush1.bf16.msra.mxu0 0
        %1707 = vmatprep.subr.bf16.mxu0 0
        %1708 = vmatpush1.bf16.msra.mxu0 0
        %1709 = vmatprep.subr.bf16.mxu0 0
        %1710 = vmatpush1.bf16.msra.mxu0 0
        %1711 = vmatprep.subr.bf16.mxu0 0
        %1712 = vmatpush1.bf16.msra.mxu0 0
        %1713 = vmatprep.subr.bf16.mxu0 0
        %1714 = vmatpush1.bf16.msra.mxu0 0
        %1715 = vmatprep.subr.bf16.mxu0 0
        %1716 = vmatpush1.bf16.msra.mxu0 0
        %1717 = vmatprep.subr.bf16.mxu0 0
        %1718 = vmatpush1.bf16.msra.mxu0 0
        %1719 = vmatprep.subr.bf16.mxu0 0
        %1720 = vmatpush1.bf16.msra.mxu0 0
        %1721 = vmatprep.subr.bf16.mxu0 0
        %1722 = vmatpush1.bf16.msra.mxu0 0
        %1723 = vmatprep.subr.bf16.mxu0 0
        %1724 = vmatpush1.bf16.msra.mxu0 0
        %1725 = vmatprep.subr.bf16.mxu0 0
        %1726 = vmatpush1.bf16.msra.mxu0 0
        %1727 = vmatprep.subr.bf16.mxu0 0
        %1728 = vmatpush1.bf16.msra.mxu0 0
        %1729 = vmatprep.mubr.bf16.mxu0 0
        %1730 = vmatmul.mubr.bf16.gmra.mrb[0].mxu0 %v1692
        %v1731 = vpop.f32.mrb[0].mxu0
        %v1732 = vadd.f32 %v1686, %v1731
        %v1733 = vpop.f32.mrb[0].mxu0
        %v1734 = vpop.f32.mrb[0].mxu0
        %v1735 = vpop.f32.mrb[0].mxu0
        %1736 = vdwg.mxu0
        %s1737 = scalar_lea.vmem %s6, 8
        %v1738 = vld [vmem:[%s1737] sm:$0xf]
        %v1740 = vsel %vm1220, %v1640, 0
        %v1743 = vsel %vm1448, %v1738, 0
        %1745 = vmatprep.subr.bf16.mxu0 0
        %1746 = vmatpush1.bf16.msra.mxu0 %v1743
        %1747 = vmatprep.subr.bf16.mxu0 0
        %1748 = vmatpush1.bf16.msra.mxu0 0
        %1749 = vmatprep.subr.bf16.mxu0 0
        %1750 = vmatpush1.bf16.msra.mxu0 0
        %1751 = vmatprep.subr.bf16.mxu0 0
        %1752 = vmatpush1.bf16.msra.mxu0 0
        %1753 = vmatprep.subr.bf16.mxu0 0
        %1754 = vmatpush1.bf16.msra.mxu0 0
        %1755 = vmatprep.subr.bf16.mxu0 0
        %1756 = vmatpush1.bf16.msra.mxu0 0
        %1757 = vmatprep.subr.bf16.mxu0 0
        %1758 = vmatpush1.bf16.msra.mxu0 0
        %1759 = vmatprep.subr.bf16.mxu0 0
        %1760 = vmatpush1.bf16.msra.mxu0 0
        %1761 = vmatprep.subr.bf16.mxu0 0
        %1762 = vmatpush1.bf16.msra.mxu0 0
        %1763 = vmatprep.subr.bf16.mxu0 0
        %1764 = vmatpush1.bf16.msra.mxu0 0
        %1765 = vmatprep.subr.bf16.mxu0 0
        %1766 = vmatpush1.bf16.msra.mxu0 0
        %1767 = vmatprep.subr.bf16.mxu0 0
        %1768 = vmatpush1.bf16.msra.mxu0 0
        %1769 = vmatprep.subr.bf16.mxu0 0
        %1770 = vmatpush1.bf16.msra.mxu0 0
        %1771 = vmatprep.subr.bf16.mxu0 0
        %1772 = vmatpush1.bf16.msra.mxu0 0
        %1773 = vmatprep.subr.bf16.mxu0 0
        %1774 = vmatpush1.bf16.msra.mxu0 0
        %1775 = vmatprep.subr.bf16.mxu0 0
        %1776 = vmatpush1.bf16.msra.mxu0 0
        %1777 = vmatprep.mubr.bf16.mxu0 0
        %1778 = vmatmul.mubr.bf16.gmra.mrb[0].mxu0 %v1740
        %v1779 = vpop.f32.mrb[0].mxu0
        %v1780 = vadd.f32 0.0, %v1779
        %v1781 = vpop.f32.mrb[0].mxu0
        %v1782 = vpop.f32.mrb[0].mxu0
        %v1783 = vpop.f32.mrb[0].mxu0
        %1784 = vdwg.mxu0
        %v1785 = vadd.f32 %v1732, %v1780
        %s1786 = scalar_lea.vmem %s6, 12
        %v1787 = vld [vmem:[%s1786] sm:$0xf]
        %v1789 = vsel %vm1220, %v1641, 0
        %v1792 = vsel %vm1448, %v1787, 0
        %1794 = vmatprep.subr.bf16.mxu0 0
        %1795 = vmatpush1.bf16.msra.mxu0 %v1792
        %1796 = vmatprep.subr.bf16.mxu0 0
        %1797 = vmatpush1.bf16.msra.mxu0 0
        %1798 = vmatprep.subr.bf16.mxu0 0
        %1799 = vmatpush1.bf16.msra.mxu0 0
        %1800 = vmatprep.subr.bf16.mxu0 0
        %1801 = vmatpush1.bf16.msra.mxu0 0
        %1802 = vmatprep.subr.bf16.mxu0 0
        %1803 = vmatpush1.bf16.msra.mxu0 0
        %1804 = vmatprep.subr.bf16.mxu0 0
        %1805 = vmatpush1.bf16.msra.mxu0 0
        %1806 = vmatprep.subr.bf16.mxu0 0
        %1807 = vmatpush1.bf16.msra.mxu0 0
        %1808 = vmatprep.subr.bf16.mxu0 0
        %1809 = vmatpush1.bf16.msra.mxu0 0
        %1810 = vmatprep.subr.bf16.mxu0 0
        %1811 = vmatpush1.bf16.msra.mxu0 0
        %1812 = vmatprep.subr.bf16.mxu0 0
        %1813 = vmatpush1.bf16.msra.mxu0 0
        %1814 = vmatprep.subr.bf16.mxu0 0
        %1815 = vmatpush1.bf16.msra.mxu0 0
        %1816 = vmatprep.subr.bf16.mxu0 0
        %1817 = vmatpush1.bf16.msra.mxu0 0
        %1818 = vmatprep.subr.bf16.mxu0 0
        %1819 = vmatpush1.bf16.msra.mxu0 0
        %1820 = vmatprep.subr.bf16.mxu0 0
        %1821 = vmatpush1.bf16.msra.mxu0 0
        %1822 = vmatprep.subr.bf16.mxu0 0
        %1823 = vmatpush1.bf16.msra.mxu0 0
        %1824 = vmatprep.subr.bf16.mxu0 0
        %1825 = vmatpush1.bf16.msra.mxu0 0
        %1826 = vmatprep.mubr.bf16.mxu0 0
        %1827 = vmatmul.mubr.bf16.gmra.mrb[0].mxu0 %v1789
        %v1828 = vpop.f32.mrb[0].mxu0
        %v1829 = vadd.f32 0.0, %v1828
        %v1830 = vpop.f32.mrb[0].mxu0
        %v1831 = vpop.f32.mrb[0].mxu0
        %v1832 = vpop.f32.mrb[0].mxu0
        %1833 = vdwg.mxu0
        %v1834 = vadd.f32 %v1785, %v1829
        %v1835 = vld [vmem:[%s10] sm:$0x1]
        %v1837 = vlaneseq
        %v1838 = vshrl.u32 %v1837, 7
        %v1839 = vsub.s32 0, %v1838
        %v1840 = vrot.slane %v1835, %v1839
        %v1842 = vadd.f32 %v1834, %v1840
        %1843 = vst.msk [vmem:[%s403] sm:$0xff] %vm443, %v1842
        %s1844 = sand.u32 %s279, 1
        %s1845 = scalar_lea.sflag [#allocation3], %s1844
        %s1846 = sand.u32 %s279, 1
        %s1847 = smul.addr %s1846, 8
        %s1848 = scalar_lea.vmem [#allocation2], %s1847
        // Predicated region
        $region65: #{tpu_custom_call.1} parent=63 // pred_check
          %p1849 = pneg %p289
        $region66: #{tpu_custom_call.1} parent=63 // pred_check_branch
          %1851 = sbr.rel (%p1849) target = $region68
        $region67: #{tpu_custom_call.1} parent=63 // pred_region
          %s1853 = ssub.s32 128, 128
          %1854 = vsyncadd %s1845, %s1853
          %s1855 = smul.addr %s25, 128
          %s1856 = scalar_lea.hbm %s11, %s1855
          %s1858 = sshll.u32 %s1848, 4
          %s1859 = int_to_ptr.vmem [resolvable:$true] %s1858
          %1861 = dma.vmem_to_hbm [thread:$0]  %s1859, 128, %s1856, %s1845
        $region68: #{tpu_custom_call.1} parent=63 // pred_fallthru
          _
      $region64: #{tpu_custom_call.1} parent=5 // pred_fallthru
        _
      %p1862 = scmp.le.s32.totalorder 2, %s20
      // Predicated region
      $region69: #{tpu_custom_call.1} parent=5 // pred_check
        %p1863 = pneg %p1862
      $region70: #{tpu_custom_call.1} parent=5 // pred_check_branch
        %1865 = sbr.rel (%p1863) target = $region72
      $region71: #{tpu_custom_call.1} parent=5 // pred_region
        %s1866 = ssub.s32 %s20, 2
        // Predicated region
        $region73: #{tpu_custom_call.1} parent=71 // pred_check
          %p1867 = pneg %p295
        $region74: #{tpu_custom_call.1} parent=71 // pred_check_branch
          %1869 = sbr.rel (%p1867) target = $region76
        $region75: #{tpu_custom_call.1} parent=71 // pred_region
          %s1870 = sand.u32 %s280, 1
          %s1871 = scalar_lea.sflag [#allocation3], %s1870
          %s1872 = sand.u32 %s280, 1
          %s1873 = smul.addr %s1872, 8
          %s1874 = scalar_lea.vmem [#allocation2], %s1873
          %1875 = dma.done %s1871, 128
        $region76: #{tpu_custom_call.1} parent=71 // pred_fallthru
          _
      $region72: #{tpu_custom_call.1} parent=5 // pred_fallthru
        _
    $region6: #{tpu_custom_call.1} parent=1 // loop_footer
      %s24 = sadd.s32 1, %s20
    $region7: #{tpu_custom_call.1} parent=1 // loop_footer_branch
      %19 = sbr.rel target = $region3
    $region8: #{tpu_custom_call.1} parent=1 // loop_exit
      _
    %1876 = vsyncpa [#allocation3], 1
    %s1877 = scalar_lea.sflag [#allocation3], 1
    %1878 = vsyncpa %s1877, 1

</llo_original>
